<compile_context>
chip_gen: v5e
topology: v5e:2x2
jax: 0.10.0
libtpu: 0.0.40
codegen_flags: <defaults>
</compile_context>

<pallas_src>
import functools
from typing import NamedTuple

import jax
import jax.numpy as jnp
from jax.experimental import pallas as pl
from jax.experimental.pallas import tpu as pltpu


class NestedTensor(NamedTuple):
    tensors: jnp.ndarray   # (N, C, H, W)
    mask: jnp.ndarray      # (N, 1, H, W)

    def decompose(self):
        return self.tensors, self.mask


# ----------------------------------------------------------------------------
# Generic fused conv-as-matmul kernel.
#   slab[k, i*Wrow + j] = src[tap.src][tap.ch + c, (i + qi)*Wrow + (j + qj)]   (static slices)
#   acc = W2d @ slab + b ; ReLU ; [acc = Wproj @ acc + bproj ; (ReLU)]
#   o   = acc   (single lane-dense store of the whole tile)
# All spatial resampling (stride-2 / nearest-2x) has been folded into the host-side layout
# (space-to-depth) and the weight matrix (phase stacking), so the kernel is resampling-free.
# ----------------------------------------------------------------------------
def _conv_mm_kernel(*refs, taps, n_src, has_proj, relu, proj_relu, tile_len, n_tiles):
    it = iter(refs)
    srcs = [next(it) for _ in range(n_src)]            # (1, C_s, L_s) bf16, flattened spatial
    w_ref = next(it)                                   # (Mout, Ktot) bf16
    b_ref = next(it)                                   # (Mout, 1)   f32
    wp_ref = next(it) if has_proj else None            # (Cf, Mout)  bf16
    bp_ref = next(it) if has_proj else None            # (Cf, 1)     f32
    o_ref = next(it)                                   # (1, Cf, tile_len)
    slab = next(it)                                    # scratch (Ktot, tile_len) bf16

    if n_tiles > 1:
        base = pl.program_id(1) * tile_len             # flat offset of this output row tile

    # Build the im2col slab: one contiguous (static-offset) slice copy per tap.
    k0 = 0
    for (s, cs, cl, off) in taps:
        if n_tiles > 1:
            piece = srcs[s][0, cs:cs + cl, pl.ds(base + off, tile_len)]
        else:
            piece = srcs[s][0, cs:cs + cl, off:off + tile_len]
        slab[k0:k0 + cl, :] = piece
        k0 += cl

    # Single big MXU contraction for the whole tile; f32 accumulation.
    acc = jnp.dot(w_ref[...], slab[...], preferred_element_type=jnp.float32)
    acc = acc + b_ref[...]
    if relu:
        acc = jnp.maximum(acc, 0.0)
    if has_proj:                                       # fused 1x1 conv epilogue
        acc = jnp.dot(wp_ref[...], acc.astype(jnp.bfloat16),
                      preferred_element_type=jnp.float32) + bp_ref[...]
        if proj_relu:
            acc = jnp.maximum(acc, 0.0)
    o_ref[0] = acc.astype(o_ref.dtype)                 # one lane-dense store


def _fused_conv_mm(srcs, wrow, hlo, taps, w2d, bias, *, proj=None, relu=True,
                   proj_relu=False, out_dtype=jnp.bfloat16):
    """srcs: list of (N, C_s, L_s) bf16 spatially-flattened, pre-padded inputs sharing the
       row width `wrow`.  taps: list of (src, ch_start, ch_len, qi, qj).  Output is
       (N, Cf, hlo*wrow) with the last (overhang) columns of each row being junk."""
    N = srcs[0].shape[0]
    mout, ktot = w2d.shape
    assert sum(t[2] for t in taps) == ktot
    has_proj = proj is not None
    cf = proj[0].shape[0] if has_proj else mout
    out_isz = jnp.dtype(out_dtype).itemsize

    # Row-tile heuristic (bounded; no pathological full-unroll fallback): whole image if the
    # slab + double-buffered output tile fit the budget, else the largest divisor of hlo
    # whose flattened tile length is a multiple of 128 lanes.
    slab_row = ktot * wrow * 2
    out_row = cf * wrow * out_isz
    budget = 6 << 20
    th = hlo
    if hlo * (slab_row + 2 * out_row) > budget:
        for cand in range(hlo - 1, 0, -1):
            if hlo % cand == 0 and (cand * wrow) % 128 == 0 and \
               cand * (slab_row + 2 * out_row) <= budget:
                th = cand
                break
    n_tiles = hlo // th
    tile_len = th * wrow
    lout = hlo * wrow

    taps_flat = tuple((s, cs, cl, qi * wrow + qj) for (s, cs, cl, qi, qj) in taps)

    inputs = list(srcs)
    in_specs = [pl.BlockSpec((1, int(a.shape[1]), int(a.shape[2])), lambda n, t: (n, 0, 0))
                for a in srcs]
    # TODO(synk): halo'd row-window fetch (manual make_async_copy) for very large images on
    # v7x; the full-image block is fetched once per image here (block index ignores t).

    inputs.append(w2d.astype(jnp.bfloat16))
    in_specs.append(pl.BlockSpec((mout, ktot), lambda n, t: (0, 0)))
    inputs.append(bias.reshape(mout, 1).astype(jnp.float32))
    in_specs.append(pl.BlockSpec((mout, 1), lambda n, t: (0, 0)))
    if has_proj:
        wp, bp = proj
        inputs.append(wp.reshape(cf, mout).astype(jnp.bfloat16))
        in_specs.append(pl.BlockSpec((cf, mout), lambda n, t: (0, 0)))
        inputs.append(bp.reshape(cf, 1).astype(jnp.float32))
        in_specs.append(pl.BlockSpec((cf, 1), lambda n, t: (0, 0)))

    src_bytes = sum(int(a.shape[1]) * int(a.shape[2]) * 2 for a in srcs)        # per image
    w_bytes = mout * ktot * 2 + mout * 4 + (cf * mout * 2 + cf * 4 if has_proj else 0)
    need = 2 * src_bytes + 2 * cf * tile_len * out_isz + ktot * tile_len * 2 + 2 * w_bytes
    vmem_limit = int(min(max(need * 2, 16 << 20), 96 << 20))

    flops = int(2 * N * lout * (mout * ktot + (cf * mout if has_proj else 0)))
    bytes_accessed = int(N * src_bytes + w_bytes + N * cf * lout * out_isz)

    kernel = functools.partial(
        _conv_mm_kernel, taps=taps_flat, n_src=len(srcs), has_proj=has_proj,
        relu=relu, proj_relu=proj_relu, tile_len=tile_len, n_tiles=n_tiles)

    return pl.pallas_call(
        kernel,
        out_shape=jax.ShapeDtypeStruct((N, cf, lout), out_dtype),
        grid=(N, n_tiles),
        in_specs=in_specs,
        out_specs=pl.BlockSpec((1, cf, tile_len), lambda n, t: (n, 0, t)),
        scratch_shapes=[pltpu.VMEM((ktot, tile_len), jnp.bfloat16)],
        compiler_params=pltpu.CompilerParams(
            dimension_semantics=("parallel", "parallel"),
            vmem_limit_bytes=vmem_limit),
        cost_estimate=pl.CostEstimate(flops=flops, transcendentals=0,
                                      bytes_accessed=bytes_accessed),
    )(*inputs)


# ----------------------------------------------------------------------------
# Host-side layout plumbing (wrapper reshapes/transposes, no compute hoisting).
# ----------------------------------------------------------------------------
def _space_to_depth(x):
    """(N, C, 2R, 2S) -> (N, 4C, R, S); channel order g*C + c with g = 2*row_par + col_par."""
    N, C, H, W = x.shape
    x = x.reshape(N, C, H // 2, 2, W // 2, 2)
    x = jnp.transpose(x, (0, 3, 5, 1, 2, 4))
    return x.reshape(N, 4 * C, H // 2, W // 2)


def _flatten_rows(x):
    """Append one zero safety row (keeps every flattened tap slice in-bounds), cast bf16,
    flatten spatial -> (N, C, (R+1)*W)."""
    x = jnp.pad(x, ((0, 0), (0, 0), (0, 1), (0, 0)))
    N, C, R, W = x.shape
    return x.astype(jnp.bfloat16).reshape(N, C, R * W)


# ----------------------------------------------------------------------------
# Weight / tap builders (host side; tiny).
# ----------------------------------------------------------------------------
def _down2_taps_w(w):
    """3x3 stride-2 pad-1 conv  ==  9 taps over space-to-depth(pad(x))."""
    co, ci = w.shape[0], w.shape[1]
    taps, blocks = [], []
    for di in range(3):
        qi, ri = divmod(di, 2)
        for dj in range(3):
            qj, rj = divmod(dj, 2)
            g = 2 * ri + rj
            taps.append((0, g * ci, ci, qi, qj))
            blocks.append(w[:, :, di, dj])
    return taps, jnp.concatenate(blocks, axis=1)                    # (co, 9*ci)


def _up2_x_taps_w(w, src):
    """nearest-2x upsample + 3x3 stride-1 pad-1 conv  ==  phase-collapsed taps over pad(x);
    the 4 output phases are stacked along the output-channel (matmul M) dim."""
    co, ci = w.shape[0], w.shape[1]
    taps = [(src, 0, ci, a, b) for a in range(3) for b in range(3)]
    rows = []
    for pi in range(2):
        for pj in range(2):
            blks = []
            for a in range(3):
                for b in range(3):
                    blk = jnp.zeros((co, ci), w.dtype)
                    for di in range(3):
                        if (pi + di + 1) // 2 != a:
                            continue
                        for dj in range(3):
                            if (pj + dj + 1) // 2 != b:
                                continue
                            blk = blk + w[:, :, di, dj]
                    blks.append(blk)
            rows.append(jnp.concatenate(blks, axis=1))
    return taps, jnp.concatenate(rows, axis=0)                      # (4*co, 9*ci)


def _up2_skip_taps_w(ws, src):
    """High-res skip branch of the phase-decomposed upsample conv: 16 taps over
    space-to-depth(pad(skip)); phases stacked along the output-channel dim."""
    co, cs = ws.shape[0], ws.shape[1]
    taps = [(src, g * cs, cs, qi, qj)
            for g in range(4) for qi in range(2) for qj in range(2)]
    rows = []
    for pi in range(2):
        for pj in range(2):
            blks = [jnp.zeros((co, cs), ws.dtype) for _ in range(16)]
            for di in range(3):
                qi, ri = divmod(pi + di, 2)
                for dj in range(3):
                    qj, rj = divmod(pj + dj, 2)
                    t = (2 * ri + rj) * 4 + qi * 2 + qj
                    blks[t] = blks[t] + ws[:, :, di, dj]
            rows.append(jnp.concatenate(blks, axis=1))
    return taps, jnp.concatenate(rows, axis=0)                      # (4*co, 16*cs)


# ----------------------------------------------------------------------------
# Synthetic backbone / bottleneck / decoder parameters (same as previous version).
# ----------------------------------------------------------------------------
def init_params(key):
    def w(k, shape, fan_in):
        return jax.random.normal(k, shape, jnp.float32) / jnp.sqrt(float(fan_in))

    ks = jax.random.split(key, 12)
    p = {}
    p["bb1_w"] = w(ks[0], (8, 4, 3, 3), 4 * 9);   p["bb1_b"] = 0.1 * jax.random.normal(ks[6], (8,))
    p["bb2_w"] = w(ks[1], (16, 8, 3, 3), 8 * 9);  p["bb2_b"] = 0.1 * jax.random.normal(ks[7], (16,))
    p["bn_w"]  = w(ks[2], (16, 16, 1, 1), 16);    p["bn_b"]  = 0.1 * jax.random.normal(ks[8], (16,))
    p["dc1_w"] = w(ks[3], (8, 24, 3, 3), 24 * 9); p["dc1_b"] = 0.1 * jax.random.normal(ks[9], (8,))
    p["dc2_w"] = w(ks[4], (8, 8, 3, 3), 8 * 9);   p["dc2_b"] = 0.1 * jax.random.normal(ks[10], (8,))
    p["dc3_w"] = w(ks[5], (3, 8, 1, 1), 8);       p["dc3_b"] = 0.1 * jax.random.normal(ks[11], (3,))
    return p


def generator_baseline_forward(nt: NestedTensor, p, emb=None):
    """Mirrors GeneratorBaseline.forward:
         nts = backbone(NestedTensor(cat((tensors, mask), 1), mask))
         x, _ = nts[-1].decompose(); x = bottleneck(x); x = decoder(x, nts)
       bb2+bottleneck and dc2+dc3 are fused into single Pallas kernels; the decoder's
       nearest-2x upsample and channel-concat are folded into the conv weights/taps."""
    tensors, mask = nt.decompose()
    N, _, H, W = tensors.shape
    assert H % 4 == 0 and W % 4 == 0, "2x down/up path requires H, W divisible by 4"
    H2, W2, H4, W4 = H // 2, W // 2, H // 4, W // 4

    x_in = jnp.concatenate([tensors, mask], axis=1)                         # (N, 4, H, W)

    # backbone stage 1: 3x3 s2 conv + ReLU  -> skip feature f1
    xs = _flatten_rows(_space_to_depth(
        jnp.pad(x_in, ((0, 0), (0, 0), (1, 1), (1, 1)))))                   # (N,16,(H2+2)*(W2+1))
    tapsA, wA = _down2_taps_w(p["bb1_w"])
    f1_raw = _fused_conv_mm([xs], W2 + 1, H2, tapsA, wA, p["bb1_b"])        # (N, 8, H2*(W2+1))
    f1 = f1_raw.reshape(N, 8, H2, W2 + 1)[:, :, :, :W2]                     # (N, 8, H2, W2) bf16

    # padded + space-to-depth'd f1 (shared by backbone stage 2 and the decoder skip branch)
    f1_s2d = _flatten_rows(_space_to_depth(
        jnp.pad(f1, ((0, 0), (0, 0), (1, 1), (1, 3)))))                     # (N,32,(H4+2)*(W4+2))

    # backbone stage 2 + bottleneck (1x1) fused epilogue; nts[-1] is never materialized.
    tapsB, wB = _down2_taps_w(p["bb2_w"])
    xb_raw = _fused_conv_mm([f1_s2d], W4 + 2, H4, tapsB, wB, p["bb2_b"],
                            proj=(p["bn_w"].reshape(16, 16), p["bn_b"]), proj_relu=True)
    xb = xb_raw.reshape(N, 16, H4, W4 + 2)[:, :, :, :W4]                    # (N, 16, H4, W4)
    # NOTE: the backbone's downsampled masks are not consumed by this decoder -> not recomputed.

    # decoder stage 1: fused [nearest-2x upsample + concat(f1) + 3x3 conv + bias + ReLU];
    # 4 output phases stacked along M (32 rows), skip taps fused into the same contraction.
    xb_flat = _flatten_rows(jnp.pad(xb, ((0, 0), (0, 0), (1, 1), (1, 1))))  # (N,16,(H4+3)*(W4+2))
    tapsCx, wCx = _up2_x_taps_w(p["dc1_w"][:, :16], src=0)
    tapsCs, wCs = _up2_skip_taps_w(p["dc1_w"][:, 16:], src=1)
    d1_raw = _fused_conv_mm([xb_flat, f1_s2d], W4 + 2, H4,
                            tapsCx + tapsCs, jnp.concatenate([wCx, wCs], axis=1),
                            jnp.tile(p["dc1_b"], 4))                        # (N, 32, H4*(W4+2))
    d1 = (d1_raw.reshape(N, 2, 2, 8, H4, W4 + 2)[:, :, :, :, :, :W4]
          .transpose(0, 3, 4, 1, 5, 2).reshape(N, 8, H2, W2))               # de-phase (layout only)

    # decoder stage 2 + final 1x1 (dc3, no ReLU) fused epilogue (block-diagonal per phase).
    d1_flat = _flatten_rows(jnp.pad(d1, ((0, 0), (0, 0), (1, 1), (1, 1))))  # (N,8,(H2+3)*(W2+2))
    tapsD, wD = _up2_x_taps_w(p["dc2_w"], src=0)
    projD = (jnp.kron(jnp.eye(4, dtype=p["dc3_w"].dtype), p["dc3_w"].reshape(3, 8)),
             jnp.tile(p["dc3_b"], 4))
    out_raw = _fused_conv_mm([d1_flat], W2 + 2, H2, tapsD, wD, jnp.tile(p["dc2_b"], 4),
                             proj=projD, proj_relu=False, out_dtype=jnp.float32)
    out = (out_raw.reshape(N, 2, 2, 3, H2, W2 + 2)[:, :, :, :, :, :W2]
           .transpose(0, 3, 4, 1, 5, 2).reshape(N, 3, H, W))                # (N, 3, H, W) f32
    return out


# ----------------------------------------------------------------------------
# Pure-XLA reference with the same bf16 rounding points as the Pallas pipeline.
# ----------------------------------------------------------------------------
def reference_forward(nt: NestedTensor, p):
    f32, bf16 = jnp.float32, jnp.bfloat16

    def conv(x, w, b, stride, pad, relu):
        y = jax.lax.conv_general_dilated(
            x.astype(bf16).astype(f32), w.astype(bf16).astype(f32),
            window_strides=(stride, stride), padding=[(pad, pad), (pad, pad)],
            dimension_numbers=("NCHW", "OIHW", "NCHW"),
            precision=jax.lax.Precision.HIGHEST)
        y = y + b.reshape(1, -1, 1, 1)
        return jnp.maximum(y, 0.0) if relu else y

    def up2(x):
        return jnp.repeat(jnp.repeat(x, 2, axis=2), 2, axis=3)

    x = jnp.concatenate([nt.tensors, nt.mask], axis=1)
    f1 = conv(x, p["bb1_w"], p["bb1_b"], 2, 1, True)
    f2 = conv(f1, p["bb2_w"], p["bb2_b"], 2, 1, True)
    xb = conv(f2, p["bn_w"], p["bn_b"], 1, 0, True)
    d1 = conv(jnp.concatenate([up2(xb), f1], axis=1), p["dc1_w"], p["dc1_b"], 1, 1, True)
    d2 = conv(up2(d1), p["dc2_w"], p["dc2_b"], 1, 1, True)
    return conv(d2, p["dc3_w"], p["dc3_b"], 1, 0, False)


if __name__ == "__main__":
    key = jax.random.PRNGKey(0)
    k_x, k_m, k_p = jax.random.split(key, 3)

    N, C, H, W = 2, 3, 16, 16
    tensors = jax.random.normal(k_x, (N, C, H, W), jnp.float32)
    mask = (jax.random.uniform(k_m, (N, 1, H, W)) < 0.1).astype(jnp.float32)  # padding-mask channel
    params = init_params(k_p)

    fwd = jax.jit(lambda t, m: generator_baseline_forward(NestedTensor(t, m), params))
    out = fwd(tensors, mask)
    jax.block_until_ready(out)

    assert out.shape == (N, 3, H, W), out.shape
    assert bool(jnp.all(jnp.isfinite(out)))

    ref = jax.jit(lambda t, m: reference_forward(NestedTensor(t, m), params))(tensors, mask)
    err = float(jnp.max(jnp.abs(out - ref)))
    assert err < 6e-2, f"max abs err vs reference = {err}"

    print("KERNEL_OK")
</pallas_src>

<mosaic_0001>
module attributes {stable_mosaic.version = 11 : i64} {
  func.func @_conv_mm_kernel(%arg0: i32, %arg1: i32, %arg2: memref<1x16x90xbf16, #tpu.memory_space<vmem>>, %arg3: memref<8x36xbf16, #tpu.memory_space<vmem>>, %arg4: memref<8x1xf32, #tpu.memory_space<vmem>>, %arg5: memref<1x8x72xbf16, #tpu.memory_space<vmem>>, %arg6: memref<36x72xbf16, #tpu.memory_space<vmem>>) attributes {dimension_semantics = [#tpu.dimension_semantics<parallel>, #tpu.dimension_semantics<parallel>], iteration_bounds = array<i64: 2, 1>, scalar_prefetch = 0 : i64, scratch_operands = 1 : i64, tpu.core_type = #tpu.core_type<tc>, window_params = [{transform_indices = @transform_0, window_bounds = array<i64: 1, 16, 90>}, {pipeline_mode = #tpu.pipeline_mode<synchronous>, transform_indices = @transform_1, window_bounds = array<i64: 8, 36>}, {pipeline_mode = #tpu.pipeline_mode<synchronous>, transform_indices = @transform_2, window_bounds = array<i64: 8, 1>}, {transform_indices = @transform_3, window_bounds = array<i64: 1, 8, 72>}]} {
    %c0 = arith.constant 0 : index
    %c0_0 = arith.constant 0 : index
    %c0_1 = arith.constant 0 : index
    %0 = vector.load %arg2[%c0, %c0_0, %c0_1] : memref<1x16x90xbf16, #tpu.memory_space<vmem>>, vector<1x4x72xbf16>
    %1 = vector.shape_cast %0 : vector<1x4x72xbf16> to vector<4x72xbf16>
    %c0_2 = arith.constant 0 : index
    %c0_3 = arith.constant 0 : index
    %2 = vector.load %arg6[%c0_2, %c0_3] : memref<36x72xbf16, #tpu.memory_space<vmem>>, vector<4x72xbf16>
    tpu.vector_store %arg6[%c0_2, %c0_3], %1 {strides = array<i32>} : memref<36x72xbf16, #tpu.memory_space<vmem>>, vector<4x72xbf16>,
    %c0_4 = arith.constant 0 : index
    %c4 = arith.constant 4 : index
    %c0_5 = arith.constant 0 : index
    %3 = vector.load %arg2[%c0_4, %c4, %c0_5] : memref<1x16x90xbf16, #tpu.memory_space<vmem>>, vector<1x4x72xbf16>
    %4 = vector.shape_cast %3 : vector<1x4x72xbf16> to vector<4x72xbf16>
    %c4_6 = arith.constant 4 : index
    %c0_7 = arith.constant 0 : index
    %5 = vector.load %arg6[%c4_6, %c0_7] : memref<36x72xbf16, #tpu.memory_space<vmem>>, vector<4x72xbf16>
    tpu.vector_store %arg6[%c4_6, %c0_7], %4 {strides = array<i32>} : memref<36x72xbf16, #tpu.memory_space<vmem>>, vector<4x72xbf16>,
    %c0_8 = arith.constant 0 : index
    %c0_9 = arith.constant 0 : index
    %c1 = arith.constant 1 : index
    %6 = vector.load %arg2[%c0_8, %c0_9, %c1] : memref<1x16x90xbf16, #tpu.memory_space<vmem>>, vector<1x4x72xbf16>
    %7 = vector.shape_cast %6 : vector<1x4x72xbf16> to vector<4x72xbf16>
    %c8 = arith.constant 8 : index
    %c0_10 = arith.constant 0 : index
    %8 = vector.load %arg6[%c8, %c0_10] : memref<36x72xbf16, #tpu.memory_space<vmem>>, vector<4x72xbf16>
    tpu.vector_store %arg6[%c8, %c0_10], %7 {strides = array<i32>} : memref<36x72xbf16, #tpu.memory_space<vmem>>, vector<4x72xbf16>,
    %c0_11 = arith.constant 0 : index
    %c8_12 = arith.constant 8 : index
    %c0_13 = arith.constant 0 : index
    %9 = vector.load %arg2[%c0_11, %c8_12, %c0_13] : memref<1x16x90xbf16, #tpu.memory_space<vmem>>, vector<1x4x72xbf16>
    %10 = vector.shape_cast %9 : vector<1x4x72xbf16> to vector<4x72xbf16>
    %c12 = arith.constant 12 : index
    %c0_14 = arith.constant 0 : index
    %11 = vector.load %arg6[%c12, %c0_14] : memref<36x72xbf16, #tpu.memory_space<vmem>>, vector<4x72xbf16>
    tpu.vector_store %arg6[%c12, %c0_14], %10 {strides = array<i32>} : memref<36x72xbf16, #tpu.memory_space<vmem>>, vector<4x72xbf16>,
    %c0_15 = arith.constant 0 : index
    %c12_16 = arith.constant 12 : index
    %c0_17 = arith.constant 0 : index
    %12 = vector.load %arg2[%c0_15, %c12_16, %c0_17] : memref<1x16x90xbf16, #tpu.memory_space<vmem>>, vector<1x4x72xbf16>
    %13 = vector.shape_cast %12 : vector<1x4x72xbf16> to vector<4x72xbf16>
    %c16 = arith.constant 16 : index
    %c0_18 = arith.constant 0 : index
    %14 = vector.load %arg6[%c16, %c0_18] : memref<36x72xbf16, #tpu.memory_space<vmem>>, vector<4x72xbf16>
    tpu.vector_store %arg6[%c16, %c0_18], %13 {strides = array<i32>} : memref<36x72xbf16, #tpu.memory_space<vmem>>, vector<4x72xbf16>,
    %c0_19 = arith.constant 0 : index
    %c8_20 = arith.constant 8 : index
    %c1_21 = arith.constant 1 : index
    %15 = vector.load %arg2[%c0_19, %c8_20, %c1_21] : memref<1x16x90xbf16, #tpu.memory_space<vmem>>, vector<1x4x72xbf16>
    %16 = vector.shape_cast %15 : vector<1x4x72xbf16> to vector<4x72xbf16>
    %c20 = arith.constant 20 : index
    %c0_22 = arith.constant 0 : index
    %17 = vector.load %arg6[%c20, %c0_22] : memref<36x72xbf16, #tpu.memory_space<vmem>>, vector<4x72xbf16>
    tpu.vector_store %arg6[%c20, %c0_22], %16 {strides = array<i32>} : memref<36x72xbf16, #tpu.memory_space<vmem>>, vector<4x72xbf16>,
    %c0_23 = arith.constant 0 : index
    %c0_24 = arith.constant 0 : index
    %c9 = arith.constant 9 : index
    %18 = vector.load %arg2[%c0_23, %c0_24, %c9] : memref<1x16x90xbf16, #tpu.memory_space<vmem>>, vector<1x4x72xbf16>
    %19 = vector.shape_cast %18 : vector<1x4x72xbf16> to vector<4x72xbf16>
    %c24 = arith.constant 24 : index
    %c0_25 = arith.constant 0 : index
    %20 = vector.load %arg6[%c24, %c0_25] : memref<36x72xbf16, #tpu.memory_space<vmem>>, vector<4x72xbf16>
    tpu.vector_store %arg6[%c24, %c0_25], %19 {strides = array<i32>} : memref<36x72xbf16, #tpu.memory_space<vmem>>, vector<4x72xbf16>,
    %c0_26 = arith.constant 0 : index
    %c4_27 = arith.constant 4 : index
    %c9_28 = arith.constant 9 : index
    %21 = vector.load %arg2[%c0_26, %c4_27, %c9_28] : memref<1x16x90xbf16, #tpu.memory_space<vmem>>, vector<1x4x72xbf16>
    %22 = vector.shape_cast %21 : vector<1x4x72xbf16> to vector<4x72xbf16>
    %c28 = arith.constant 28 : index
    %c0_29 = arith.constant 0 : index
    %23 = vector.load %arg6[%c28, %c0_29] : memref<36x72xbf16, #tpu.memory_space<vmem>>, vector<4x72xbf16>
    tpu.vector_store %arg6[%c28, %c0_29], %22 {strides = array<i32>} : memref<36x72xbf16, #tpu.memory_space<vmem>>, vector<4x72xbf16>,
    %c0_30 = arith.constant 0 : index
    %c0_31 = arith.constant 0 : index
    %c10 = arith.constant 10 : index
    %24 = vector.load %arg2[%c0_30, %c0_31, %c10] : memref<1x16x90xbf16, #tpu.memory_space<vmem>>, vector<1x4x72xbf16>
    %25 = vector.shape_cast %24 : vector<1x4x72xbf16> to vector<4x72xbf16>
    %c32 = arith.constant 32 : index
    %c0_32 = arith.constant 0 : index
    %26 = vector.load %arg6[%c32, %c0_32] : memref<36x72xbf16, #tpu.memory_space<vmem>>, vector<4x72xbf16>
    tpu.vector_store %arg6[%c32, %c0_32], %25 {strides = array<i32>} : memref<36x72xbf16, #tpu.memory_space<vmem>>, vector<4x72xbf16>,
    %c0_33 = arith.constant 0 : index
    %c0_34 = arith.constant 0 : index
    %27 = vector.load %arg3[%c0_33, %c0_34] : memref<8x36xbf16, #tpu.memory_space<vmem>>, vector<8x36xbf16>
    %c0_35 = arith.constant 0 : index
    %c0_36 = arith.constant 0 : index
    %28 = vector.load %arg6[%c0_35, %c0_36] : memref<36x72xbf16, #tpu.memory_space<vmem>>, vector<36x72xbf16>
    %cst = arith.constant dense<0.000000e+00> : vector<8x72xf32>
    %29 = tpu.matmul %27, %28, %cst {dimension_numbers = #tpu.dot_dimension_numbers<[1], [0], [0], [1], [0, 0, 1, 1], [], []>} : vector<8x36xbf16>, vector<36x72xbf16>, vector<8x72xf32> -> vector<8x72xf32>
    %c0_37 = arith.constant 0 : index
    %c0_38 = arith.constant 0 : index
    %30 = vector.load %arg4[%c0_37, %c0_38] : memref<8x1xf32, #tpu.memory_space<vmem>>, vector<8x1xf32>
    %31 = vector.broadcast %30 : vector<8x1xf32> to vector<8x72xf32>
    %32 = arith.addf %29, %31 : vector<8x72xf32>
    %cst_39 = arith.constant 0.000000e+00 : f32
    %33 = vector.broadcast %cst_39 : f32 to vector<8x72xf32>
    %34 = arith.maximumf %32, %33 : vector<8x72xf32>
    %35 = arith.truncf %34 : vector<8x72xf32> to vector<8x72xbf16>
    %c0_40 = arith.constant 0 : index
    %c0_41 = arith.constant 0 : index
    %c0_42 = arith.constant 0 : index
    %36 = vector.load %arg5[%c0_40, %c0_41, %c0_42] : memref<1x8x72xbf16, #tpu.memory_space<vmem>>, vector<1x8x72xbf16>
    %37 = vector.shape_cast %36 : vector<1x8x72xbf16> to vector<8x72xbf16>
    %38 = vector.shape_cast %35 : vector<8x72xbf16> to vector<1x8x72xbf16>
    tpu.vector_store %arg5[%c0_40, %c0_41, %c0_42], %38 {strides = array<i32>} : memref<1x8x72xbf16, #tpu.memory_space<vmem>>, vector<1x8x72xbf16>,
    return
  }
  func.func @transform_0(%arg0: i32, %arg1: i32) -> (i32, i32, i32) {
    %c0_i32 = arith.constant 0 : i32
    %c0_i32_0 = arith.constant 0 : i32
    %c0_i32_1 = arith.constant 0 : i32
    return %arg0, %c0_i32, %c0_i32_0 : i32, i32, i32
  }
  func.func @transform_1(%arg0: i32, %arg1: i32) -> (i32, i32) {
    %c0_i32 = arith.constant 0 : i32
    %c0_i32_0 = arith.constant 0 : i32
    %c0_i32_1 = arith.constant 0 : i32
    return %c0_i32, %c0_i32_0 : i32, i32
  }
  func.func @transform_2(%arg0: i32, %arg1: i32) -> (i32, i32) {
    %c0_i32 = arith.constant 0 : i32
    %c0_i32_0 = arith.constant 0 : i32
    %c0_i32_1 = arith.constant 0 : i32
    return %c0_i32, %c0_i32_0 : i32, i32
  }
  func.func @transform_3(%arg0: i32, %arg1: i32) -> (i32, i32, i32) {
    %c0_i32 = arith.constant 0 : i32
    %c0_i32_0 = arith.constant 0 : i32
    return %arg0, %c0_i32, %arg1 : i32, i32, i32
  }
}

module attributes {stable_mosaic.version = 11 : i64} {
  func.func @_conv_mm_kernel(%arg0: i32, %arg1: i32, %arg2: memref<1x32x36xbf16, #tpu.memory_space<vmem>>, %arg3: memref<16x72xbf16, #tpu.memory_space<vmem>>, %arg4: memref<16x1xf32, #tpu.memory_space<vmem>>, %arg5: memref<16x16xbf16, #tpu.memory_space<vmem>>, %arg6: memref<16x1xf32, #tpu.memory_space<vmem>>, %arg7: memref<1x16x24xbf16, #tpu.memory_space<vmem>>, %arg8: memref<72x24xbf16, #tpu.memory_space<vmem>>) attributes {dimension_semantics = [#tpu.dimension_semantics<parallel>, #tpu.dimension_semantics<parallel>], iteration_bounds = array<i64: 2, 1>, scalar_prefetch = 0 : i64, scratch_operands = 1 : i64, tpu.core_type = #tpu.core_type<tc>, window_params = [{transform_indices = @transform_0, window_bounds = array<i64: 1, 32, 36>}, {pipeline_mode = #tpu.pipeline_mode<synchronous>, transform_indices = @transform_1, window_bounds = array<i64: 16, 72>}, {pipeline_mode = #tpu.pipeline_mode<synchronous>, transform_indices = @transform_2, window_bounds = array<i64: 16, 1>}, {pipeline_mode = #tpu.pipeline_mode<synchronous>, transform_indices = @transform_3, window_bounds = array<i64: 16, 16>}, {pipeline_mode = #tpu.pipeline_mode<synchronous>, transform_indices = @transform_4, window_bounds = array<i64: 16, 1>}, {transform_indices = @transform_5, window_bounds = array<i64: 1, 16, 24>}]} {
    %c0 = arith.constant 0 : index
    %c0_0 = arith.constant 0 : index
    %c0_1 = arith.constant 0 : index
    %0 = vector.load %arg2[%c0, %c0_0, %c0_1] : memref<1x32x36xbf16, #tpu.memory_space<vmem>>, vector<1x8x24xbf16>
    %1 = vector.shape_cast %0 : vector<1x8x24xbf16> to vector<8x24xbf16>
    %c0_2 = arith.constant 0 : index
    %c0_3 = arith.constant 0 : index
    %2 = vector.load %arg8[%c0_2, %c0_3] : memref<72x24xbf16, #tpu.memory_space<vmem>>, vector<8x24xbf16>
    tpu.vector_store %arg8[%c0_2, %c0_3], %1 {strides = array<i32>} : memref<72x24xbf16, #tpu.memory_space<vmem>>, vector<8x24xbf16>,
    %c0_4 = arith.constant 0 : index
    %c8 = arith.constant 8 : index
    %c0_5 = arith.constant 0 : index
    %3 = vector.load %arg2[%c0_4, %c8, %c0_5] : memref<1x32x36xbf16, #tpu.memory_space<vmem>>, vector<1x8x24xbf16>
    %4 = vector.shape_cast %3 : vector<1x8x24xbf16> to vector<8x24xbf16>
    %c8_6 = arith.constant 8 : index
    %c0_7 = arith.constant 0 : index
    %5 = vector.load %arg8[%c8_6, %c0_7] : memref<72x24xbf16, #tpu.memory_space<vmem>>, vector<8x24xbf16>
    tpu.vector_store %arg8[%c8_6, %c0_7], %4 {strides = array<i32>} : memref<72x24xbf16, #tpu.memory_space<vmem>>, vector<8x24xbf16>,
    %c0_8 = arith.constant 0 : index
    %c0_9 = arith.constant 0 : index
    %c1 = arith.constant 1 : index
    %6 = vector.load %arg2[%c0_8, %c0_9, %c1] : memref<1x32x36xbf16, #tpu.memory_space<vmem>>, vector<1x8x24xbf16>
    %7 = vector.shape_cast %6 : vector<1x8x24xbf16> to vector<8x24xbf16>
    %c16 = arith.constant 16 : index
    %c0_10 = arith.constant 0 : index
    %8 = vector.load %arg8[%c16, %c0_10] : memref<72x24xbf16, #tpu.memory_space<vmem>>, vector<8x24xbf16>
    tpu.vector_store %arg8[%c16, %c0_10], %7 {strides = array<i32>} : memref<72x24xbf16, #tpu.memory_space<vmem>>, vector<8x24xbf16>,
    %c0_11 = arith.constant 0 : index
    %c16_12 = arith.constant 16 : index
    %c0_13 = arith.constant 0 : index
    %9 = vector.load %arg2[%c0_11, %c16_12, %c0_13] : memref<1x32x36xbf16, #tpu.memory_space<vmem>>, vector<1x8x24xbf16>
    %10 = vector.shape_cast %9 : vector<1x8x24xbf16> to vector<8x24xbf16>
    %c24 = arith.constant 24 : index
    %c0_14 = arith.constant 0 : index
    %11 = vector.load %arg8[%c24, %c0_14] : memref<72x24xbf16, #tpu.memory_space<vmem>>, vector<8x24xbf16>
    tpu.vector_store %arg8[%c24, %c0_14], %10 {strides = array<i32>} : memref<72x24xbf16, #tpu.memory_space<vmem>>, vector<8x24xbf16>,
    %c0_15 = arith.constant 0 : index
    %c24_16 = arith.constant 24 : index
    %c0_17 = arith.constant 0 : index
    %12 = vector.load %arg2[%c0_15, %c24_16, %c0_17] : memref<1x32x36xbf16, #tpu.memory_space<vmem>>, vector<1x8x24xbf16>
    %13 = vector.shape_cast %12 : vector<1x8x24xbf16> to vector<8x24xbf16>
    %c32 = arith.constant 32 : index
    %c0_18 = arith.constant 0 : index
    %14 = vector.load %arg8[%c32, %c0_18] : memref<72x24xbf16, #tpu.memory_space<vmem>>, vector<8x24xbf16>
    tpu.vector_store %arg8[%c32, %c0_18], %13 {strides = array<i32>} : memref<72x24xbf16, #tpu.memory_space<vmem>>, vector<8x24xbf16>,
    %c0_19 = arith.constant 0 : index
    %c16_20 = arith.constant 16 : index
    %c1_21 = arith.constant 1 : index
    %15 = vector.load %arg2[%c0_19, %c16_20, %c1_21] : memref<1x32x36xbf16, #tpu.memory_space<vmem>>, vector<1x8x24xbf16>
    %16 = vector.shape_cast %15 : vector<1x8x24xbf16> to vector<8x24xbf16>
    %c40 = arith.constant 40 : index
    %c0_22 = arith.constant 0 : index
    %17 = vector.load %arg8[%c40, %c0_22] : memref<72x24xbf16, #tpu.memory_space<vmem>>, vector<8x24xbf16>
    tpu.vector_store %arg8[%c40, %c0_22], %16 {strides = array<i32>} : memref<72x24xbf16, #tpu.memory_space<vmem>>, vector<8x24xbf16>,
    %c0_23 = arith.constant 0 : index
    %c0_24 = arith.constant 0 : index
    %c6 = arith.constant 6 : index
    %18 = vector.load %arg2[%c0_23, %c0_24, %c6] : memref<1x32x36xbf16, #tpu.memory_space<vmem>>, vector<1x8x24xbf16>
    %19 = vector.shape_cast %18 : vector<1x8x24xbf16> to vector<8x24xbf16>
    %c48 = arith.constant 48 : index
    %c0_25 = arith.constant 0 : index
    %20 = vector.load %arg8[%c48, %c0_25] : memref<72x24xbf16, #tpu.memory_space<vmem>>, vector<8x24xbf16>
    tpu.vector_store %arg8[%c48, %c0_25], %19 {strides = array<i32>} : memref<72x24xbf16, #tpu.memory_space<vmem>>, vector<8x24xbf16>,
    %c0_26 = arith.constant 0 : index
    %c8_27 = arith.constant 8 : index
    %c6_28 = arith.constant 6 : index
    %21 = vector.load %arg2[%c0_26, %c8_27, %c6_28] : memref<1x32x36xbf16, #tpu.memory_space<vmem>>, vector<1x8x24xbf16>
    %22 = vector.shape_cast %21 : vector<1x8x24xbf16> to vector<8x24xbf16>
    %c56 = arith.constant 56 : index
    %c0_29 = arith.constant 0 : index
    %23 = vector.load %arg8[%c56, %c0_29] : memref<72x24xbf16, #tpu.memory_space<vmem>>, vector<8x24xbf16>
    tpu.vector_store %arg8[%c56, %c0_29], %22 {strides = array<i32>} : memref<72x24xbf16, #tpu.memory_space<vmem>>, vector<8x24xbf16>,
    %c0_30 = arith.constant 0 : index
    %c0_31 = arith.constant 0 : index
    %c7 = arith.constant 7 : index
    %24 = vector.load %arg2[%c0_30, %c0_31, %c7] : memref<1x32x36xbf16, #tpu.memory_space<vmem>>, vector<1x8x24xbf16>
    %25 = vector.shape_cast %24 : vector<1x8x24xbf16> to vector<8x24xbf16>
    %c64 = arith.constant 64 : index
    %c0_32 = arith.constant 0 : index
    %26 = vector.load %arg8[%c64, %c0_32] : memref<72x24xbf16, #tpu.memory_space<vmem>>, vector<8x24xbf16>
    tpu.vector_store %arg8[%c64, %c0_32], %25 {strides = array<i32>} : memref<72x24xbf16, #tpu.memory_space<vmem>>, vector<8x24xbf16>,
    %c0_33 = arith.constant 0 : index
    %c0_34 = arith.constant 0 : index
    %27 = vector.load %arg3[%c0_33, %c0_34] : memref<16x72xbf16, #tpu.memory_space<vmem>>, vector<16x72xbf16>
    %c0_35 = arith.constant 0 : index
    %c0_36 = arith.constant 0 : index
    %28 = vector.load %arg8[%c0_35, %c0_36] : memref<72x24xbf16, #tpu.memory_space<vmem>>, vector<72x24xbf16>
    %cst = arith.constant dense<0.000000e+00> : vector<16x24xf32>
    %29 = tpu.matmul %27, %28, %cst {dimension_numbers = #tpu.dot_dimension_numbers<[1], [0], [0], [1], [0, 0, 1, 1], [], []>} : vector<16x72xbf16>, vector<72x24xbf16>, vector<16x24xf32> -> vector<16x24xf32>
    %c0_37 = arith.constant 0 : index
    %c0_38 = arith.constant 0 : index
    %30 = vector.load %arg4[%c0_37, %c0_38] : memref<16x1xf32, #tpu.memory_space<vmem>>, vector<16x1xf32>
    %31 = vector.broadcast %30 : vector<16x1xf32> to vector<16x24xf32>
    %32 = arith.addf %29, %31 : vector<16x24xf32>
    %cst_39 = arith.constant 0.000000e+00 : f32
    %33 = vector.broadcast %cst_39 : f32 to vector<16x24xf32>
    %34 = arith.maximumf %32, %33 : vector<16x24xf32>
    %c0_40 = arith.constant 0 : index
    %c0_41 = arith.constant 0 : index
    %35 = vector.load %arg5[%c0_40, %c0_41] : memref<16x16xbf16, #tpu.memory_space<vmem>>, vector<16x16xbf16>
    %36 = arith.truncf %34 : vector<16x24xf32> to vector<16x24xbf16>
    %cst_42 = arith.constant dense<0.000000e+00> : vector<16x24xf32>
    %37 = tpu.matmul %35, %36, %cst_42 {dimension_numbers = #tpu.dot_dimension_numbers<[1], [0], [0], [1], [0, 0, 1, 1], [], []>} : vector<16x16xbf16>, vector<16x24xbf16>, vector<16x24xf32> -> vector<16x24xf32>
    %c0_43 = arith.constant 0 : index
    %c0_44 = arith.constant 0 : index
    %38 = vector.load %arg6[%c0_43, %c0_44] : memref<16x1xf32, #tpu.memory_space<vmem>>, vector<16x1xf32>
    %39 = vector.broadcast %38 : vector<16x1xf32> to vector<16x24xf32>
    %40 = arith.addf %37, %39 : vector<16x24xf32>
    %cst_45 = arith.constant 0.000000e+00 : f32
    %41 = vector.broadcast %cst_45 : f32 to vector<16x24xf32>
    %42 = arith.maximumf %40, %41 : vector<16x24xf32>
    %43 = arith.truncf %42 : vector<16x24xf32> to vector<16x24xbf16>
    %c0_46 = arith.constant 0 : index
    %c0_47 = arith.constant 0 : index
    %c0_48 = arith.constant 0 : index
    %44 = vector.load %arg7[%c0_46, %c0_47, %c0_48] : memref<1x16x24xbf16, #tpu.memory_space<vmem>>, vector<1x16x24xbf16>
    %45 = vector.shape_cast %44 : vector<1x16x24xbf16> to vector<16x24xbf16>
    %46 = vector.shape_cast %43 : vector<16x24xbf16> to vector<1x16x24xbf16>
    tpu.vector_store %arg7[%c0_46, %c0_47, %c0_48], %46 {strides = array<i32>} : memref<1x16x24xbf16, #tpu.memory_space<vmem>>, vector<1x16x24xbf16>,
    return
  }
  func.func @transform_0(%arg0: i32, %arg1: i32) -> (i32, i32, i32) {
    %c0_i32 = arith.constant 0 : i32
    %c0_i32_0 = arith.constant 0 : i32
    %c0_i32_1 = arith.constant 0 : i32
    return %arg0, %c0_i32, %c0_i32_0 : i32, i32, i32
  }
  func.func @transform_1(%arg0: i32, %arg1: i32) -> (i32, i32) {
    %c0_i32 = arith.constant 0 : i32
    %c0_i32_0 = arith.constant 0 : i32
    %c0_i32_1 = arith.constant 0 : i32
    return %c0_i32, %c0_i32_0 : i32, i32
  }
  func.func @transform_2(%arg0: i32, %arg1: i32) -> (i32, i32) {
    %c0_i32 = arith.constant 0 : i32
    %c0_i32_0 = arith.constant 0 : i32
    %c0_i32_1 = arith.constant 0 : i32
    return %c0_i32, %c0_i32_0 : i32, i32
  }
  func.func @transform_3(%arg0: i32, %arg1: i32) -> (i32, i32) {
    %c0_i32 = arith.constant 0 : i32
    %c0_i32_0 = arith.constant 0 : i32
    %c0_i32_1 = arith.constant 0 : i32
    return %c0_i32, %c0_i32_0 : i32, i32
  }
  func.func @transform_4(%arg0: i32, %arg1: i32) -> (i32, i32) {
    %c0_i32 = arith.constant 0 : i32
    %c0_i32_0 = arith.constant 0 : i32
    %c0_i32_1 = arith.constant 0 : i32
    return %c0_i32, %c0_i32_0 : i32, i32
  }
  func.func @transform_5(%arg0: i32, %arg1: i32) -> (i32, i32, i32) {
    %c0_i32 = arith.constant 0 : i32
    %c0_i32_0 = arith.constant 0 : i32
    return %arg0, %c0_i32, %arg1 : i32, i32, i32
  }
}

module attributes {stable_mosaic.version = 11 : i64} {
  func.func @_conv_mm_kernel(%arg0: i32, %arg1: i32, %arg2: memref<1x16x42xbf16, #tpu.memory_space<vmem>>, %arg3: memref<1x32x36xbf16, #tpu.memory_space<vmem>>, %arg4: memref<32x272xbf16, #tpu.memory_space<vmem>>, %arg5: memref<32x1xf32, #tpu.memory_space<vmem>>, %arg6: memref<1x32x24xbf16, #tpu.memory_space<vmem>>, %arg7: memref<272x24xbf16, #tpu.memory_space<vmem>>) attributes {dimension_semantics = [#tpu.dimension_semantics<parallel>, #tpu.dimension_semantics<parallel>], iteration_bounds = array<i64: 2, 1>, scalar_prefetch = 0 : i64, scratch_operands = 1 : i64, tpu.core_type = #tpu.core_type<tc>, window_params = [{transform_indices = @transform_0, window_bounds = array<i64: 1, 16, 42>}, {transform_indices = @transform_1, window_bounds = array<i64: 1, 32, 36>}, {pipeline_mode = #tpu.pipeline_mode<synchronous>, transform_indices = @transform_2, window_bounds = array<i64: 32, 272>}, {pipeline_mode = #tpu.pipeline_mode<synchronous>, transform_indices = @transform_3, window_bounds = array<i64: 32, 1>}, {transform_indices = @transform_4, window_bounds = array<i64: 1, 32, 24>}]} {
    %c0 = arith.constant 0 : index
    %c0_0 = arith.constant 0 : index
    %c0_1 = arith.constant 0 : index
    %0 = vector.load %arg2[%c0, %c0_0, %c0_1] : memref<1x16x42xbf16, #tpu.memory_space<vmem>>, vector<1x16x24xbf16>
    %1 = vector.shape_cast %0 : vector<1x16x24xbf16> to vector<16x24xbf16>
    %c0_2 = arith.constant 0 : index
    %c0_3 = arith.constant 0 : index
    %2 = vector.load %arg7[%c0_2, %c0_3] : memref<272x24xbf16, #tpu.memory_space<vmem>>, vector<16x24xbf16>
    tpu.vector_store %arg7[%c0_2, %c0_3], %1 {strides = array<i32>} : memref<272x24xbf16, #tpu.memory_space<vmem>>, vector<16x24xbf16>,
    %c0_4 = arith.constant 0 : index
    %c0_5 = arith.constant 0 : index
    %c1 = arith.constant 1 : index
    %3 = vector.load %arg2[%c0_4, %c0_5, %c1] : memref<1x16x42xbf16, #tpu.memory_space<vmem>>, vector<1x16x24xbf16>
    %4 = vector.shape_cast %3 : vector<1x16x24xbf16> to vector<16x24xbf16>
    %c16 = arith.constant 16 : index
    %c0_6 = arith.constant 0 : index
    %5 = vector.load %arg7[%c16, %c0_6] : memref<272x24xbf16, #tpu.memory_space<vmem>>, vector<16x24xbf16>
    tpu.vector_store %arg7[%c16, %c0_6], %4 {strides = array<i32>} : memref<272x24xbf16, #tpu.memory_space<vmem>>, vector<16x24xbf16>,
    %c0_7 = arith.constant 0 : index
    %c0_8 = arith.constant 0 : index
    %c2 = arith.constant 2 : index
    %6 = vector.load %arg2[%c0_7, %c0_8, %c2] : memref<1x16x42xbf16, #tpu.memory_space<vmem>>, vector<1x16x24xbf16>
    %7 = vector.shape_cast %6 : vector<1x16x24xbf16> to vector<16x24xbf16>
    %c32 = arith.constant 32 : index
    %c0_9 = arith.constant 0 : index
    %8 = vector.load %arg7[%c32, %c0_9] : memref<272x24xbf16, #tpu.memory_space<vmem>>, vector<16x24xbf16>
    tpu.vector_store %arg7[%c32, %c0_9], %7 {strides = array<i32>} : memref<272x24xbf16, #tpu.memory_space<vmem>>, vector<16x24xbf16>,
    %c0_10 = arith.constant 0 : index
    %c0_11 = arith.constant 0 : index
    %c6 = arith.constant 6 : index
    %9 = vector.load %arg2[%c0_10, %c0_11, %c6] : memref<1x16x42xbf16, #tpu.memory_space<vmem>>, vector<1x16x24xbf16>
    %10 = vector.shape_cast %9 : vector<1x16x24xbf16> to vector<16x24xbf16>
    %c48 = arith.constant 48 : index
    %c0_12 = arith.constant 0 : index
    %11 = vector.load %arg7[%c48, %c0_12] : memref<272x24xbf16, #tpu.memory_space<vmem>>, vector<16x24xbf16>
    tpu.vector_store %arg7[%c48, %c0_12], %10 {strides = array<i32>} : memref<272x24xbf16, #tpu.memory_space<vmem>>, vector<16x24xbf16>,
    %c0_13 = arith.constant 0 : index
    %c0_14 = arith.constant 0 : index
    %c7 = arith.constant 7 : index
    %12 = vector.load %arg2[%c0_13, %c0_14, %c7] : memref<1x16x42xbf16, #tpu.memory_space<vmem>>, vector<1x16x24xbf16>
    %13 = vector.shape_cast %12 : vector<1x16x24xbf16> to vector<16x24xbf16>
    %c64 = arith.constant 64 : index
    %c0_15 = arith.constant 0 : index
    %14 = vector.load %arg7[%c64, %c0_15] : memref<272x24xbf16, #tpu.memory_space<vmem>>, vector<16x24xbf16>
    tpu.vector_store %arg7[%c64, %c0_15], %13 {strides = array<i32>} : memref<272x24xbf16, #tpu.memory_space<vmem>>, vector<16x24xbf16>,
    %c0_16 = arith.constant 0 : index
    %c0_17 = arith.constant 0 : index
    %c8 = arith.constant 8 : index
    %15 = vector.load %arg2[%c0_16, %c0_17, %c8] : memref<1x16x42xbf16, #tpu.memory_space<vmem>>, vector<1x16x24xbf16>
    %16 = vector.shape_cast %15 : vector<1x16x24xbf16> to vector<16x24xbf16>
    %c80 = arith.constant 80 : index
    %c0_18 = arith.constant 0 : index
    %17 = vector.load %arg7[%c80, %c0_18] : memref<272x24xbf16, #tpu.memory_space<vmem>>, vector<16x24xbf16>
    tpu.vector_store %arg7[%c80, %c0_18], %16 {strides = array<i32>} : memref<272x24xbf16, #tpu.memory_space<vmem>>, vector<16x24xbf16>,
    %c0_19 = arith.constant 0 : index
    %c0_20 = arith.constant 0 : index
    %c12 = arith.constant 12 : index
    %18 = vector.load %arg2[%c0_19, %c0_20, %c12] : memref<1x16x42xbf16, #tpu.memory_space<vmem>>, vector<1x16x24xbf16>
    %19 = vector.shape_cast %18 : vector<1x16x24xbf16> to vector<16x24xbf16>
    %c96 = arith.constant 96 : index
    %c0_21 = arith.constant 0 : index
    %20 = vector.load %arg7[%c96, %c0_21] : memref<272x24xbf16, #tpu.memory_space<vmem>>, vector<16x24xbf16>
    tpu.vector_store %arg7[%c96, %c0_21], %19 {strides = array<i32>} : memref<272x24xbf16, #tpu.memory_space<vmem>>, vector<16x24xbf16>,
    %c0_22 = arith.constant 0 : index
    %c0_23 = arith.constant 0 : index
    %c13 = arith.constant 13 : index
    %21 = vector.load %arg2[%c0_22, %c0_23, %c13] : memref<1x16x42xbf16, #tpu.memory_space<vmem>>, vector<1x16x24xbf16>
    %22 = vector.shape_cast %21 : vector<1x16x24xbf16> to vector<16x24xbf16>
    %c112 = arith.constant 112 : index
    %c0_24 = arith.constant 0 : index
    %23 = vector.load %arg7[%c112, %c0_24] : memref<272x24xbf16, #tpu.memory_space<vmem>>, vector<16x24xbf16>
    tpu.vector_store %arg7[%c112, %c0_24], %22 {strides = array<i32>} : memref<272x24xbf16, #tpu.memory_space<vmem>>, vector<16x24xbf16>,
    %c0_25 = arith.constant 0 : index
    %c0_26 = arith.constant 0 : index
    %c14 = arith.constant 14 : index
    %24 = vector.load %arg2[%c0_25, %c0_26, %c14] : memref<1x16x42xbf16, #tpu.memory_space<vmem>>, vector<1x16x24xbf16>
    %25 = vector.shape_cast %24 : vector<1x16x24xbf16> to vector<16x24xbf16>
    %c128 = arith.constant 128 : index
    %c0_27 = arith.constant 0 : index
    %26 = vector.load %arg7[%c128, %c0_27] : memref<272x24xbf16, #tpu.memory_space<vmem>>, vector<16x24xbf16>
    tpu.vector_store %arg7[%c128, %c0_27], %25 {strides = array<i32>} : memref<272x24xbf16, #tpu.memory_space<vmem>>, vector<16x24xbf16>,
    %c0_28 = arith.constant 0 : index
    %c0_29 = arith.constant 0 : index
    %c0_30 = arith.constant 0 : index
    %27 = vector.load %arg3[%c0_28, %c0_29, %c0_30] : memref<1x32x36xbf16, #tpu.memory_space<vmem>>, vector<1x8x24xbf16>
    %28 = vector.shape_cast %27 : vector<1x8x24xbf16> to vector<8x24xbf16>
    %c144 = arith.constant 144 : index
    %c0_31 = arith.constant 0 : index
    %29 = vector.load %arg7[%c144, %c0_31] : memref<272x24xbf16, #tpu.memory_space<vmem>>, vector<8x24xbf16>
    tpu.vector_store %arg7[%c144, %c0_31], %28 {strides = array<i32>} : memref<272x24xbf16, #tpu.memory_space<vmem>>, vector<8x24xbf16>,
    %c0_32 = arith.constant 0 : index
    %c0_33 = arith.constant 0 : index
    %c1_34 = arith.constant 1 : index
    %30 = vector.load %arg3[%c0_32, %c0_33, %c1_34] : memref<1x32x36xbf16, #tpu.memory_space<vmem>>, vector<1x8x24xbf16>
    %31 = vector.shape_cast %30 : vector<1x8x24xbf16> to vector<8x24xbf16>
    %c152 = arith.constant 152 : index
    %c0_35 = arith.constant 0 : index
    %32 = vector.load %arg7[%c152, %c0_35] : memref<272x24xbf16, #tpu.memory_space<vmem>>, vector<8x24xbf16>
    tpu.vector_store %arg7[%c152, %c0_35], %31 {strides = array<i32>} : memref<272x24xbf16, #tpu.memory_space<vmem>>, vector<8x24xbf16>,
    %c0_36 = arith.constant 0 : index
    %c0_37 = arith.constant 0 : index
    %c6_38 = arith.constant 6 : index
    %33 = vector.load %arg3[%c0_36, %c0_37, %c6_38] : memref<1x32x36xbf16, #tpu.memory_space<vmem>>, vector<1x8x24xbf16>
    %34 = vector.shape_cast %33 : vector<1x8x24xbf16> to vector<8x24xbf16>
    %c160 = arith.constant 160 : index
    %c0_39 = arith.constant 0 : index
    %35 = vector.load %arg7[%c160, %c0_39] : memref<272x24xbf16, #tpu.memory_space<vmem>>, vector<8x24xbf16>
    tpu.vector_store %arg7[%c160, %c0_39], %34 {strides = array<i32>} : memref<272x24xbf16, #tpu.memory_space<vmem>>, vector<8x24xbf16>,
    %c0_40 = arith.constant 0 : index
    %c0_41 = arith.constant 0 : index
    %c7_42 = arith.constant 7 : index
    %36 = vector.load %arg3[%c0_40, %c0_41, %c7_42] : memref<1x32x36xbf16, #tpu.memory_space<vmem>>, vector<1x8x24xbf16>
    %37 = vector.shape_cast %36 : vector<1x8x24xbf16> to vector<8x24xbf16>
    %c168 = arith.constant 168 : index
    %c0_43 = arith.constant 0 : index
    %38 = vector.load %arg7[%c168, %c0_43] : memref<272x24xbf16, #tpu.memory_space<vmem>>, vector<8x24xbf16>
    tpu.vector_store %arg7[%c168, %c0_43], %37 {strides = array<i32>} : memref<272x24xbf16, #tpu.memory_space<vmem>>, vector<8x24xbf16>,
    %c0_44 = arith.constant 0 : index
    %c8_45 = arith.constant 8 : index
    %c0_46 = arith.constant 0 : index
    %39 = vector.load %arg3[%c0_44, %c8_45, %c0_46] : memref<1x32x36xbf16, #tpu.memory_space<vmem>>, vector<1x8x24xbf16>
    %40 = vector.shape_cast %39 : vector<1x8x24xbf16> to vector<8x24xbf16>
    %c176 = arith.constant 176 : index
    %c0_47 = arith.constant 0 : index
    %41 = vector.load %arg7[%c176, %c0_47] : memref<272x24xbf16, #tpu.memory_space<vmem>>, vector<8x24xbf16>
    tpu.vector_store %arg7[%c176, %c0_47], %40 {strides = array<i32>} : memref<272x24xbf16, #tpu.memory_space<vmem>>, vector<8x24xbf16>,
    %c0_48 = arith.constant 0 : index
    %c8_49 = arith.constant 8 : index
    %c1_50 = arith.constant 1 : index
    %42 = vector.load %arg3[%c0_48, %c8_49, %c1_50] : memref<1x32x36xbf16, #tpu.memory_space<vmem>>, vector<1x8x24xbf16>
    %43 = vector.shape_cast %42 : vector<1x8x24xbf16> to vector<8x24xbf16>
    %c184 = arith.constant 184 : index
    %c0_51 = arith.constant 0 : index
    %44 = vector.load %arg7[%c184, %c0_51] : memref<272x24xbf16, #tpu.memory_space<vmem>>, vector<8x24xbf16>
    tpu.vector_store %arg7[%c184, %c0_51], %43 {strides = array<i32>} : memref<272x24xbf16, #tpu.memory_space<vmem>>, vector<8x24xbf16>,
    %c0_52 = arith.constant 0 : index
    %c8_53 = arith.constant 8 : index
    %c6_54 = arith.constant 6 : index
    %45 = vector.load %arg3[%c0_52, %c8_53, %c6_54] : memref<1x32x36xbf16, #tpu.memory_space<vmem>>, vector<1x8x24xbf16>
    %46 = vector.shape_cast %45 : vector<1x8x24xbf16> to vector<8x24xbf16>
    %c192 = arith.constant 192 : index
    %c0_55 = arith.constant 0 : index
    %47 = vector.load %arg7[%c192, %c0_55] : memref<272x24xbf16, #tpu.memory_space<vmem>>, vector<8x24xbf16>
    tpu.vector_store %arg7[%c192, %c0_55], %46 {strides = array<i32>} : memref<272x24xbf16, #tpu.memory_space<vmem>>, vector<8x24xbf16>,
    %c0_56 = arith.constant 0 : index
    %c8_57 = arith.constant 8 : index
    %c7_58 = arith.constant 7 : index
    %48 = vector.load %arg3[%c0_56, %c8_57, %c7_58] : memref<1x32x36xbf16, #tpu.memory_space<vmem>>, vector<1x8x24xbf16>
    %49 = vector.shape_cast %48 : vector<1x8x24xbf16> to vector<8x24xbf16>
    %c200 = arith.constant 200 : index
    %c0_59 = arith.constant 0 : index
    %50 = vector.load %arg7[%c200, %c0_59] : memref<272x24xbf16, #tpu.memory_space<vmem>>, vector<8x24xbf16>
    tpu.vector_store %arg7[%c200, %c0_59], %49 {strides = array<i32>} : memref<272x24xbf16, #tpu.memory_space<vmem>>, vector<8x24xbf16>,
    %c0_60 = arith.constant 0 : index
    %c16_61 = arith.constant 16 : index
    %c0_62 = arith.constant 0 : index
    %51 = vector.load %arg3[%c0_60, %c16_61, %c0_62] : memref<1x32x36xbf16, #tpu.memory_space<vmem>>, vector<1x8x24xbf16>
    %52 = vector.shape_cast %51 : vector<1x8x24xbf16> to vector<8x24xbf16>
    %c208 = arith.constant 208 : index
    %c0_63 = arith.constant 0 : index
    %53 = vector.load %arg7[%c208, %c0_63] : memref<272x24xbf16, #tpu.memory_space<vmem>>, vector<8x24xbf16>
    tpu.vector_store %arg7[%c208, %c0_63], %52 {strides = array<i32>} : memref<272x24xbf16, #tpu.memory_space<vmem>>, vector<8x24xbf16>,
    %c0_64 = arith.constant 0 : index
    %c16_65 = arith.constant 16 : index
    %c1_66 = arith.constant 1 : index
    %54 = vector.load %arg3[%c0_64, %c16_65, %c1_66] : memref<1x32x36xbf16, #tpu.memory_space<vmem>>, vector<1x8x24xbf16>
    %55 = vector.shape_cast %54 : vector<1x8x24xbf16> to vector<8x24xbf16>
    %c216 = arith.constant 216 : index
    %c0_67 = arith.constant 0 : index
    %56 = vector.load %arg7[%c216, %c0_67] : memref<272x24xbf16, #tpu.memory_space<vmem>>, vector<8x24xbf16>
    tpu.vector_store %arg7[%c216, %c0_67], %55 {strides = array<i32>} : memref<272x24xbf16, #tpu.memory_space<vmem>>, vector<8x24xbf16>,
    %c0_68 = arith.constant 0 : index
    %c16_69 = arith.constant 16 : index
    %c6_70 = arith.constant 6 : index
    %57 = vector.load %arg3[%c0_68, %c16_69, %c6_70] : memref<1x32x36xbf16, #tpu.memory_space<vmem>>, vector<1x8x24xbf16>
    %58 = vector.shape_cast %57 : vector<1x8x24xbf16> to vector<8x24xbf16>
    %c224 = arith.constant 224 : index
    %c0_71 = arith.constant 0 : index
    %59 = vector.load %arg7[%c224, %c0_71] : memref<272x24xbf16, #tpu.memory_space<vmem>>, vector<8x24xbf16>
    tpu.vector_store %arg7[%c224, %c0_71], %58 {strides = array<i32>} : memref<272x24xbf16, #tpu.memory_space<vmem>>, vector<8x24xbf16>,
    %c0_72 = arith.constant 0 : index
    %c16_73 = arith.constant 16 : index
    %c7_74 = arith.constant 7 : index
    %60 = vector.load %arg3[%c0_72, %c16_73, %c7_74] : memref<1x32x36xbf16, #tpu.memory_space<vmem>>, vector<1x8x24xbf16>
    %61 = vector.shape_cast %60 : vector<1x8x24xbf16> to vector<8x24xbf16>
    %c232 = arith.constant 232 : index
    %c0_75 = arith.constant 0 : index
    %62 = vector.load %arg7[%c232, %c0_75] : memref<272x24xbf16, #tpu.memory_space<vmem>>, vector<8x24xbf16>
    tpu.vector_store %arg7[%c232, %c0_75], %61 {strides = array<i32>} : memref<272x24xbf16, #tpu.memory_space<vmem>>, vector<8x24xbf16>,
    %c0_76 = arith.constant 0 : index
    %c24 = arith.constant 24 : index
    %c0_77 = arith.constant 0 : index
    %63 = vector.load %arg3[%c0_76, %c24, %c0_77] : memref<1x32x36xbf16, #tpu.memory_space<vmem>>, vector<1x8x24xbf16>
    %64 = vector.shape_cast %63 : vector<1x8x24xbf16> to vector<8x24xbf16>
    %c240 = arith.constant 240 : index
    %c0_78 = arith.constant 0 : index
    %65 = vector.load %arg7[%c240, %c0_78] : memref<272x24xbf16, #tpu.memory_space<vmem>>, vector<8x24xbf16>
    tpu.vector_store %arg7[%c240, %c0_78], %64 {strides = array<i32>} : memref<272x24xbf16, #tpu.memory_space<vmem>>, vector<8x24xbf16>,
    %c0_79 = arith.constant 0 : index
    %c24_80 = arith.constant 24 : index
    %c1_81 = arith.constant 1 : index
    %66 = vector.load %arg3[%c0_79, %c24_80, %c1_81] : memref<1x32x36xbf16, #tpu.memory_space<vmem>>, vector<1x8x24xbf16>
    %67 = vector.shape_cast %66 : vector<1x8x24xbf16> to vector<8x24xbf16>
    %c248 = arith.constant 248 : index
    %c0_82 = arith.constant 0 : index
    %68 = vector.load %arg7[%c248, %c0_82] : memref<272x24xbf16, #tpu.memory_space<vmem>>, vector<8x24xbf16>
    tpu.vector_store %arg7[%c248, %c0_82], %67 {strides = array<i32>} : memref<272x24xbf16, #tpu.memory_space<vmem>>, vector<8x24xbf16>,
    %c0_83 = arith.constant 0 : index
    %c24_84 = arith.constant 24 : index
    %c6_85 = arith.constant 6 : index
    %69 = vector.load %arg3[%c0_83, %c24_84, %c6_85] : memref<1x32x36xbf16, #tpu.memory_space<vmem>>, vector<1x8x24xbf16>
    %70 = vector.shape_cast %69 : vector<1x8x24xbf16> to vector<8x24xbf16>
    %c256 = arith.constant 256 : index
    %c0_86 = arith.constant 0 : index
    %71 = vector.load %arg7[%c256, %c0_86] : memref<272x24xbf16, #tpu.memory_space<vmem>>, vector<8x24xbf16>
    tpu.vector_store %arg7[%c256, %c0_86], %70 {strides = array<i32>} : memref<272x24xbf16, #tpu.memory_space<vmem>>, vector<8x24xbf16>,
    %c0_87 = arith.constant 0 : index
    %c24_88 = arith.constant 24 : index
    %c7_89 = arith.constant 7 : index
    %72 = vector.load %arg3[%c0_87, %c24_88, %c7_89] : memref<1x32x36xbf16, #tpu.memory_space<vmem>>, vector<1x8x24xbf16>
    %73 = vector.shape_cast %72 : vector<1x8x24xbf16> to vector<8x24xbf16>
    %c264 = arith.constant 264 : index
    %c0_90 = arith.constant 0 : index
    %74 = vector.load %arg7[%c264, %c0_90] : memref<272x24xbf16, #tpu.memory_space<vmem>>, vector<8x24xbf16>
    tpu.vector_store %arg7[%c264, %c0_90], %73 {strides = array<i32>} : memref<272x24xbf16, #tpu.memory_space<vmem>>, vector<8x24xbf16>,
    %c0_91 = arith.constant 0 : index
    %c0_92 = arith.constant 0 : index
    %75 = vector.load %arg4[%c0_91, %c0_92] : memref<32x272xbf16, #tpu.memory_space<vmem>>, vector<32x272xbf16>
    %c0_93 = arith.constant 0 : index
    %c0_94 = arith.constant 0 : index
    %76 = vector.load %arg7[%c0_93, %c0_94] : memref<272x24xbf16, #tpu.memory_space<vmem>>, vector<272x24xbf16>
    %cst = arith.constant dense<0.000000e+00> : vector<32x24xf32>
    %77 = tpu.matmul %75, %76, %cst {dimension_numbers = #tpu.dot_dimension_numbers<[1], [0], [0], [1], [0, 0, 1, 1], [], []>} : vector<32x272xbf16>, vector<272x24xbf16>, vector<32x24xf32> -> vector<32x24xf32>
    %c0_95 = arith.constant 0 : index
    %c0_96 = arith.constant 0 : index
    %78 = vector.load %arg5[%c0_95, %c0_96] : memref<32x1xf32, #tpu.memory_space<vmem>>, vector<32x1xf32>
    %79 = vector.broadcast %78 : vector<32x1xf32> to vector<32x24xf32>
    %80 = arith.addf %77, %79 : vector<32x24xf32>
    %cst_97 = arith.constant 0.000000e+00 : f32
    %81 = vector.broadcast %cst_97 : f32 to vector<32x24xf32>
    %82 = arith.maximumf %80, %81 : vector<32x24xf32>
    %83 = arith.truncf %82 : vector<32x24xf32> to vector<32x24xbf16>
    %c0_98 = arith.constant 0 : index
    %c0_99 = arith.constant 0 : index
    %c0_100 = arith.constant 0 : index
    %84 = vector.load %arg6[%c0_98, %c0_99, %c0_100] : memref<1x32x24xbf16, #tpu.memory_space<vmem>>, vector<1x32x24xbf16>
    %85 = vector.shape_cast %84 : vector<1x32x24xbf16> to vector<32x24xbf16>
    %86 = vector.shape_cast %83 : vector<32x24xbf16> to vector<1x32x24xbf16>
    tpu.vector_store %arg6[%c0_98, %c0_99, %c0_100], %86 {strides = array<i32>} : memref<1x32x24xbf16, #tpu.memory_space<vmem>>, vector<1x32x24xbf16>,
    return
  }
  func.func @transform_0(%arg0: i32, %arg1: i32) -> (i32, i32, i32) {
    %c0_i32 = arith.constant 0 : i32
    %c0_i32_0 = arith.constant 0 : i32
    %c0_i32_1 = arith.constant 0 : i32
    return %arg0, %c0_i32, %c0_i32_0 : i32, i32, i32
  }
  func.func @transform_1(%arg0: i32, %arg1: i32) -> (i32, i32, i32) {
    %c0_i32 = arith.constant 0 : i32
    %c0_i32_0 = arith.constant 0 : i32
    %c0_i32_1 = arith.constant 0 : i32
    return %arg0, %c0_i32, %c0_i32_0 : i32, i32, i32
  }
  func.func @transform_2(%arg0: i32, %arg1: i32) -> (i32, i32) {
    %c0_i32 = arith.constant 0 : i32
    %c0_i32_0 = arith.constant 0 : i32
    %c0_i32_1 = arith.constant 0 : i32
    return %c0_i32, %c0_i32_0 : i32, i32
  }
  func.func @transform_3(%arg0: i32, %arg1: i32) -> (i32, i32) {
    %c0_i32 = arith.constant 0 : i32
    %c0_i32_0 = arith.constant 0 : i32
    %c0_i32_1 = arith.constant 0 : i32
    return %c0_i32, %c0_i32_0 : i32, i32
  }
  func.func @transform_4(%arg0: i32, %arg1: i32) -> (i32, i32, i32) {
    %c0_i32 = arith.constant 0 : i32
    %c0_i32_0 = arith.constant 0 : i32
    return %arg0, %c0_i32, %arg1 : i32, i32, i32
  }
}

module attributes {stable_mosaic.version = 11 : i64} {
  func.func @_conv_mm_kernel(%arg0: i32, %arg1: i32, %arg2: memref<1x8x110xbf16, #tpu.memory_space<vmem>>, %arg3: memref<32x72xbf16, #tpu.memory_space<vmem>>, %arg4: memref<32x1xf32, #tpu.memory_space<vmem>>, %arg5: memref<12x32xbf16, #tpu.memory_space<vmem>>, %arg6: memref<12x1xf32, #tpu.memory_space<vmem>>, %arg7: memref<1x12x80xf32, #tpu.memory_space<vmem>>, %arg8: memref<72x80xbf16, #tpu.memory_space<vmem>>) attributes {dimension_semantics = [#tpu.dimension_semantics<parallel>, #tpu.dimension_semantics<parallel>], iteration_bounds = array<i64: 2, 1>, scalar_prefetch = 0 : i64, scratch_operands = 1 : i64, tpu.core_type = #tpu.core_type<tc>, window_params = [{transform_indices = @transform_0, window_bounds = array<i64: 1, 8, 110>}, {pipeline_mode = #tpu.pipeline_mode<synchronous>, transform_indices = @transform_1, window_bounds = array<i64: 32, 72>}, {pipeline_mode = #tpu.pipeline_mode<synchronous>, transform_indices = @transform_2, window_bounds = array<i64: 32, 1>}, {pipeline_mode = #tpu.pipeline_mode<synchronous>, transform_indices = @transform_3, window_bounds = array<i64: 12, 32>}, {pipeline_mode = #tpu.pipeline_mode<synchronous>, transform_indices = @transform_4, window_bounds = array<i64: 12, 1>}, {transform_indices = @transform_5, window_bounds = array<i64: 1, 12, 80>}]} {
    %c0 = arith.constant 0 : index
    %c0_0 = arith.constant 0 : index
    %c0_1 = arith.constant 0 : index
    %0 = vector.load %arg2[%c0, %c0_0, %c0_1] : memref<1x8x110xbf16, #tpu.memory_space<vmem>>, vector<1x8x80xbf16>
    %1 = vector.shape_cast %0 : vector<1x8x80xbf16> to vector<8x80xbf16>
    %c0_2 = arith.constant 0 : index
    %c0_3 = arith.constant 0 : index
    %2 = vector.load %arg8[%c0_2, %c0_3] : memref<72x80xbf16, #tpu.memory_space<vmem>>, vector<8x80xbf16>
    tpu.vector_store %arg8[%c0_2, %c0_3], %1 {strides = array<i32>} : memref<72x80xbf16, #tpu.memory_space<vmem>>, vector<8x80xbf16>,
    %c0_4 = arith.constant 0 : index
    %c0_5 = arith.constant 0 : index
    %c1 = arith.constant 1 : index
    %3 = vector.load %arg2[%c0_4, %c0_5, %c1] : memref<1x8x110xbf16, #tpu.memory_space<vmem>>, vector<1x8x80xbf16>
    %4 = vector.shape_cast %3 : vector<1x8x80xbf16> to vector<8x80xbf16>
    %c8 = arith.constant 8 : index
    %c0_6 = arith.constant 0 : index
    %5 = vector.load %arg8[%c8, %c0_6] : memref<72x80xbf16, #tpu.memory_space<vmem>>, vector<8x80xbf16>
    tpu.vector_store %arg8[%c8, %c0_6], %4 {strides = array<i32>} : memref<72x80xbf16, #tpu.memory_space<vmem>>, vector<8x80xbf16>,
    %c0_7 = arith.constant 0 : index
    %c0_8 = arith.constant 0 : index
    %c2 = arith.constant 2 : index
    %6 = vector.load %arg2[%c0_7, %c0_8, %c2] : memref<1x8x110xbf16, #tpu.memory_space<vmem>>, vector<1x8x80xbf16>
    %7 = vector.shape_cast %6 : vector<1x8x80xbf16> to vector<8x80xbf16>
    %c16 = arith.constant 16 : index
    %c0_9 = arith.constant 0 : index
    %8 = vector.load %arg8[%c16, %c0_9] : memref<72x80xbf16, #tpu.memory_space<vmem>>, vector<8x80xbf16>
    tpu.vector_store %arg8[%c16, %c0_9], %7 {strides = array<i32>} : memref<72x80xbf16, #tpu.memory_space<vmem>>, vector<8x80xbf16>,
    %c0_10 = arith.constant 0 : index
    %c0_11 = arith.constant 0 : index
    %c10 = arith.constant 10 : index
    %9 = vector.load %arg2[%c0_10, %c0_11, %c10] : memref<1x8x110xbf16, #tpu.memory_space<vmem>>, vector<1x8x80xbf16>
    %10 = vector.shape_cast %9 : vector<1x8x80xbf16> to vector<8x80xbf16>
    %c24 = arith.constant 24 : index
    %c0_12 = arith.constant 0 : index
    %11 = vector.load %arg8[%c24, %c0_12] : memref<72x80xbf16, #tpu.memory_space<vmem>>, vector<8x80xbf16>
    tpu.vector_store %arg8[%c24, %c0_12], %10 {strides = array<i32>} : memref<72x80xbf16, #tpu.memory_space<vmem>>, vector<8x80xbf16>,
    %c0_13 = arith.constant 0 : index
    %c0_14 = arith.constant 0 : index
    %c11 = arith.constant 11 : index
    %12 = vector.load %arg2[%c0_13, %c0_14, %c11] : memref<1x8x110xbf16, #tpu.memory_space<vmem>>, vector<1x8x80xbf16>
    %13 = vector.shape_cast %12 : vector<1x8x80xbf16> to vector<8x80xbf16>
    %c32 = arith.constant 32 : index
    %c0_15 = arith.constant 0 : index
    %14 = vector.load %arg8[%c32, %c0_15] : memref<72x80xbf16, #tpu.memory_space<vmem>>, vector<8x80xbf16>
    tpu.vector_store %arg8[%c32, %c0_15], %13 {strides = array<i32>} : memref<72x80xbf16, #tpu.memory_space<vmem>>, vector<8x80xbf16>,
    %c0_16 = arith.constant 0 : index
    %c0_17 = arith.constant 0 : index
    %c12 = arith.constant 12 : index
    %15 = vector.load %arg2[%c0_16, %c0_17, %c12] : memref<1x8x110xbf16, #tpu.memory_space<vmem>>, vector<1x8x80xbf16>
    %16 = vector.shape_cast %15 : vector<1x8x80xbf16> to vector<8x80xbf16>
    %c40 = arith.constant 40 : index
    %c0_18 = arith.constant 0 : index
    %17 = vector.load %arg8[%c40, %c0_18] : memref<72x80xbf16, #tpu.memory_space<vmem>>, vector<8x80xbf16>
    tpu.vector_store %arg8[%c40, %c0_18], %16 {strides = array<i32>} : memref<72x80xbf16, #tpu.memory_space<vmem>>, vector<8x80xbf16>,
    %c0_19 = arith.constant 0 : index
    %c0_20 = arith.constant 0 : index
    %c20 = arith.constant 20 : index
    %18 = vector.load %arg2[%c0_19, %c0_20, %c20] : memref<1x8x110xbf16, #tpu.memory_space<vmem>>, vector<1x8x80xbf16>
    %19 = vector.shape_cast %18 : vector<1x8x80xbf16> to vector<8x80xbf16>
    %c48 = arith.constant 48 : index
    %c0_21 = arith.constant 0 : index
    %20 = vector.load %arg8[%c48, %c0_21] : memref<72x80xbf16, #tpu.memory_space<vmem>>, vector<8x80xbf16>
    tpu.vector_store %arg8[%c48, %c0_21], %19 {strides = array<i32>} : memref<72x80xbf16, #tpu.memory_space<vmem>>, vector<8x80xbf16>,
    %c0_22 = arith.constant 0 : index
    %c0_23 = arith.constant 0 : index
    %c21 = arith.constant 21 : index
    %21 = vector.load %arg2[%c0_22, %c0_23, %c21] : memref<1x8x110xbf16, #tpu.memory_space<vmem>>, vector<1x8x80xbf16>
    %22 = vector.shape_cast %21 : vector<1x8x80xbf16> to vector<8x80xbf16>
    %c56 = arith.constant 56 : index
    %c0_24 = arith.constant 0 : index
    %23 = vector.load %arg8[%c56, %c0_24] : memref<72x80xbf16, #tpu.memory_space<vmem>>, vector<8x80xbf16>
    tpu.vector_store %arg8[%c56, %c0_24], %22 {strides = array<i32>} : memref<72x80xbf16, #tpu.memory_space<vmem>>, vector<8x80xbf16>,
    %c0_25 = arith.constant 0 : index
    %c0_26 = arith.constant 0 : index
    %c22 = arith.constant 22 : index
    %24 = vector.load %arg2[%c0_25, %c0_26, %c22] : memref<1x8x110xbf16, #tpu.memory_space<vmem>>, vector<1x8x80xbf16>
    %25 = vector.shape_cast %24 : vector<1x8x80xbf16> to vector<8x80xbf16>
    %c64 = arith.constant 64 : index
    %c0_27 = arith.constant 0 : index
    %26 = vector.load %arg8[%c64, %c0_27] : memref<72x80xbf16, #tpu.memory_space<vmem>>, vector<8x80xbf16>
    tpu.vector_store %arg8[%c64, %c0_27], %25 {strides = array<i32>} : memref<72x80xbf16, #tpu.memory_space<vmem>>, vector<8x80xbf16>,
    %c0_28 = arith.constant 0 : index
    %c0_29 = arith.constant 0 : index
    %27 = vector.load %arg3[%c0_28, %c0_29] : memref<32x72xbf16, #tpu.memory_space<vmem>>, vector<32x72xbf16>
    %c0_30 = arith.constant 0 : index
    %c0_31 = arith.constant 0 : index
    %28 = vector.load %arg8[%c0_30, %c0_31] : memref<72x80xbf16, #tpu.memory_space<vmem>>, vector<72x80xbf16>
    %cst = arith.constant dense<0.000000e+00> : vector<32x80xf32>
    %29 = tpu.matmul %27, %28, %cst {dimension_numbers = #tpu.dot_dimension_numbers<[1], [0], [0], [1], [0, 0, 1, 1], [], []>} : vector<32x72xbf16>, vector<72x80xbf16>, vector<32x80xf32> -> vector<32x80xf32>
    %c0_32 = arith.constant 0 : index
    %c0_33 = arith.constant 0 : index
    %30 = vector.load %arg4[%c0_32, %c0_33] : memref<32x1xf32, #tpu.memory_space<vmem>>, vector<32x1xf32>
    %31 = vector.broadcast %30 : vector<32x1xf32> to vector<32x80xf32>
    %32 = arith.addf %29, %31 : vector<32x80xf32>
    %cst_34 = arith.constant 0.000000e+00 : f32
    %33 = vector.broadcast %cst_34 : f32 to vector<32x80xf32>
    %34 = arith.maximumf %32, %33 : vector<32x80xf32>
    %c0_35 = arith.constant 0 : index
    %c0_36 = arith.constant 0 : index
    %35 = vector.load %arg5[%c0_35, %c0_36] : memref<12x32xbf16, #tpu.memory_space<vmem>>, vector<12x32xbf16>
    %36 = arith.truncf %34 : vector<32x80xf32> to vector<32x80xbf16>
    %cst_37 = arith.constant dense<0.000000e+00> : vector<12x80xf32>
    %37 = tpu.matmul %35, %36, %cst_37 {dimension_numbers = #tpu.dot_dimension_numbers<[1], [0], [0], [1], [0, 0, 1, 1], [], []>} : vector<12x32xbf16>, vector<32x80xbf16>, vector<12x80xf32> -> vector<12x80xf32>
    %c0_38 = arith.constant 0 : index
    %c0_39 = arith.constant 0 : index
    %38 = vector.load %arg6[%c0_38, %c0_39] : memref<12x1xf32, #tpu.memory_space<vmem>>, vector<12x1xf32>
    %39 = vector.broadcast %38 : vector<12x1xf32> to vector<12x80xf32>
    %40 = arith.addf %37, %39 : vector<12x80xf32>
    %c0_40 = arith.constant 0 : index
    %c0_41 = arith.constant 0 : index
    %c0_42 = arith.constant 0 : index
    %41 = vector.load %arg7[%c0_40, %c0_41, %c0_42] : memref<1x12x80xf32, #tpu.memory_space<vmem>>, vector<1x12x80xf32>
    %42 = vector.shape_cast %41 : vector<1x12x80xf32> to vector<12x80xf32>
    %43 = vector.shape_cast %40 : vector<12x80xf32> to vector<1x12x80xf32>
    tpu.vector_store %arg7[%c0_40, %c0_41, %c0_42], %43 {strides = array<i32>} : memref<1x12x80xf32, #tpu.memory_space<vmem>>, vector<1x12x80xf32>,
    return
  }
  func.func @transform_0(%arg0: i32, %arg1: i32) -> (i32, i32, i32) {
    %c0_i32 = arith.constant 0 : i32
    %c0_i32_0 = arith.constant 0 : i32
    %c0_i32_1 = arith.constant 0 : i32
    return %arg0, %c0_i32, %c0_i32_0 : i32, i32, i32
  }
  func.func @transform_1(%arg0: i32, %arg1: i32) -> (i32, i32) {
    %c0_i32 = arith.constant 0 : i32
    %c0_i32_0 = arith.constant 0 : i32
    %c0_i32_1 = arith.constant 0 : i32
    return %c0_i32, %c0_i32_0 : i32, i32
  }
  func.func @transform_2(%arg0: i32, %arg1: i32) -> (i32, i32) {
    %c0_i32 = arith.constant 0 : i32
    %c0_i32_0 = arith.constant 0 : i32
    %c0_i32_1 = arith.constant 0 : i32
    return %c0_i32, %c0_i32_0 : i32, i32
  }
  func.func @transform_3(%arg0: i32, %arg1: i32) -> (i32, i32) {
    %c0_i32 = arith.constant 0 : i32
    %c0_i32_0 = arith.constant 0 : i32
    %c0_i32_1 = arith.constant 0 : i32
    return %c0_i32, %c0_i32_0 : i32, i32
  }
  func.func @transform_4(%arg0: i32, %arg1: i32) -> (i32, i32) {
    %c0_i32 = arith.constant 0 : i32
    %c0_i32_0 = arith.constant 0 : i32
    %c0_i32_1 = arith.constant 0 : i32
    return %c0_i32, %c0_i32_0 : i32, i32
  }
  func.func @transform_5(%arg0: i32, %arg1: i32) -> (i32, i32, i32) {
    %c0_i32 = arith.constant 0 : i32
    %c0_i32_0 = arith.constant 0 : i32
    return %arg0, %c0_i32, %arg1 : i32, i32, i32
  }
}

</mosaic_0001>

<llo_original>
// kernel: tile.18
$region0: #{tile.18}
  #allocation0 [shape = 's32[1]{0}', space=sflag, size = 0x4, scoped, tag = 'scoped memory for tile.18']
  %s0 = inlined_call_operand.vmem [shape: f32[3], index: 0, kind: input, shape index: {}]
  %s1 = inlined_call_operand.vmem [shape: f32[4,3], index: 1, kind: output, shape index: {}]
  // Predicated region
  $region2: #{tile.18} parent=0 // pred_check
    _
  $region3: #{tile.18} parent=0 // pred_check_branch
    %3 = sbr.rel (0) target = $region5
  $region4: #{tile.18} parent=0 // pred_region
    _
  $region5: #{tile.18} parent=0 // pred_fallthru
    _
  %v4 = vld [vmem:[%s0] ss:$0 sm:$0xff]
  %5 = vst [vmem:[%s1] sm:$0xf] %v4

// kernel: tile.2
$region0: #{tile.2}
  %s0 = inlined_call_operand.vmem [shape: f32[4,3], index: 0, kind: input, shape index: {}]
  %s1 = inlined_call_operand.vmem [shape: f32[12,1], index: 1, kind: output, shape index: {}]
  $region1: #{tile.2} parent=0
    #allocation0 [shape = 'u8[4096]{0}', space=vmem, size = 0x1000, scoped, tag = 'scoped mem for input reshape']
    %s3 = ssub.s32 16, 1
    %v4 = vld [vmem:[%s0] sm:%s3]
    %5 = vst [vmem:[#allocation0] sm:%s3] %v4
    %v6 = vld [vmem:[#allocation0] sm:$0xf]
    %vm7 = vcmask 7168
    %8 = vst.msk [vmem:[%s1] ss:$3 sm:$0xf] %vm7, %v6
    %v9 = vld [vmem:[#allocation0] sm:$0xf]
    %10 = vrot.lane.b32.xlu0 %v9, 127
    %v11 = vpop.permute.xlu0 %10
    %vm12 = vcmask 7168
    %s13 = scalar_lea.vmem %s1, 1
    %14 = vst.msk [vmem:[%s13] ss:$3 sm:$0xf] %vm12, %v11
    %v15 = vld [vmem:[#allocation0] sm:$0xf]
    %16 = vrot.lane.b32.xlu0 %v15, 126
    %v17 = vpop.permute.xlu0 %16
    %vm18 = vcmask 7168
    %s19 = scalar_lea.vmem %s1, 2
    %20 = vst.msk [vmem:[%s19] ss:$3 sm:$0xf] %vm18, %v17

// kernel: tile.21
$region0: #{tile.21}
  #allocation0 [shape = 's32[1]{0}', space=sflag, size = 0x4, scoped, tag = 'scoped memory for tile.21']
  %s0 = inlined_call_operand.vmem [shape: f32[8], index: 0, kind: input, shape index: {}]
  %s1 = inlined_call_operand.vmem [shape: f32[4,8], index: 1, kind: output, shape index: {}]
  // Predicated region
  $region2: #{tile.21} parent=0 // pred_check
    _
  $region3: #{tile.21} parent=0 // pred_check_branch
    %3 = sbr.rel (0) target = $region5
  $region4: #{tile.21} parent=0 // pred_region
    _
  $region5: #{tile.21} parent=0 // pred_fallthru
    _
  %v4 = vld [vmem:[%s0] ss:$0 sm:$0xff]
  %5 = vst [vmem:[%s1] sm:$0xf] %v4

// kernel: tile.1
$region0: #{tile.1}
  %s0 = inlined_call_operand.vmem [shape: f32[4,8], index: 0, kind: input, shape index: {}]
  %s1 = inlined_call_operand.vmem [shape: f32[32,1], index: 1, kind: output, shape index: {}]
  $region1: #{tile.1} parent=0
    #allocation0 [shape = 'u8[4096]{0}', space=vmem, size = 0x1000, scoped, tag = 'scoped mem for input reshape']
    %s3 = ssub.s32 16, 1
    %v4 = vld [vmem:[%s0] sm:%s3]
    %5 = vst [vmem:[#allocation0] sm:%s3] %v4
    %v6 = vld [vmem:[#allocation0] sm:$0xf]
    %vm7 = vcmask 7168
    %8 = vst.msk [vmem:[%s1] ss:$8 sm:$0xf] %vm7, %v6
    %v9 = vld [vmem:[#allocation0] sm:$0xf]
    %10 = vrot.lane.b32.xlu0 %v9, 127
    %v11 = vpop.permute.xlu0 %10
    %vm12 = vcmask 7168
    %s13 = scalar_lea.vmem %s1, 1
    %14 = vst.msk [vmem:[%s13] ss:$8 sm:$0xf] %vm12, %v11
    %v15 = vld [vmem:[#allocation0] sm:$0xf]
    %16 = vrot.lane.b32.xlu0 %v15, 126
    %v17 = vpop.permute.xlu0 %16
    %vm18 = vcmask 7168
    %s19 = scalar_lea.vmem %s1, 2
    %20 = vst.msk [vmem:[%s19] ss:$8 sm:$0xf] %vm18, %v17
    %v21 = vld [vmem:[#allocation0] sm:$0xf]
    %22 = vrot.lane.b32.xlu0 %v21, 125
    %v23 = vpop.permute.xlu0 %22
    %vm24 = vcmask 7168
    %s25 = scalar_lea.vmem %s1, 3
    %26 = vst.msk [vmem:[%s25] ss:$8 sm:$0xf] %vm24, %v23
    %v27 = vld [vmem:[#allocation0] sm:$0xf]
    %28 = vrot.lane.b32.xlu0 %v27, 124
    %v29 = vpop.permute.xlu0 %28
    %vm30 = vcmask 7168
    %s31 = scalar_lea.vmem %s1, 4
    %32 = vst.msk [vmem:[%s31] ss:$8 sm:$0xf] %vm30, %v29
    %v33 = vld [vmem:[#allocation0] sm:$0xf]
    %34 = vrot.lane.b32.xlu0 %v33, 123
    %v35 = vpop.permute.xlu0 %34
    %vm36 = vcmask 7168
    %s37 = scalar_lea.vmem %s1, 5
    %38 = vst.msk [vmem:[%s37] ss:$8 sm:$0xf] %vm36, %v35
    %v39 = vld [vmem:[#allocation0] sm:$0xf]
    %40 = vrot.lane.b32.xlu0 %v39, 122
    %v41 = vpop.permute.xlu0 %40
    %vm42 = vcmask 7168
    %s43 = scalar_lea.vmem %s1, 6
    %44 = vst.msk [vmem:[%s43] ss:$8 sm:$0xf] %vm42, %v41
    %v45 = vld [vmem:[#allocation0] sm:$0xf]
    %46 = vrot.lane.b32.xlu0 %v45, 121
    %v47 = vpop.permute.xlu0 %46
    %vm48 = vcmask 7168
    %s49 = scalar_lea.vmem %s1, 7
    %50 = vst.msk [vmem:[%s49] ss:$8 sm:$0xf] %vm48, %v47

// kernel: _lambda_.4
$region0: #{_lambda_.4}
  #allocation0 [shape = 'u32[]', space=smem, size = 0x4, offset = 0x4, fixed_abs, tag = 'smem constant byte address 0x4 - core index']
  #allocation1 [shape = 'u32[72,128]{1,0:T(1,128)}', space=vmem, size = 0x9000, scoped, tag = 'internal scratch']
  #allocation2 [shape = 'bf16[36,72]{1,0:T(8,128)(2,1)}', space=vmem, size = 0x2800, scoped, tag = 'scratch operand']
  %s0 = inlined_call_operand.vmem [shape: bf16[2,16,90], index: 0, kind: input, shape index: {}]
  %s1 = inlined_call_operand.vmem [shape: bf16[8,36], index: 1, kind: input, shape index: {}]
  %s2 = inlined_call_operand.vmem [shape: f32[8,1], index: 2, kind: input, shape index: {}]
  %s3 = inlined_call_operand.vmem [shape: bf16[2,8,72], index: 3, kind: output, shape index: {}]
  %s4 = sld [smem:[#allocation0]]
  $region45: #{_lambda_.4} parent=0
    _
  %s6 = ssub.s32 1, %s4
  %s7 = scalar_select 0, %s6, %s4
  loop: start=0, step=1, limit=4
  $region2: #{_lambda_.4} parent=0 // loop_pre_header
    _
  $region3: #{_lambda_.4} parent=0 // loop_header
    %s9 = sphi 0, %s13
    %p10 = scmp.ge.s32.totalorder %s9, 4
    %s16 = sphi 0, %s28
    %s17 = sphi 0, %s24
    %s18 = sphi 0, %s16
    %s19 = sphi 0, %s17
    %s20 = sphi 0, %s18
    %s21 = sphi 0, %s19
    %s31 = sphi 0, %s33
    %s34 = sphi 0, %s31
    %s35 = sphi 0, %s34
    %s51 = sphi 0, %s35
    %s55 = sphi 0, %s55
    %s57 = sphi 0, %s55
    %s58 = sphi 0, %s57
    %s72 = sphi 0, %s58
    %s76 = sphi 0, %s76
    %s78 = sphi 0, %s76
    %s79 = sphi 0, %s78
    %s93 = sphi 0, %s79
    %s101 = sphi 0, %s103
    %s104 = sphi 0, %s101
    %s105 = sphi 0, %s104
    %s121 = sphi 0, %s105
  $region4: #{_lambda_.4} parent=0 // loop_header_branch
    %12 = sbr.rel (%p10) target = $region8
  $region5: #{_lambda_.4} parent=0 // loop_body
    %s14 = ssub.s32 %s9, 1
    %s15 = ssub.s32 %s9, 2
    %s22 = sadd.s32 1, %s17
    %p23 = scmp.ge.s32.totalorder %s22, 1
    %s24 = scalar_select %p23, 0, %s22
    %s25 = sadd.s32 1, %s16
    %s26 = scalar_select %p23, %s25, %s16
    %p27 = scmp.ge.s32.totalorder %s26, 2
    %s28 = scalar_select %p27, 0, %s26
    %s29 = ssub.s32 %s16, %s28
    %p30 = scmp.eq.s32.totalorder %s29, 0
    %s32 = sadd.s32 %s31, 1
    %s33 = scalar_select %p30, %s31, %s32
    %p36 = pneg %p30
    %p37 = scmp.eq.s32.totalorder %s9, 1
    %p38 = por %p36, %p37
    %p39 = scmp.ne.s32.totalorder %s31, %s34
    %p40 = scmp.eq.s32.totalorder %s9, 0
    %p41 = por %p39, %p40
    %p42 = scmp.ne.s32.totalorder %s31, %s34
    %p43 = scmp.eq.s32.totalorder %s14, 1
    %p44 = por %p42, %p43
    %p45 = scmp.ne.s32.totalorder %s34, %s35
    %p46 = scmp.eq.s32.totalorder %s14, 0
    %p47 = por %p45, %p46
    %p48 = scmp.ne.s32.totalorder %s34, %s35
    %p49 = scmp.eq.s32.totalorder %s15, 1
    %p50 = por %p48, %p49
    %p52 = scmp.ne.s32.totalorder %s35, %s51
    %p53 = scmp.eq.s32.totalorder %s15, 0
    %p54 = por %p52, %p53
    %s56 = sadd.s32 %s55, 1
    %p59 = scmp.eq.s32.totalorder %s9, 1
    %p60 = scmp.ne.s32.totalorder %s55, %s57
    %p61 = scmp.eq.s32.totalorder %s9, 0
    %p62 = por %p60, %p61
    %p63 = scmp.ne.s32.totalorder %s55, %s57
    %p64 = scmp.eq.s32.totalorder %s14, 1
    %p65 = por %p63, %p64
    %p66 = scmp.ne.s32.totalorder %s57, %s58
    %p67 = scmp.eq.s32.totalorder %s14, 0
    %p68 = por %p66, %p67
    %p69 = scmp.ne.s32.totalorder %s57, %s58
    %p70 = scmp.eq.s32.totalorder %s15, 1
    %p71 = por %p69, %p70
    %p73 = scmp.ne.s32.totalorder %s58, %s72
    %p74 = scmp.eq.s32.totalorder %s15, 0
    %p75 = por %p73, %p74
    %s77 = sadd.s32 %s76, 1
    %p80 = scmp.eq.s32.totalorder %s9, 1
    %p81 = scmp.ne.s32.totalorder %s76, %s78
    %p82 = scmp.eq.s32.totalorder %s9, 0
    %p83 = por %p81, %p82
    %p84 = scmp.ne.s32.totalorder %s76, %s78
    %p85 = scmp.eq.s32.totalorder %s14, 1
    %p86 = por %p84, %p85
    %p87 = scmp.ne.s32.totalorder %s78, %s79
    %p88 = scmp.eq.s32.totalorder %s14, 0
    %p89 = por %p87, %p88
    %p90 = scmp.ne.s32.totalorder %s78, %s79
    %p91 = scmp.eq.s32.totalorder %s15, 1
    %p92 = por %p90, %p91
    %p94 = scmp.ne.s32.totalorder %s79, %s93
    %p95 = scmp.eq.s32.totalorder %s15, 0
    %p96 = por %p94, %p95
    %s97 = ssub.s32 %s16, %s28
    %s98 = ssub.s32 %s17, %s24
    %s99 = sor.u32 %s97, %s98
    %p100 = scmp.eq.s32.totalorder %s99, 0
    %s102 = sadd.s32 %s101, 1
    %s103 = scalar_select %p100, %s101, %s102
    %p106 = pneg %p100
    %p107 = scmp.eq.s32.totalorder %s9, 1
    %p108 = por %p106, %p107
    %p109 = scmp.ne.s32.totalorder %s101, %s104
    %p110 = scmp.eq.s32.totalorder %s9, 0
    %p111 = por %p109, %p110
    %p112 = scmp.ne.s32.totalorder %s101, %s104
    %p113 = scmp.eq.s32.totalorder %s14, 1
    %p114 = por %p112, %p113
    %p115 = scmp.ne.s32.totalorder %s104, %s105
    %p116 = scmp.eq.s32.totalorder %s14, 0
    %p117 = por %p115, %p116
    %p118 = scmp.ne.s32.totalorder %s104, %s105
    %p119 = scmp.eq.s32.totalorder %s15, 1
    %p120 = por %p118, %p119
    %p122 = scmp.ne.s32.totalorder %s105, %s121
    %p123 = scmp.eq.s32.totalorder %s15, 0
    %p124 = por %p122, %p123
    %p125 = scmp.le.s32.totalorder 1, %s9
    %p126 = scmp.lt.s32.totalorder %s9, 3
    %p127 = pnand %p125, %p126
    %p128 = pneg %p127
    // Predicated region
    $region9: #{_lambda_.4} parent=5 // pred_check
      _
    $region10: #{_lambda_.4} parent=5 // pred_check_branch
      %130 = sbr.rel (%p127) target = $region12
    $region11: #{_lambda_.4} parent=5 // pred_region
      %s131 = ssub.s32 %s9, 1
      // Predicated region
      $region13: #{_lambda_.4} parent=11 // pred_check
        %p132 = pneg %p68
      $region14: #{_lambda_.4} parent=11 // pred_check_branch
        %134 = sbr.rel (%p132) target = $region16
      $region15: #{_lambda_.4} parent=11 // pred_region
        _
      $region16: #{_lambda_.4} parent=11 // pred_fallthru
        _
      // Predicated region
      $region17: #{_lambda_.4} parent=11 // pred_check
        %p135 = pneg %p89
      $region18: #{_lambda_.4} parent=11 // pred_check_branch
        %137 = sbr.rel (%p135) target = $region20
      $region19: #{_lambda_.4} parent=11 // pred_region
        _
      $region20: #{_lambda_.4} parent=11 // pred_fallthru
        _
    $region12: #{_lambda_.4} parent=5 // pred_fallthru
      _
    %p138 = scmp.lt.s32.totalorder %s9, 2
    // Predicated region
    $region21: #{_lambda_.4} parent=5 // pred_check
      %p139 = pneg %p138
    $region22: #{_lambda_.4} parent=5 // pred_check_branch
      %141 = sbr.rel (%p139) target = $region24
    $region23: #{_lambda_.4} parent=5 // pred_region
      // Predicated region
      $region25: #{_lambda_.4} parent=23 // pred_check
        %p142 = pneg %p41
      $region26: #{_lambda_.4} parent=23 // pred_check_branch
        %144 = sbr.rel (%p142) target = $region28
      $region27: #{_lambda_.4} parent=23 // pred_region
        %p145 = scmp.lt.s32.totalorder %s16, 1
        %s146 = scalar_select %p145, %s16, 1
        %s147 = smul.addr %s146, 2
        %s148 = smul.addr %s147, 4
        %s149 = scalar_lea.vmem %s0, %s148
      $region28: #{_lambda_.4} parent=23 // pred_fallthru
        _
    $region24: #{_lambda_.4} parent=5 // pred_fallthru
      _
    %p150 = scmp.le.s32.totalorder 1, %s9
    %p151 = scmp.lt.s32.totalorder %s9, 3
    %p152 = pnand %p150, %p151
    %p153 = pneg %p152
    // Predicated region
    $region29: #{_lambda_.4} parent=5 // pred_check
      _
    $region30: #{_lambda_.4} parent=5 // pred_check_branch
      %155 = sbr.rel (%p152) target = $region32
    $region31: #{_lambda_.4} parent=5 // pred_region
      %s156 = ssub.s32 %s9, 1
      %p157 = scmp.lt.s32.totalorder %s18, 1
      %s158 = scalar_select %p157, %s18, 1
      %s159 = smul.addr %s158, 2
      %s160 = smul.addr %s159, 4
      %s161 = scalar_lea.vmem %s0, %s160
      %p162 = pneg %p47
      %p163 = pneg %p44
      %p164 = pneg %p68
      %p165 = pneg %p65
      %p166 = pneg %p89
      %p167 = pneg %p86
      %p168 = pneg %p117
      %p169 = pneg %p114
      %p170 = scmp.lt.s32.totalorder %s18, 1
      %s171 = scalar_select %p170, %s18, 1
      %p172 = scmp.lt.s32.totalorder %s19, 0
      %s173 = scalar_select %p172, %s19, 0
      %s174 = sadd.s32 %s173, %s171
      %s175 = smul.addr %s174, 4
      %s176 = scalar_lea.vmem %s3, %s175
      %p177 = scmp.lt.s32.totalorder %s18, 1
      %s178 = scalar_select %p177, %s18, 1
      %s179 = smul.addr %s178, 2
      %s180 = smul.addr %s179, 4
      %s181 = scalar_lea.vmem %s0, %s180
      %p182 = scmp.lt.s32.totalorder %s18, 1
      %s183 = scalar_select %p182, %s18, 1
      %p184 = scmp.lt.s32.totalorder %s19, 0
      %s185 = scalar_select %p184, %s19, 0
      %s186 = sadd.s32 %s185, %s183
      %s187 = smul.addr %s186, 4
      %s188 = scalar_lea.vmem %s3, %s187
      %v190 = vld [vmem:[%s181] sm:$0x3]
      %vm191 = vcmask 582656
      %192 = vst.msk [vmem:[#allocation2] sm:$0x3] %vm191, %v190
      %v193 = vld [vmem:[%s181] sm:$0xc]
      %vm194 = vcmask 584706
      %195 = vst.msk [vmem:[#allocation2] sm:$0xc] %vm194, %v193
      %v196 = vld [vmem:[%s181] sm:$0x3]
      %198 = vrot.lane.b32.xlu0 %v196, 127
      %v199 = vpop.permute.xlu0 %198
      %201 = vst.msk [vmem:[#allocation2 + $0x4] sm:$0x3] %vm191, %v199
      %v202 = vld [vmem:[%s181 + $0x4] sm:$0x3]
      %v204 = vrot.slane %v202, 6
      %206 = vst.msk [vmem:[#allocation2 + $0x4] sm:$0xc] %vm194, %v204
      %v207 = vld [vmem:[%s181 + $0x4] sm:$0xc]
      %v209 = vrot.slane %v207, 6
      %v210 = vrot.slane %v209, 4
      %212 = vst.msk [vmem:[#allocation2 + $0x8] sm:$0x3] %vm191, %v210
      %v213 = vld [vmem:[%s181 + $0x4] sm:$0x3]
      %v215 = vrot.slane %v213, 6
      %216 = vrot.lane.b32.xlu0 %v215, 127
      %v217 = vpop.permute.xlu0 %216
      %219 = vst.msk [vmem:[#allocation2 + $0x8] sm:$0xc] %vm194, %v217
      %v220 = vld [vmem:[%s181] sm:$0x3]
      %222 = vrot.lane.b32.xlu0 %v220, 119
      %v223 = vpop.permute.xlu0 %222
      %225 = vst.msk [vmem:[#allocation2 + $0xc] sm:$0x3] %vm191, %v223
      %v226 = vld [vmem:[%s181] sm:$0xc]
      %228 = vrot.lane.b32.xlu0 %v226, 119
      %v229 = vpop.permute.xlu0 %228
      %231 = vst.msk [vmem:[#allocation2 + $0xc] sm:$0xc] %vm194, %v229
      %v232 = vld [vmem:[%s181] sm:$0x3]
      %234 = vrot.lane.b32.xlu0 %v232, 118
      %v235 = vpop.permute.xlu0 %234
      %237 = vst.msk [vmem:[#allocation2 + $0x10] sm:$0x3] %vm191, %v235
      %v238 = vld [vmem:[%s1] sm:$0xf]
      %v239 = vld [vmem:[#allocation2] sm:$0xf]
      %v240 = vld [vmem:[#allocation2 + $0x4] sm:$0xf]
      %v241 = vld [vmem:[#allocation2 + $0x8] sm:$0xf]
      %v242 = vld [vmem:[#allocation2 + $0xc] sm:$0xf]
      %v243 = vld [vmem:[#allocation2 + $0x10] sm:$0x3]
      %v244 = vld [vmem:[%s2] sm:$0xff]
      %246 = vset.pattern.permute.xlu0 0
      %247 = vperm.xlu0 %246, %v244
      %v248 = vpop.permute.xlu0 %247
      %v255 = vunpack.c.l.b16 %v239
      %v256 = vunpack.c.l.b16 %v240
      %v257 = vunpack.c.l.b16 %v241
      %v258 = vunpack.c.l.b16 %v242
      %v259 = vunpack.c.l.b16 %v243
      %v260 = vpack.c.b16 %v256, %v255
      %v261 = vpack.c.b16 %v258, %v257
      %v262 = vpack.c.b16 %v259, %v259
      %vm265 = vcmask 293888
      %v267 = vsel %vm265, %v238, 0
      %vm269 = vcmask 1041408
      %v271 = vsel %vm269, %v262, 0
      %273 = vmatpush.bf16.msra.mxu0 0
      %274 = vmatpush.bf16.msra.mxu0 0
      %275 = vmatpush.bf16.msra.mxu0 0
      %276 = vmatpush.bf16.msra.mxu0 0
      %277 = vmatpush.bf16.msra.mxu0 0
      %278 = vmatpush.bf16.msra.mxu0 %v271
      %279 = vmatpush.bf16.msra.mxu0 %v261
      %280 = vmatpush.bf16.msra.mxu0 %v260
      %281 = vmatmul.bf16.gmra.mxu0 %v267
      %v282 = vpop.f32.mrf.mxu0
      %v283 = vadd.f32 %v248, %v282
      %v284 = vpop.f32.mrf.mxu0
      %285 = vdwg.mxu0
      %v286 = vmax.f32 %v283, 0.0
      %v287 = vpack.c.bf16 %v286, %v286
      %vm288 = vcmask 584704
      %289 = vst.msk [vmem:[%s188] sm:$0xf] %vm288, %v287
      %p290 = scmp.lt.s32.totalorder %s18, 1
      %s291 = scalar_select %p290, %s18, 1
      %p292 = scmp.lt.s32.totalorder %s19, 0
      %s293 = scalar_select %p292, %s19, 0
      %s294 = sadd.s32 %s293, %s291
      %s295 = smul.addr %s294, 4
      %s296 = scalar_lea.vmem %s3, %s295
      // Predicated region
      $region33: #{_lambda_.4} parent=31 // pred_check
        %p297 = pneg %p114
      $region34: #{_lambda_.4} parent=31 // pred_check_branch
        %299 = sbr.rel (%p297) target = $region36
      $region35: #{_lambda_.4} parent=31 // pred_region
        _
      $region36: #{_lambda_.4} parent=31 // pred_fallthru
        _
    $region32: #{_lambda_.4} parent=5 // pred_fallthru
      _
    %p300 = scmp.le.s32.totalorder 2, %s9
    // Predicated region
    $region37: #{_lambda_.4} parent=5 // pred_check
      %p301 = pneg %p300
    $region38: #{_lambda_.4} parent=5 // pred_check_branch
      %303 = sbr.rel (%p301) target = $region40
    $region39: #{_lambda_.4} parent=5 // pred_region
      %s304 = ssub.s32 %s9, 2
      // Predicated region
      $region41: #{_lambda_.4} parent=39 // pred_check
        %p305 = pneg %p120
      $region42: #{_lambda_.4} parent=39 // pred_check_branch
        %307 = sbr.rel (%p305) target = $region44
      $region43: #{_lambda_.4} parent=39 // pred_region
        %p308 = scmp.lt.s32.totalorder %s20, 1
        %s309 = scalar_select %p308, %s20, 1
        %p310 = scmp.lt.s32.totalorder %s21, 0
        %s311 = scalar_select %p310, %s21, 0
        %s312 = sadd.s32 %s311, %s309
        %s313 = smul.addr %s312, 4
        %s314 = scalar_lea.vmem %s3, %s313
      $region44: #{_lambda_.4} parent=39 // pred_fallthru
        _
    $region40: #{_lambda_.4} parent=5 // pred_fallthru
      _
  $region6: #{_lambda_.4} parent=0 // loop_footer
    %s13 = sadd.s32 1, %s9
  $region7: #{_lambda_.4} parent=0 // loop_footer_branch
    %8 = sbr.rel target = $region3
  $region8: #{_lambda_.4} parent=0 // loop_exit
    _

// kernel: _lambda_.5
$region0: #{_lambda_.5}
  #allocation0 [shape = 'u32[]', space=smem, size = 0x4, offset = 0x4, fixed_abs, tag = 'smem constant byte address 0x4 - core index']
  #allocation1 [shape = 'u32[72,128]{1,0:T(1,128)}', space=vmem, size = 0x9000, scoped, tag = 'internal scratch']
  #allocation2 [shape = 'bf16[72,24]{1,0:T(8,128)(2,1)}', space=vmem, size = 0x4800, scoped, tag = 'scratch operand']
  %s0 = inlined_call_operand.vmem [shape: bf16[2,32,36], index: 0, kind: input, shape index: {}]
  %s1 = inlined_call_operand.vmem [shape: bf16[16,72], index: 1, kind: input, shape index: {}]
  %s2 = inlined_call_operand.vmem [shape: f32[16,1], index: 2, kind: input, shape index: {}]
  %s3 = inlined_call_operand.vmem [shape: bf16[16,16], index: 3, kind: input, shape index: {}]
  %s4 = inlined_call_operand.vmem [shape: f32[16,1], index: 4, kind: input, shape index: {}]
  %s5 = inlined_call_operand.vmem [shape: bf16[2,16,24], index: 5, kind: output, shape index: {}]
  %s6 = sld [smem:[#allocation0]]
  $region53: #{_lambda_.5} parent=0
    _
  %s8 = ssub.s32 1, %s6
  %s9 = scalar_select 0, %s8, %s6
  loop: start=0, step=1, limit=4
  $region2: #{_lambda_.5} parent=0 // loop_pre_header
    _
  $region3: #{_lambda_.5} parent=0 // loop_header
    %s11 = sphi 0, %s15
    %p12 = scmp.ge.s32.totalorder %s11, 4
    %s18 = sphi 0, %s30
    %s19 = sphi 0, %s26
    %s20 = sphi 0, %s18
    %s21 = sphi 0, %s19
    %s22 = sphi 0, %s20
    %s23 = sphi 0, %s21
    %s33 = sphi 0, %s35
    %s36 = sphi 0, %s33
    %s37 = sphi 0, %s36
    %s53 = sphi 0, %s37
    %s57 = sphi 0, %s57
    %s59 = sphi 0, %s57
    %s60 = sphi 0, %s59
    %s74 = sphi 0, %s60
    %s78 = sphi 0, %s78
    %s80 = sphi 0, %s78
    %s81 = sphi 0, %s80
    %s95 = sphi 0, %s81
    %s99 = sphi 0, %s99
    %s101 = sphi 0, %s99
    %s102 = sphi 0, %s101
    %s116 = sphi 0, %s102
    %s120 = sphi 0, %s120
    %s122 = sphi 0, %s120
    %s123 = sphi 0, %s122
    %s137 = sphi 0, %s123
    %s145 = sphi 0, %s147
    %s148 = sphi 0, %s145
    %s149 = sphi 0, %s148
    %s165 = sphi 0, %s149
  $region4: #{_lambda_.5} parent=0 // loop_header_branch
    %14 = sbr.rel (%p12) target = $region8
  $region5: #{_lambda_.5} parent=0 // loop_body
    %s16 = ssub.s32 %s11, 1
    %s17 = ssub.s32 %s11, 2
    %s24 = sadd.s32 1, %s19
    %p25 = scmp.ge.s32.totalorder %s24, 1
    %s26 = scalar_select %p25, 0, %s24
    %s27 = sadd.s32 1, %s18
    %s28 = scalar_select %p25, %s27, %s18
    %p29 = scmp.ge.s32.totalorder %s28, 2
    %s30 = scalar_select %p29, 0, %s28
    %s31 = ssub.s32 %s18, %s30
    %p32 = scmp.eq.s32.totalorder %s31, 0
    %s34 = sadd.s32 %s33, 1
    %s35 = scalar_select %p32, %s33, %s34
    %p38 = pneg %p32
    %p39 = scmp.eq.s32.totalorder %s11, 1
    %p40 = por %p38, %p39
    %p41 = scmp.ne.s32.totalorder %s33, %s36
    %p42 = scmp.eq.s32.totalorder %s11, 0
    %p43 = por %p41, %p42
    %p44 = scmp.ne.s32.totalorder %s33, %s36
    %p45 = scmp.eq.s32.totalorder %s16, 1
    %p46 = por %p44, %p45
    %p47 = scmp.ne.s32.totalorder %s36, %s37
    %p48 = scmp.eq.s32.totalorder %s16, 0
    %p49 = por %p47, %p48
    %p50 = scmp.ne.s32.totalorder %s36, %s37
    %p51 = scmp.eq.s32.totalorder %s17, 1
    %p52 = por %p50, %p51
    %p54 = scmp.ne.s32.totalorder %s37, %s53
    %p55 = scmp.eq.s32.totalorder %s17, 0
    %p56 = por %p54, %p55
    %s58 = sadd.s32 %s57, 1
    %p61 = scmp.eq.s32.totalorder %s11, 1
    %p62 = scmp.ne.s32.totalorder %s57, %s59
    %p63 = scmp.eq.s32.totalorder %s11, 0
    %p64 = por %p62, %p63
    %p65 = scmp.ne.s32.totalorder %s57, %s59
    %p66 = scmp.eq.s32.totalorder %s16, 1
    %p67 = por %p65, %p66
    %p68 = scmp.ne.s32.totalorder %s59, %s60
    %p69 = scmp.eq.s32.totalorder %s16, 0
    %p70 = por %p68, %p69
    %p71 = scmp.ne.s32.totalorder %s59, %s60
    %p72 = scmp.eq.s32.totalorder %s17, 1
    %p73 = por %p71, %p72
    %p75 = scmp.ne.s32.totalorder %s60, %s74
    %p76 = scmp.eq.s32.totalorder %s17, 0
    %p77 = por %p75, %p76
    %s79 = sadd.s32 %s78, 1
    %p82 = scmp.eq.s32.totalorder %s11, 1
    %p83 = scmp.ne.s32.totalorder %s78, %s80
    %p84 = scmp.eq.s32.totalorder %s11, 0
    %p85 = por %p83, %p84
    %p86 = scmp.ne.s32.totalorder %s78, %s80
    %p87 = scmp.eq.s32.totalorder %s16, 1
    %p88 = por %p86, %p87
    %p89 = scmp.ne.s32.totalorder %s80, %s81
    %p90 = scmp.eq.s32.totalorder %s16, 0
    %p91 = por %p89, %p90
    %p92 = scmp.ne.s32.totalorder %s80, %s81
    %p93 = scmp.eq.s32.totalorder %s17, 1
    %p94 = por %p92, %p93
    %p96 = scmp.ne.s32.totalorder %s81, %s95
    %p97 = scmp.eq.s32.totalorder %s17, 0
    %p98 = por %p96, %p97
    %s100 = sadd.s32 %s99, 1
    %p103 = scmp.eq.s32.totalorder %s11, 1
    %p104 = scmp.ne.s32.totalorder %s99, %s101
    %p105 = scmp.eq.s32.totalorder %s11, 0
    %p106 = por %p104, %p105
    %p107 = scmp.ne.s32.totalorder %s99, %s101
    %p108 = scmp.eq.s32.totalorder %s16, 1
    %p109 = por %p107, %p108
    %p110 = scmp.ne.s32.totalorder %s101, %s102
    %p111 = scmp.eq.s32.totalorder %s16, 0
    %p112 = por %p110, %p111
    %p113 = scmp.ne.s32.totalorder %s101, %s102
    %p114 = scmp.eq.s32.totalorder %s17, 1
    %p115 = por %p113, %p114
    %p117 = scmp.ne.s32.totalorder %s102, %s116
    %p118 = scmp.eq.s32.totalorder %s17, 0
    %p119 = por %p117, %p118
    %s121 = sadd.s32 %s120, 1
    %p124 = scmp.eq.s32.totalorder %s11, 1
    %p125 = scmp.ne.s32.totalorder %s120, %s122
    %p126 = scmp.eq.s32.totalorder %s11, 0
    %p127 = por %p125, %p126
    %p128 = scmp.ne.s32.totalorder %s120, %s122
    %p129 = scmp.eq.s32.totalorder %s16, 1
    %p130 = por %p128, %p129
    %p131 = scmp.ne.s32.totalorder %s122, %s123
    %p132 = scmp.eq.s32.totalorder %s16, 0
    %p133 = por %p131, %p132
    %p134 = scmp.ne.s32.totalorder %s122, %s123
    %p135 = scmp.eq.s32.totalorder %s17, 1
    %p136 = por %p134, %p135
    %p138 = scmp.ne.s32.totalorder %s123, %s137
    %p139 = scmp.eq.s32.totalorder %s17, 0
    %p140 = por %p138, %p139
    %s141 = ssub.s32 %s18, %s30
    %s142 = ssub.s32 %s19, %s26
    %s143 = sor.u32 %s141, %s142
    %p144 = scmp.eq.s32.totalorder %s143, 0
    %s146 = sadd.s32 %s145, 1
    %s147 = scalar_select %p144, %s145, %s146
    %p150 = pneg %p144
    %p151 = scmp.eq.s32.totalorder %s11, 1
    %p152 = por %p150, %p151
    %p153 = scmp.ne.s32.totalorder %s145, %s148
    %p154 = scmp.eq.s32.totalorder %s11, 0
    %p155 = por %p153, %p154
    %p156 = scmp.ne.s32.totalorder %s145, %s148
    %p157 = scmp.eq.s32.totalorder %s16, 1
    %p158 = por %p156, %p157
    %p159 = scmp.ne.s32.totalorder %s148, %s149
    %p160 = scmp.eq.s32.totalorder %s16, 0
    %p161 = por %p159, %p160
    %p162 = scmp.ne.s32.totalorder %s148, %s149
    %p163 = scmp.eq.s32.totalorder %s17, 1
    %p164 = por %p162, %p163
    %p166 = scmp.ne.s32.totalorder %s149, %s165
    %p167 = scmp.eq.s32.totalorder %s17, 0
    %p168 = por %p166, %p167
    %p169 = scmp.le.s32.totalorder 1, %s11
    %p170 = scmp.lt.s32.totalorder %s11, 3
    %p171 = pnand %p169, %p170
    %p172 = pneg %p171
    // Predicated region
    $region9: #{_lambda_.5} parent=5 // pred_check
      _
    $region10: #{_lambda_.5} parent=5 // pred_check_branch
      %174 = sbr.rel (%p171) target = $region12
    $region11: #{_lambda_.5} parent=5 // pred_region
      %s175 = ssub.s32 %s11, 1
      // Predicated region
      $region13: #{_lambda_.5} parent=11 // pred_check
        %p176 = pneg %p70
      $region14: #{_lambda_.5} parent=11 // pred_check_branch
        %178 = sbr.rel (%p176) target = $region16
      $region15: #{_lambda_.5} parent=11 // pred_region
        _
      $region16: #{_lambda_.5} parent=11 // pred_fallthru
        _
      // Predicated region
      $region17: #{_lambda_.5} parent=11 // pred_check
        %p179 = pneg %p91
      $region18: #{_lambda_.5} parent=11 // pred_check_branch
        %181 = sbr.rel (%p179) target = $region20
      $region19: #{_lambda_.5} parent=11 // pred_region
        _
      $region20: #{_lambda_.5} parent=11 // pred_fallthru
        _
      // Predicated region
      $region21: #{_lambda_.5} parent=11 // pred_check
        %p182 = pneg %p112
      $region22: #{_lambda_.5} parent=11 // pred_check_branch
        %184 = sbr.rel (%p182) target = $region24
      $region23: #{_lambda_.5} parent=11 // pred_region
        _
      $region24: #{_lambda_.5} parent=11 // pred_fallthru
        _
      // Predicated region
      $region25: #{_lambda_.5} parent=11 // pred_check
        %p185 = pneg %p133
      $region26: #{_lambda_.5} parent=11 // pred_check_branch
        %187 = sbr.rel (%p185) target = $region28
      $region27: #{_lambda_.5} parent=11 // pred_region
        _
      $region28: #{_lambda_.5} parent=11 // pred_fallthru
        _
    $region12: #{_lambda_.5} parent=5 // pred_fallthru
      _
    %p188 = scmp.lt.s32.totalorder %s11, 2
    // Predicated region
    $region29: #{_lambda_.5} parent=5 // pred_check
      %p189 = pneg %p188
    $region30: #{_lambda_.5} parent=5 // pred_check_branch
      %191 = sbr.rel (%p189) target = $region32
    $region31: #{_lambda_.5} parent=5 // pred_region
      // Predicated region
      $region33: #{_lambda_.5} parent=31 // pred_check
        %p192 = pneg %p43
      $region34: #{_lambda_.5} parent=31 // pred_check_branch
        %194 = sbr.rel (%p192) target = $region36
      $region35: #{_lambda_.5} parent=31 // pred_region
        %p195 = scmp.lt.s32.totalorder %s18, 1
        %s196 = scalar_select %p195, %s18, 1
        %s197 = smul.addr %s196, 4
        %s198 = smul.addr %s197, 4
        %s199 = scalar_lea.vmem %s0, %s198
      $region36: #{_lambda_.5} parent=31 // pred_fallthru
        _
    $region32: #{_lambda_.5} parent=5 // pred_fallthru
      _
    %p200 = scmp.le.s32.totalorder 1, %s11
    %p201 = scmp.lt.s32.totalorder %s11, 3
    %p202 = pnand %p200, %p201
    %p203 = pneg %p202
    // Predicated region
    $region37: #{_lambda_.5} parent=5 // pred_check
      _
    $region38: #{_lambda_.5} parent=5 // pred_check_branch
      %205 = sbr.rel (%p202) target = $region40
    $region39: #{_lambda_.5} parent=5 // pred_region
      %s206 = ssub.s32 %s11, 1
      %p207 = scmp.lt.s32.totalorder %s20, 1
      %s208 = scalar_select %p207, %s20, 1
      %s209 = smul.addr %s208, 4
      %s210 = smul.addr %s209, 4
      %s211 = scalar_lea.vmem %s0, %s210
      %p212 = pneg %p49
      %p213 = pneg %p46
      %p214 = pneg %p70
      %p215 = pneg %p67
      %p216 = pneg %p91
      %p217 = pneg %p88
      %p218 = pneg %p112
      %p219 = pneg %p109
      %p220 = pneg %p133
      %p221 = pneg %p130
      %p222 = pneg %p161
      %p223 = pneg %p158
      %p224 = scmp.lt.s32.totalorder %s20, 1
      %s225 = scalar_select %p224, %s20, 1
      %p226 = scmp.lt.s32.totalorder %s21, 0
      %s227 = scalar_select %p226, %s21, 0
      %s228 = smul.addr %s225, 2
      %s229 = sadd.s32 %s227, %s228
      %s230 = smul.addr %s229, 4
      %s231 = scalar_lea.vmem %s5, %s230
      %p232 = scmp.lt.s32.totalorder %s20, 1
      %s233 = scalar_select %p232, %s20, 1
      %s234 = smul.addr %s233, 4
      %s235 = smul.addr %s234, 4
      %s236 = scalar_lea.vmem %s0, %s235
      %p237 = scmp.lt.s32.totalorder %s20, 1
      %s238 = scalar_select %p237, %s20, 1
      %p239 = scmp.lt.s32.totalorder %s21, 0
      %s240 = scalar_select %p239, %s21, 0
      %s241 = smul.addr %s238, 2
      %s242 = sadd.s32 %s240, %s241
      %s243 = smul.addr %s242, 4
      %s244 = scalar_lea.vmem %s5, %s243
      %v246 = vld [vmem:[%s236] sm:$0xf]
      %vm247 = vcmask 191488
      %248 = vst.msk [vmem:[#allocation2] sm:$0xf] %vm247, %v246
      %v249 = vld [vmem:[%s236 + $0x4] sm:$0xf]
      %250 = vst.msk [vmem:[#allocation2 + $0x4] sm:$0xf] %vm247, %v249
      %v251 = vld [vmem:[%s236] sm:$0xf]
      %253 = vrot.lane.b32.xlu0 %v251, 127
      %v254 = vpop.permute.xlu0 %253
      %256 = vst.msk [vmem:[#allocation2 + $0x8] sm:$0xf] %vm247, %v254
      %v257 = vld [vmem:[%s236 + $0x8] sm:$0xf]
      %258 = vst.msk [vmem:[#allocation2 + $0xc] sm:$0xf] %vm247, %v257
      %v259 = vld [vmem:[%s236 + $0xc] sm:$0xf]
      %260 = vst.msk [vmem:[#allocation2 + $0x10] sm:$0xf] %vm247, %v259
      %v261 = vld [vmem:[%s236 + $0x8] sm:$0xf]
      %263 = vrot.lane.b32.xlu0 %v261, 127
      %v264 = vpop.permute.xlu0 %263
      %266 = vst.msk [vmem:[#allocation2 + $0x14] sm:$0xf] %vm247, %v264
      %v267 = vld [vmem:[%s236] sm:$0xf]
      %269 = vrot.lane.b32.xlu0 %v267, 122
      %v270 = vpop.permute.xlu0 %269
      %272 = vst.msk [vmem:[#allocation2 + $0x18] sm:$0xf] %vm247, %v270
      %v273 = vld [vmem:[%s236 + $0x4] sm:$0xf]
      %275 = vrot.lane.b32.xlu0 %v273, 122
      %v276 = vpop.permute.xlu0 %275
      %278 = vst.msk [vmem:[#allocation2 + $0x1c] sm:$0xf] %vm247, %v276
      %v279 = vld [vmem:[%s236] sm:$0xf]
      %281 = vrot.lane.b32.xlu0 %v279, 121
      %v282 = vpop.permute.xlu0 %281
      %284 = vst.msk [vmem:[#allocation2 + $0x20] sm:$0xf] %vm247, %v282
      %v285 = vld [vmem:[%s1] sm:$0xf]
      %v286 = vld [vmem:[%s1 + $0x4] sm:$0xf]
      %v287 = vld [vmem:[#allocation2] sm:$0xf]
      %v288 = vld [vmem:[#allocation2 + $0x4] sm:$0xf]
      %v289 = vld [vmem:[#allocation2 + $0x8] sm:$0xf]
      %v290 = vld [vmem:[#allocation2 + $0xc] sm:$0xf]
      %v291 = vld [vmem:[#allocation2 + $0x10] sm:$0xf]
      %v292 = vld [vmem:[#allocation2 + $0x14] sm:$0xf]
      %v293 = vld [vmem:[#allocation2 + $0x18] sm:$0xf]
      %v294 = vld [vmem:[#allocation2 + $0x1c] sm:$0xf]
      %v295 = vld [vmem:[#allocation2 + $0x20] sm:$0xf]
      %v296 = vld [vmem:[%s2] sm:$0xff]
      %v297 = vld [vmem:[%s2 + $0x8] sm:$0xff]
      %299 = vset.pattern.permute.xlu0 0
      %300 = vperm.xlu0 %299, %v296
      %v301 = vpop.permute.xlu0 %300
      %304 = vset.pattern.permute.xlu0 0
      %305 = vperm.xlu0 %304, %v297
      %v306 = vpop.permute.xlu0 %305
      %v310 = vunpack.c.l.b16 %v285
      %v311 = vunpack.c.l.b16 %v286
      %v312 = vpack.c.b16 %v311, %v310
      %v322 = vunpack.c.l.b16 %v287
      %v323 = vunpack.c.l.b16 %v288
      %v324 = vunpack.c.l.b16 %v289
      %v325 = vunpack.c.l.b16 %v290
      %v326 = vunpack.c.l.b16 %v291
      %v327 = vunpack.c.l.b16 %v292
      %v328 = vunpack.c.l.b16 %v293
      %v329 = vunpack.c.l.b16 %v294
      %v330 = vunpack.c.l.b16 %v295
      %v331 = vpack.c.b16 %v323, %v322
      %v332 = vpack.c.b16 %v325, %v324
      %v333 = vpack.c.b16 %v327, %v326
      %v334 = vpack.c.b16 %v329, %v328
      %v335 = vpack.c.b16 %v330, %v330
      %vm340 = vcmask 588800
      %v342 = vsel %vm340, %v312, 0
      %vm344 = vcmask 1043456
      %v346 = vsel %vm344, %v335, 0
      %348 = vmatpush.bf16.msra.mxu0 0
      %349 = vmatpush.bf16.msra.mxu0 0
      %350 = vmatpush.bf16.msra.mxu0 0
      %351 = vmatpush.bf16.msra.mxu0 %v346
      %352 = vmatpush.bf16.msra.mxu0 %v334
      %353 = vmatpush.bf16.msra.mxu0 %v333
      %354 = vmatpush.bf16.msra.mxu0 %v332
      %355 = vmatpush.bf16.msra.mxu0 %v331
      %356 = vmatmul.bf16.gmra.mxu0 %v342
      %v357 = vpop.f32.mrf.mxu0
      %v358 = vadd.f32 %v301, %v357
      %v359 = vpop.f32.mrf.mxu0
      %v360 = vadd.f32 %v306, %v359
      %361 = vdwg.mxu0
      %v362 = vmax.f32 %v358, 0.0
      %v363 = vmax.f32 %v360, 0.0
      %v364 = vld [vmem:[%s3] sm:$0xf]
      %v365 = vld [vmem:[%s3 + $0x4] sm:$0xf]
      %v366 = vpack.c.bf16 %v363, %v362
      %v367 = vld [vmem:[%s4] sm:$0xff]
      %v368 = vld [vmem:[%s4 + $0x8] sm:$0xff]
      %370 = vset.pattern.permute.xlu0 0
      %371 = vperm.xlu0 %370, %v367
      %v372 = vpop.permute.xlu0 %371
      %375 = vset.pattern.permute.xlu0 0
      %376 = vperm.xlu0 %375, %v368
      %v377 = vpop.permute.xlu0 %376
      %v381 = vunpack.c.l.b16 %v364
      %v382 = vunpack.c.l.b16 %v365
      %v383 = vpack.c.b16 %v382, %v381
      %vm384 = vcmask 130048
      %v386 = vsel %vm384, %v383, 0
      %388 = vmatpush.bf16.msra.mxu0 0
      %389 = vmatpush.bf16.msra.mxu0 0
      %390 = vmatpush.bf16.msra.mxu0 0
      %391 = vmatpush.bf16.msra.mxu0 0
      %392 = vmatpush.bf16.msra.mxu0 0
      %393 = vmatpush.bf16.msra.mxu0 0
      %394 = vmatpush.bf16.msra.mxu0 0
      %395 = vmatpush.bf16.msra.mxu0 %v366
      %396 = vmatmul.bf16.gmra.mxu0 %v386
      %v397 = vpop.f32.mrf.mxu0
      %v398 = vadd.f32 %v372, %v397
      %v399 = vpop.f32.mrf.mxu0
      %v400 = vadd.f32 %v377, %v399
      %401 = vdwg.mxu0
      %v402 = vmax.f32 %v398, 0.0
      %v403 = vmax.f32 %v400, 0.0
      %v404 = vpack.c.bf16 %v402, %v402
      %v405 = vpack.c.bf16 %v403, %v403
      %406 = vst.msk [vmem:[%s244] sm:$0xf] %vm247, %v404
      %407 = vst.msk [vmem:[%s244 + $0x4] sm:$0xf] %vm247, %v405
      %p408 = scmp.lt.s32.totalorder %s20, 1
      %s409 = scalar_select %p408, %s20, 1
      %p410 = scmp.lt.s32.totalorder %s21, 0
      %s411 = scalar_select %p410, %s21, 0
      %s412 = smul.addr %s409, 2
      %s413 = sadd.s32 %s411, %s412
      %s414 = smul.addr %s413, 4
      %s415 = scalar_lea.vmem %s5, %s414
      // Predicated region
      $region41: #{_lambda_.5} parent=39 // pred_check
        %p416 = pneg %p158
      $region42: #{_lambda_.5} parent=39 // pred_check_branch
        %418 = sbr.rel (%p416) target = $region44
      $region43: #{_lambda_.5} parent=39 // pred_region
        _
      $region44: #{_lambda_.5} parent=39 // pred_fallthru
        _
    $region40: #{_lambda_.5} parent=5 // pred_fallthru
      _
    %p419 = scmp.le.s32.totalorder 2, %s11
    // Predicated region
    $region45: #{_lambda_.5} parent=5 // pred_check
      %p420 = pneg %p419
    $region46: #{_lambda_.5} parent=5 // pred_check_branch
      %422 = sbr.rel (%p420) target = $region48
    $region47: #{_lambda_.5} parent=5 // pred_region
      %s423 = ssub.s32 %s11, 2
      // Predicated region
      $region49: #{_lambda_.5} parent=47 // pred_check
        %p424 = pneg %p164
      $region50: #{_lambda_.5} parent=47 // pred_check_branch
        %426 = sbr.rel (%p424) target = $region52
      $region51: #{_lambda_.5} parent=47 // pred_region
        %p427 = scmp.lt.s32.totalorder %s22, 1
        %s428 = scalar_select %p427, %s22, 1
        %p429 = scmp.lt.s32.totalorder %s23, 0
        %s430 = scalar_select %p429, %s23, 0
        %s431 = smul.addr %s428, 2
        %s432 = sadd.s32 %s430, %s431
        %s433 = smul.addr %s432, 4
        %s434 = scalar_lea.vmem %s5, %s433
      $region52: #{_lambda_.5} parent=47 // pred_fallthru
        _
    $region48: #{_lambda_.5} parent=5 // pred_fallthru
      _
  $region6: #{_lambda_.5} parent=0 // loop_footer
    %s15 = sadd.s32 1, %s11
  $region7: #{_lambda_.5} parent=0 // loop_footer_branch
    %10 = sbr.rel target = $region3
  $region8: #{_lambda_.5} parent=0 // loop_exit
    _

// kernel: _lambda_.6
$region0: #{_lambda_.6}
  #allocation0 [shape = 'u32[]', space=smem, size = 0x4, offset = 0x4, fixed_abs, tag = 'smem constant byte address 0x4 - core index']
  #allocation1 [shape = 'u32[72,128]{1,0:T(1,128)}', space=vmem, size = 0x9000, scoped, tag = 'internal scratch']
  #allocation2 [shape = 'bf16[272,24]{1,0:T(8,128)(2,1)}', space=vmem, size = 0x11000, scoped, tag = 'scratch operand']
  %s0 = inlined_call_operand.vmem [shape: bf16[2,16,42], index: 0, kind: input, shape index: {}]
  %s1 = inlined_call_operand.vmem [shape: bf16[2,32,36], index: 1, kind: input, shape index: {}]
  %s2 = inlined_call_operand.vmem [shape: bf16[32,272], index: 2, kind: input, shape index: {}]
  %s3 = inlined_call_operand.vmem [shape: f32[32,1], index: 3, kind: input, shape index: {}]
  %s4 = inlined_call_operand.vmem [shape: bf16[2,32,24], index: 4, kind: output, shape index: {}]
  %s5 = sld [smem:[#allocation0]]
  $region49: #{_lambda_.6} parent=0
    _
  %s7 = ssub.s32 1, %s5
  %s8 = scalar_select 0, %s7, %s5
  loop: start=0, step=1, limit=4
  $region2: #{_lambda_.6} parent=0 // loop_pre_header
    _
  $region3: #{_lambda_.6} parent=0 // loop_header
    %s10 = sphi 0, %s14
    %p11 = scmp.ge.s32.totalorder %s10, 4
    %s17 = sphi 0, %s29
    %s18 = sphi 0, %s25
    %s19 = sphi 0, %s17
    %s20 = sphi 0, %s18
    %s21 = sphi 0, %s19
    %s22 = sphi 0, %s20
    %s32 = sphi 0, %s34
    %s35 = sphi 0, %s32
    %s36 = sphi 0, %s35
    %s52 = sphi 0, %s36
    %s58 = sphi 0, %s60
    %s61 = sphi 0, %s58
    %s62 = sphi 0, %s61
    %s78 = sphi 0, %s62
    %s82 = sphi 0, %s82
    %s84 = sphi 0, %s82
    %s85 = sphi 0, %s84
    %s99 = sphi 0, %s85
    %s103 = sphi 0, %s103
    %s105 = sphi 0, %s103
    %s106 = sphi 0, %s105
    %s120 = sphi 0, %s106
    %s128 = sphi 0, %s130
    %s131 = sphi 0, %s128
    %s132 = sphi 0, %s131
    %s148 = sphi 0, %s132
  $region4: #{_lambda_.6} parent=0 // loop_header_branch
    %13 = sbr.rel (%p11) target = $region8
  $region5: #{_lambda_.6} parent=0 // loop_body
    %s15 = ssub.s32 %s10, 1
    %s16 = ssub.s32 %s10, 2
    %s23 = sadd.s32 1, %s18
    %p24 = scmp.ge.s32.totalorder %s23, 1
    %s25 = scalar_select %p24, 0, %s23
    %s26 = sadd.s32 1, %s17
    %s27 = scalar_select %p24, %s26, %s17
    %p28 = scmp.ge.s32.totalorder %s27, 2
    %s29 = scalar_select %p28, 0, %s27
    %s30 = ssub.s32 %s17, %s29
    %p31 = scmp.eq.s32.totalorder %s30, 0
    %s33 = sadd.s32 %s32, 1
    %s34 = scalar_select %p31, %s32, %s33
    %p37 = pneg %p31
    %p38 = scmp.eq.s32.totalorder %s10, 1
    %p39 = por %p37, %p38
    %p40 = scmp.ne.s32.totalorder %s32, %s35
    %p41 = scmp.eq.s32.totalorder %s10, 0
    %p42 = por %p40, %p41
    %p43 = scmp.ne.s32.totalorder %s32, %s35
    %p44 = scmp.eq.s32.totalorder %s15, 1
    %p45 = por %p43, %p44
    %p46 = scmp.ne.s32.totalorder %s35, %s36
    %p47 = scmp.eq.s32.totalorder %s15, 0
    %p48 = por %p46, %p47
    %p49 = scmp.ne.s32.totalorder %s35, %s36
    %p50 = scmp.eq.s32.totalorder %s16, 1
    %p51 = por %p49, %p50
    %p53 = scmp.ne.s32.totalorder %s36, %s52
    %p54 = scmp.eq.s32.totalorder %s16, 0
    %p55 = por %p53, %p54
    %s56 = ssub.s32 %s17, %s29
    %p57 = scmp.eq.s32.totalorder %s56, 0
    %s59 = sadd.s32 %s58, 1
    %s60 = scalar_select %p57, %s58, %s59
    %p63 = pneg %p57
    %p64 = scmp.eq.s32.totalorder %s10, 1
    %p65 = por %p63, %p64
    %p66 = scmp.ne.s32.totalorder %s58, %s61
    %p67 = scmp.eq.s32.totalorder %s10, 0
    %p68 = por %p66, %p67
    %p69 = scmp.ne.s32.totalorder %s58, %s61
    %p70 = scmp.eq.s32.totalorder %s15, 1
    %p71 = por %p69, %p70
    %p72 = scmp.ne.s32.totalorder %s61, %s62
    %p73 = scmp.eq.s32.totalorder %s15, 0
    %p74 = por %p72, %p73
    %p75 = scmp.ne.s32.totalorder %s61, %s62
    %p76 = scmp.eq.s32.totalorder %s16, 1
    %p77 = por %p75, %p76
    %p79 = scmp.ne.s32.totalorder %s62, %s78
    %p80 = scmp.eq.s32.totalorder %s16, 0
    %p81 = por %p79, %p80
    %s83 = sadd.s32 %s82, 1
    %p86 = scmp.eq.s32.totalorder %s10, 1
    %p87 = scmp.ne.s32.totalorder %s82, %s84
    %p88 = scmp.eq.s32.totalorder %s10, 0
    %p89 = por %p87, %p88
    %p90 = scmp.ne.s32.totalorder %s82, %s84
    %p91 = scmp.eq.s32.totalorder %s15, 1
    %p92 = por %p90, %p91
    %p93 = scmp.ne.s32.totalorder %s84, %s85
    %p94 = scmp.eq.s32.totalorder %s15, 0
    %p95 = por %p93, %p94
    %p96 = scmp.ne.s32.totalorder %s84, %s85
    %p97 = scmp.eq.s32.totalorder %s16, 1
    %p98 = por %p96, %p97
    %p100 = scmp.ne.s32.totalorder %s85, %s99
    %p101 = scmp.eq.s32.totalorder %s16, 0
    %p102 = por %p100, %p101
    %s104 = sadd.s32 %s103, 1
    %p107 = scmp.eq.s32.totalorder %s10, 1
    %p108 = scmp.ne.s32.totalorder %s103, %s105
    %p109 = scmp.eq.s32.totalorder %s10, 0
    %p110 = por %p108, %p109
    %p111 = scmp.ne.s32.totalorder %s103, %s105
    %p112 = scmp.eq.s32.totalorder %s15, 1
    %p113 = por %p111, %p112
    %p114 = scmp.ne.s32.totalorder %s105, %s106
    %p115 = scmp.eq.s32.totalorder %s15, 0
    %p116 = por %p114, %p115
    %p117 = scmp.ne.s32.totalorder %s105, %s106
    %p118 = scmp.eq.s32.totalorder %s16, 1
    %p119 = por %p117, %p118
    %p121 = scmp.ne.s32.totalorder %s106, %s120
    %p122 = scmp.eq.s32.totalorder %s16, 0
    %p123 = por %p121, %p122
    %s124 = ssub.s32 %s17, %s29
    %s125 = ssub.s32 %s18, %s25
    %s126 = sor.u32 %s124, %s125
    %p127 = scmp.eq.s32.totalorder %s126, 0
    %s129 = sadd.s32 %s128, 1
    %s130 = scalar_select %p127, %s128, %s129
    %p133 = pneg %p127
    %p134 = scmp.eq.s32.totalorder %s10, 1
    %p135 = por %p133, %p134
    %p136 = scmp.ne.s32.totalorder %s128, %s131
    %p137 = scmp.eq.s32.totalorder %s10, 0
    %p138 = por %p136, %p137
    %p139 = scmp.ne.s32.totalorder %s128, %s131
    %p140 = scmp.eq.s32.totalorder %s15, 1
    %p141 = por %p139, %p140
    %p142 = scmp.ne.s32.totalorder %s131, %s132
    %p143 = scmp.eq.s32.totalorder %s15, 0
    %p144 = por %p142, %p143
    %p145 = scmp.ne.s32.totalorder %s131, %s132
    %p146 = scmp.eq.s32.totalorder %s16, 1
    %p147 = por %p145, %p146
    %p149 = scmp.ne.s32.totalorder %s132, %s148
    %p150 = scmp.eq.s32.totalorder %s16, 0
    %p151 = por %p149, %p150
    %p152 = scmp.le.s32.totalorder 1, %s10
    %p153 = scmp.lt.s32.totalorder %s10, 3
    %p154 = pnand %p152, %p153
    %p155 = pneg %p154
    // Predicated region
    $region9: #{_lambda_.6} parent=5 // pred_check
      _
    $region10: #{_lambda_.6} parent=5 // pred_check_branch
      %157 = sbr.rel (%p154) target = $region12
    $region11: #{_lambda_.6} parent=5 // pred_region
      %s158 = ssub.s32 %s10, 1
      // Predicated region
      $region13: #{_lambda_.6} parent=11 // pred_check
        %p159 = pneg %p95
      $region14: #{_lambda_.6} parent=11 // pred_check_branch
        %161 = sbr.rel (%p159) target = $region16
      $region15: #{_lambda_.6} parent=11 // pred_region
        _
      $region16: #{_lambda_.6} parent=11 // pred_fallthru
        _
      // Predicated region
      $region17: #{_lambda_.6} parent=11 // pred_check
        %p162 = pneg %p116
      $region18: #{_lambda_.6} parent=11 // pred_check_branch
        %164 = sbr.rel (%p162) target = $region20
      $region19: #{_lambda_.6} parent=11 // pred_region
        _
      $region20: #{_lambda_.6} parent=11 // pred_fallthru
        _
    $region12: #{_lambda_.6} parent=5 // pred_fallthru
      _
    %p165 = scmp.lt.s32.totalorder %s10, 2
    // Predicated region
    $region21: #{_lambda_.6} parent=5 // pred_check
      %p166 = pneg %p165
    $region22: #{_lambda_.6} parent=5 // pred_check_branch
      %168 = sbr.rel (%p166) target = $region24
    $region23: #{_lambda_.6} parent=5 // pred_region
      // Predicated region
      $region25: #{_lambda_.6} parent=23 // pred_check
        %p169 = pneg %p42
      $region26: #{_lambda_.6} parent=23 // pred_check_branch
        %171 = sbr.rel (%p169) target = $region28
      $region27: #{_lambda_.6} parent=23 // pred_region
        %p172 = scmp.lt.s32.totalorder %s17, 1
        %s173 = scalar_select %p172, %s17, 1
        %s174 = smul.addr %s173, 2
        %s175 = smul.addr %s174, 4
        %s176 = scalar_lea.vmem %s0, %s175
      $region28: #{_lambda_.6} parent=23 // pred_fallthru
        _
      // Predicated region
      $region29: #{_lambda_.6} parent=23 // pred_check
        %p177 = pneg %p68
      $region30: #{_lambda_.6} parent=23 // pred_check_branch
        %179 = sbr.rel (%p177) target = $region32
      $region31: #{_lambda_.6} parent=23 // pred_region
        %p180 = scmp.lt.s32.totalorder %s17, 1
        %s181 = scalar_select %p180, %s17, 1
        %s182 = smul.addr %s181, 4
        %s183 = smul.addr %s182, 4
        %s184 = scalar_lea.vmem %s1, %s183
      $region32: #{_lambda_.6} parent=23 // pred_fallthru
        _
    $region24: #{_lambda_.6} parent=5 // pred_fallthru
      _
    %p185 = scmp.le.s32.totalorder 1, %s10
    %p186 = scmp.lt.s32.totalorder %s10, 3
    %p187 = pnand %p185, %p186
    %p188 = pneg %p187
    // Predicated region
    $region33: #{_lambda_.6} parent=5 // pred_check
      _
    $region34: #{_lambda_.6} parent=5 // pred_check_branch
      %190 = sbr.rel (%p187) target = $region36
    $region35: #{_lambda_.6} parent=5 // pred_region
      %s191 = ssub.s32 %s10, 1
      %p192 = scmp.lt.s32.totalorder %s19, 1
      %s193 = scalar_select %p192, %s19, 1
      %s194 = smul.addr %s193, 2
      %s195 = smul.addr %s194, 4
      %s196 = scalar_lea.vmem %s0, %s195
      %p197 = pneg %p48
      %p198 = pneg %p45
      %p199 = scmp.lt.s32.totalorder %s19, 1
      %s200 = scalar_select %p199, %s19, 1
      %s201 = smul.addr %s200, 4
      %s202 = smul.addr %s201, 4
      %s203 = scalar_lea.vmem %s1, %s202
      %p204 = pneg %p74
      %p205 = pneg %p71
      %p206 = pneg %p95
      %p207 = pneg %p92
      %p208 = pneg %p116
      %p209 = pneg %p113
      %p210 = pneg %p144
      %p211 = pneg %p141
      %p212 = scmp.lt.s32.totalorder %s19, 1
      %s213 = scalar_select %p212, %s19, 1
      %p214 = scmp.lt.s32.totalorder %s20, 0
      %s215 = scalar_select %p214, %s20, 0
      %s216 = smul.addr %s213, 4
      %s217 = sadd.s32 %s215, %s216
      %s218 = smul.addr %s217, 4
      %s219 = scalar_lea.vmem %s4, %s218
      %p220 = scmp.lt.s32.totalorder %s19, 1
      %s221 = scalar_select %p220, %s19, 1
      %s222 = smul.addr %s221, 2
      %s223 = smul.addr %s222, 4
      %s224 = scalar_lea.vmem %s0, %s223
      %p225 = scmp.lt.s32.totalorder %s19, 1
      %s226 = scalar_select %p225, %s19, 1
      %s227 = smul.addr %s226, 4
      %s228 = smul.addr %s227, 4
      %s229 = scalar_lea.vmem %s1, %s228
      %p230 = scmp.lt.s32.totalorder %s19, 1
      %s231 = scalar_select %p230, %s19, 1
      %p232 = scmp.lt.s32.totalorder %s20, 0
      %s233 = scalar_select %p232, %s20, 0
      %s234 = smul.addr %s231, 4
      %s235 = sadd.s32 %s233, %s234
      %s236 = smul.addr %s235, 4
      %s237 = scalar_lea.vmem %s4, %s236
      %v239 = vld [vmem:[%s224] sm:$0xf]
      %v240 = vld [vmem:[%s224 + $0x4] sm:$0xf]
      %vm241 = vcmask 191488
      %242 = vst.msk [vmem:[#allocation2] sm:$0xf] %vm241, %v239
      %243 = vst.msk [vmem:[#allocation2 + $0x4] sm:$0xf] %vm241, %v240
      %v244 = vld [vmem:[%s224] sm:$0xf]
      %v245 = vld [vmem:[%s224 + $0x4] sm:$0xf]
      %248 = vrot.lane.b32.xlu0 %v244, 127
      %v249 = vpop.permute.xlu0 %248
      %250 = vrot.lane.b32.xlu0 %v245, 127
      %v251 = vpop.permute.xlu0 %250
      %254 = vst.msk [vmem:[#allocation2 + $0x8] sm:$0xf] %vm241, %v249
      %255 = vst.msk [vmem:[#allocation2 + $0xc] sm:$0xf] %vm241, %v251
      %v256 = vld [vmem:[%s224] sm:$0xf]
      %v257 = vld [vmem:[%s224 + $0x4] sm:$0xf]
      %260 = vrot.lane.b32.xlu0 %v256, 126
      %v261 = vpop.permute.xlu0 %260
      %262 = vrot.lane.b32.xlu0 %v257, 126
      %v263 = vpop.permute.xlu0 %262
      %266 = vst.msk [vmem:[#allocation2 + $0x10] sm:$0xf] %vm241, %v261
      %267 = vst.msk [vmem:[#allocation2 + $0x14] sm:$0xf] %vm241, %v263
      %v268 = vld [vmem:[%s224] sm:$0xf]
      %v269 = vld [vmem:[%s224 + $0x4] sm:$0xf]
      %272 = vrot.lane.b32.xlu0 %v268, 122
      %v273 = vpop.permute.xlu0 %272
      %274 = vrot.lane.b32.xlu0 %v269, 122
      %v275 = vpop.permute.xlu0 %274
      %278 = vst.msk [vmem:[#allocation2 + $0x18] sm:$0xf] %vm241, %v273
      %279 = vst.msk [vmem:[#allocation2 + $0x1c] sm:$0xf] %vm241, %v275
      %v280 = vld [vmem:[%s224] sm:$0xf]
      %v281 = vld [vmem:[%s224 + $0x4] sm:$0xf]
      %284 = vrot.lane.b32.xlu0 %v280, 121
      %v285 = vpop.permute.xlu0 %284
      %286 = vrot.lane.b32.xlu0 %v281, 121
      %v287 = vpop.permute.xlu0 %286
      %290 = vst.msk [vmem:[#allocation2 + $0x20] sm:$0xf] %vm241, %v285
      %291 = vst.msk [vmem:[#allocation2 + $0x24] sm:$0xf] %vm241, %v287
      %v292 = vld [vmem:[%s224] sm:$0xf]
      %v293 = vld [vmem:[%s224 + $0x4] sm:$0xf]
      %296 = vrot.lane.b32.xlu0 %v292, 120
      %v297 = vpop.permute.xlu0 %296
      %298 = vrot.lane.b32.xlu0 %v293, 120
      %v299 = vpop.permute.xlu0 %298
      %302 = vst.msk [vmem:[#allocation2 + $0x28] sm:$0xf] %vm241, %v297
      %303 = vst.msk [vmem:[#allocation2 + $0x2c] sm:$0xf] %vm241, %v299
      %v304 = vld [vmem:[%s224] sm:$0xf]
      %v305 = vld [vmem:[%s224 + $0x4] sm:$0xf]
      %308 = vrot.lane.b32.xlu0 %v304, 116
      %v309 = vpop.permute.xlu0 %308
      %310 = vrot.lane.b32.xlu0 %v305, 116
      %v311 = vpop.permute.xlu0 %310
      %314 = vst.msk [vmem:[#allocation2 + $0x30] sm:$0xf] %vm241, %v309
      %315 = vst.msk [vmem:[#allocation2 + $0x34] sm:$0xf] %vm241, %v311
      %v316 = vld [vmem:[%s224] sm:$0xf]
      %v317 = vld [vmem:[%s224 + $0x4] sm:$0xf]
      %320 = vrot.lane.b32.xlu0 %v316, 115
      %v321 = vpop.permute.xlu0 %320
      %322 = vrot.lane.b32.xlu0 %v317, 115
      %v323 = vpop.permute.xlu0 %322
      %326 = vst.msk [vmem:[#allocation2 + $0x38] sm:$0xf] %vm241, %v321
      %327 = vst.msk [vmem:[#allocation2 + $0x3c] sm:$0xf] %vm241, %v323
      %v328 = vld [vmem:[%s224] sm:$0xf]
      %v329 = vld [vmem:[%s224 + $0x4] sm:$0xf]
      %332 = vrot.lane.b32.xlu0 %v328, 114
      %v333 = vpop.permute.xlu0 %332
      %334 = vrot.lane.b32.xlu0 %v329, 114
      %v335 = vpop.permute.xlu0 %334
      %338 = vst.msk [vmem:[#allocation2 + $0x40] sm:$0xf] %vm241, %v333
      %339 = vst.msk [vmem:[#allocation2 + $0x44] sm:$0xf] %vm241, %v335
      %v340 = vld [vmem:[%s229] sm:$0xf]
      %341 = vst.msk [vmem:[#allocation2 + $0x48] sm:$0xf] %vm241, %v340
      %v342 = vld [vmem:[%s229] sm:$0xf]
      %344 = vrot.lane.b32.xlu0 %v342, 127
      %v345 = vpop.permute.xlu0 %344
      %347 = vst.msk [vmem:[#allocation2 + $0x4c] sm:$0xf] %vm241, %v345
      %v348 = vld [vmem:[%s229] sm:$0xf]
      %350 = vrot.lane.b32.xlu0 %v348, 122
      %v351 = vpop.permute.xlu0 %350
      %353 = vst.msk [vmem:[#allocation2 + $0x50] sm:$0xf] %vm241, %v351
      %v354 = vld [vmem:[%s229] sm:$0xf]
      %356 = vrot.lane.b32.xlu0 %v354, 121
      %v357 = vpop.permute.xlu0 %356
      %359 = vst.msk [vmem:[#allocation2 + $0x54] sm:$0xf] %vm241, %v357
      %v360 = vld [vmem:[%s229 + $0x4] sm:$0xf]
      %361 = vst.msk [vmem:[#allocation2 + $0x58] sm:$0xf] %vm241, %v360
      %v362 = vld [vmem:[%s229 + $0x4] sm:$0xf]
      %364 = vrot.lane.b32.xlu0 %v362, 127
      %v365 = vpop.permute.xlu0 %364
      %367 = vst.msk [vmem:[#allocation2 + $0x5c] sm:$0xf] %vm241, %v365
      %v368 = vld [vmem:[%s229 + $0x4] sm:$0xf]
      %370 = vrot.lane.b32.xlu0 %v368, 122
      %v371 = vpop.permute.xlu0 %370
      %373 = vst.msk [vmem:[#allocation2 + $0x60] sm:$0xf] %vm241, %v371
      %v374 = vld [vmem:[%s229 + $0x4] sm:$0xf]
      %376 = vrot.lane.b32.xlu0 %v374, 121
      %v377 = vpop.permute.xlu0 %376
      %379 = vst.msk [vmem:[#allocation2 + $0x64] sm:$0xf] %vm241, %v377
      %v380 = vld [vmem:[%s229 + $0x8] sm:$0xf]
      %381 = vst.msk [vmem:[#allocation2 + $0x68] sm:$0xf] %vm241, %v380
      %v382 = vld [vmem:[%s229 + $0x8] sm:$0xf]
      %384 = vrot.lane.b32.xlu0 %v382, 127
      %v385 = vpop.permute.xlu0 %384
      %387 = vst.msk [vmem:[#allocation2 + $0x6c] sm:$0xf] %vm241, %v385
      %v388 = vld [vmem:[%s229 + $0x8] sm:$0xf]
      %390 = vrot.lane.b32.xlu0 %v388, 122
      %v391 = vpop.permute.xlu0 %390
      %393 = vst.msk [vmem:[#allocation2 + $0x70] sm:$0xf] %vm241, %v391
      %v394 = vld [vmem:[%s229 + $0x8] sm:$0xf]
      %396 = vrot.lane.b32.xlu0 %v394, 121
      %v397 = vpop.permute.xlu0 %396
      %399 = vst.msk [vmem:[#allocation2 + $0x74] sm:$0xf] %vm241, %v397
      %v400 = vld [vmem:[%s229 + $0xc] sm:$0xf]
      %401 = vst.msk [vmem:[#allocation2 + $0x78] sm:$0xf] %vm241, %v400
      %v402 = vld [vmem:[%s229 + $0xc] sm:$0xf]
      %404 = vrot.lane.b32.xlu0 %v402, 127
      %v405 = vpop.permute.xlu0 %404
      %407 = vst.msk [vmem:[#allocation2 + $0x7c] sm:$0xf] %vm241, %v405
      %v408 = vld [vmem:[%s229 + $0xc] sm:$0xf]
      %410 = vrot.lane.b32.xlu0 %v408, 122
      %v411 = vpop.permute.xlu0 %410
      %413 = vst.msk [vmem:[#allocation2 + $0x80] sm:$0xf] %vm241, %v411
      %v414 = vld [vmem:[%s229 + $0xc] sm:$0xf]
      %416 = vrot.lane.b32.xlu0 %v414, 121
      %v417 = vpop.permute.xlu0 %416
      %419 = vst.msk [vmem:[#allocation2 + $0x84] sm:$0xf] %vm241, %v417
      %v420 = vld [vmem:[%s2] sm:$0xff]
      %v421 = vld [vmem:[%s2 + $0x8] sm:$0xf]
      %v422 = vld [vmem:[%s2 + $0xc] sm:$0xff]
      %v423 = vld [vmem:[%s2 + $0x14] sm:$0xf]
      %v424 = vld [vmem:[%s2 + $0x18] sm:$0xff]
      %v425 = vld [vmem:[%s2 + $0x20] sm:$0xf]
      %v426 = vld [vmem:[%s2 + $0x24] sm:$0xff]
      %v427 = vld [vmem:[%s2 + $0x2c] sm:$0xf]
      %v428 = vld [vmem:[#allocation2] sm:$0xf]
      %v429 = vld [vmem:[#allocation2 + $0x4] sm:$0xf]
      %v430 = vld [vmem:[#allocation2 + $0x8] sm:$0xf]
      %v431 = vld [vmem:[#allocation2 + $0xc] sm:$0xf]
      %v432 = vld [vmem:[#allocation2 + $0x10] sm:$0xf]
      %v433 = vld [vmem:[#allocation2 + $0x14] sm:$0xf]
      %v434 = vld [vmem:[#allocation2 + $0x18] sm:$0xf]
      %v435 = vld [vmem:[#allocation2 + $0x1c] sm:$0xf]
      %v436 = vld [vmem:[#allocation2 + $0x20] sm:$0xf]
      %v437 = vld [vmem:[#allocation2 + $0x24] sm:$0xf]
      %v438 = vld [vmem:[#allocation2 + $0x28] sm:$0xf]
      %v439 = vld [vmem:[#allocation2 + $0x2c] sm:$0xf]
      %v440 = vld [vmem:[#allocation2 + $0x30] sm:$0xf]
      %v441 = vld [vmem:[#allocation2 + $0x34] sm:$0xf]
      %v442 = vld [vmem:[#allocation2 + $0x38] sm:$0xf]
      %v443 = vld [vmem:[#allocation2 + $0x3c] sm:$0xf]
      %v444 = vld [vmem:[#allocation2 + $0x40] sm:$0xf]
      %v445 = vld [vmem:[#allocation2 + $0x44] sm:$0xf]
      %v446 = vld [vmem:[#allocation2 + $0x48] sm:$0xf]
      %v447 = vld [vmem:[#allocation2 + $0x4c] sm:$0xf]
      %v448 = vld [vmem:[#allocation2 + $0x50] sm:$0xf]
      %v449 = vld [vmem:[#allocation2 + $0x54] sm:$0xf]
      %v450 = vld [vmem:[#allocation2 + $0x58] sm:$0xf]
      %v451 = vld [vmem:[#allocation2 + $0x5c] sm:$0xf]
      %v452 = vld [vmem:[#allocation2 + $0x60] sm:$0xf]
      %v453 = vld [vmem:[#allocation2 + $0x64] sm:$0xf]
      %v454 = vld [vmem:[#allocation2 + $0x68] sm:$0xf]
      %v455 = vld [vmem:[#allocation2 + $0x6c] sm:$0xf]
      %v456 = vld [vmem:[#allocation2 + $0x70] sm:$0xf]
      %v457 = vld [vmem:[#allocation2 + $0x74] sm:$0xf]
      %v458 = vld [vmem:[#allocation2 + $0x78] sm:$0xf]
      %v459 = vld [vmem:[#allocation2 + $0x7c] sm:$0xf]
      %v460 = vld [vmem:[#allocation2 + $0x80] sm:$0xf]
      %v461 = vld [vmem:[#allocation2 + $0x84] sm:$0xf]
      %v462 = vld [vmem:[%s3] sm:$0xff]
      %v463 = vld [vmem:[%s3 + $0x8] sm:$0xff]
      %v464 = vld [vmem:[%s3 + $0x10] sm:$0xff]
      %v465 = vld [vmem:[%s3 + $0x18] sm:$0xff]
      %467 = vset.pattern.permute.xlu0 0
      %468 = vperm.xlu0 %467, %v462
      %v469 = vpop.permute.xlu0 %468
      %472 = vset.pattern.permute.xlu0 0
      %473 = vperm.xlu0 %472, %v463
      %v474 = vpop.permute.xlu0 %473
      %477 = vset.pattern.permute.xlu0 0
      %478 = vperm.xlu0 %477, %v464
      %v479 = vpop.permute.xlu0 %478
      %482 = vset.pattern.permute.xlu0 0
      %483 = vperm.xlu0 %482, %v465
      %v484 = vpop.permute.xlu0 %483
      %v494 = vunpack.c.l.b16 %v420
      %v495 = vunpack.c.h.b16 %v420
      %v496 = vunpack.c.l.b16 %v421
      %v497 = vunpack.c.l.b16 %v422
      %v498 = vunpack.c.h.b16 %v422
      %v499 = vunpack.c.l.b16 %v423
      %v500 = vunpack.c.l.b16 %v424
      %v501 = vunpack.c.h.b16 %v424
      %v502 = vunpack.c.l.b16 %v425
      %v503 = vunpack.c.l.b16 %v426
      %v504 = vunpack.c.h.b16 %v426
      %v505 = vunpack.c.l.b16 %v427
      %v506 = vpack.c.b16 %v497, %v494
      %v507 = vpack.c.b16 %v498, %v495
      %v508 = vpack.c.b16 %v499, %v496
      %v509 = vpack.c.b16 %v503, %v500
      %v510 = vpack.c.b16 %v504, %v501
      %v511 = vpack.c.b16 %v505, %v502
      %v550 = vunpack.c.l.b16 %v428
      %v551 = vunpack.c.l.b16 %v429
      %v552 = vunpack.c.l.b16 %v430
      %v553 = vunpack.c.l.b16 %v431
      %v554 = vunpack.c.l.b16 %v432
      %v555 = vunpack.c.l.b16 %v433
      %v556 = vunpack.c.l.b16 %v434
      %v557 = vunpack.c.l.b16 %v435
      %v558 = vunpack.c.l.b16 %v436
      %v559 = vunpack.c.l.b16 %v437
      %v560 = vunpack.c.l.b16 %v438
      %v561 = vunpack.c.l.b16 %v439
      %v562 = vunpack.c.l.b16 %v440
      %v563 = vunpack.c.l.b16 %v441
      %v564 = vunpack.c.l.b16 %v442
      %v565 = vunpack.c.l.b16 %v443
      %v566 = vunpack.c.l.b16 %v444
      %v567 = vunpack.c.l.b16 %v445
      %v568 = vunpack.c.l.b16 %v446
      %v569 = vunpack.c.l.b16 %v447
      %v570 = vunpack.c.l.b16 %v448
      %v571 = vunpack.c.l.b16 %v449
      %v572 = vunpack.c.l.b16 %v450
      %v573 = vunpack.c.l.b16 %v451
      %v574 = vunpack.c.l.b16 %v452
      %v575 = vunpack.c.l.b16 %v453
      %v576 = vunpack.c.l.b16 %v454
      %v577 = vunpack.c.l.b16 %v455
      %v578 = vunpack.c.l.b16 %v456
      %v579 = vunpack.c.l.b16 %v457
      %v580 = vunpack.c.l.b16 %v458
      %v581 = vunpack.c.l.b16 %v459
      %v582 = vunpack.c.l.b16 %v460
      %v583 = vunpack.c.l.b16 %v461
      %v584 = vpack.c.b16 %v551, %v550
      %v585 = vpack.c.b16 %v553, %v552
      %v586 = vpack.c.b16 %v555, %v554
      %v587 = vpack.c.b16 %v557, %v556
      %v588 = vpack.c.b16 %v559, %v558
      %v589 = vpack.c.b16 %v561, %v560
      %v590 = vpack.c.b16 %v563, %v562
      %v591 = vpack.c.b16 %v565, %v564
      %v592 = vpack.c.b16 %v567, %v566
      %v593 = vpack.c.b16 %v569, %v568
      %v594 = vpack.c.b16 %v571, %v570
      %v595 = vpack.c.b16 %v573, %v572
      %v596 = vpack.c.b16 %v575, %v574
      %v597 = vpack.c.b16 %v577, %v576
      %v598 = vpack.c.b16 %v579, %v578
      %v599 = vpack.c.b16 %v581, %v580
      %v600 = vpack.c.b16 %v583, %v582
      %vm618 = vcmask 130048
      %v620 = vsel %vm618, %v508, 0
      %v623 = vsel %vm618, %v511, 0
      %625 = vmatpush.bf16.msra.mxu0 %v591
      %626 = vmatpush.bf16.msra.mxu0 %v590
      %627 = vmatpush.bf16.msra.mxu0 %v589
      %628 = vmatpush.bf16.msra.mxu0 %v588
      %629 = vmatpush.bf16.msra.mxu0 %v587
      %630 = vmatpush.bf16.msra.mxu0 %v586
      %631 = vmatpush.bf16.msra.mxu0 %v585
      %632 = vmatpush.bf16.msra.mxu0 %v584
      %633 = vmatmul.bf16.gmra.mxu0 %v506
      %v634 = vpop.f32.mrf.mxu0
      %v635 = vadd.f32 %v469, %v634
      %v636 = vpop.f32.mrf.mxu0
      %v637 = vadd.f32 %v474, %v636
      %638 = vmatmul.bf16.gmra.mxu0 %v509
      %v639 = vpop.f32.mrf.mxu0
      %v640 = vadd.f32 %v479, %v639
      %v641 = vpop.f32.mrf.mxu0
      %v642 = vadd.f32 %v484, %v641
      %643 = vdwg.mxu0
      %644 = vmatpush.bf16.msra.mxu0 %v599
      %645 = vmatpush.bf16.msra.mxu0 %v598
      %646 = vmatpush.bf16.msra.mxu0 %v597
      %647 = vmatpush.bf16.msra.mxu0 %v596
      %648 = vmatpush.bf16.msra.mxu0 %v595
      %649 = vmatpush.bf16.msra.mxu0 %v594
      %650 = vmatpush.bf16.msra.mxu0 %v593
      %651 = vmatpush.bf16.msra.mxu0 %v592
      %652 = vmatmul.bf16.gmra.mxu0 %v507
      %v653 = vpop.f32.mrf.mxu0
      %v654 = vadd.f32 %v635, %v653
      %v655 = vpop.f32.mrf.mxu0
      %v656 = vadd.f32 %v637, %v655
      %657 = vmatmul.bf16.gmra.mxu0 %v510
      %v658 = vpop.f32.mrf.mxu0
      %v659 = vadd.f32 %v640, %v658
      %v660 = vpop.f32.mrf.mxu0
      %v661 = vadd.f32 %v642, %v660
      %662 = vdwg.mxu0
      %663 = vmatpush.bf16.msra.mxu0 0
      %664 = vmatpush.bf16.msra.mxu0 0
      %665 = vmatpush.bf16.msra.mxu0 0
      %666 = vmatpush.bf16.msra.mxu0 0
      %667 = vmatpush.bf16.msra.mxu0 0
      %668 = vmatpush.bf16.msra.mxu0 0
      %669 = vmatpush.bf16.msra.mxu0 0
      %670 = vmatpush.bf16.msra.mxu0 %v600
      %671 = vmatmul.bf16.gmra.mxu0 %v620
      %v672 = vpop.f32.mrf.mxu0
      %v673 = vadd.f32 %v654, %v672
      %v674 = vpop.f32.mrf.mxu0
      %v675 = vadd.f32 %v656, %v674
      %676 = vmatmul.bf16.gmra.mxu0 %v623
      %v677 = vpop.f32.mrf.mxu0
      %v678 = vadd.f32 %v659, %v677
      %v679 = vpop.f32.mrf.mxu0
      %v680 = vadd.f32 %v661, %v679
      %681 = vdwg.mxu0
      %v682 = vmax.f32 %v673, 0.0
      %v683 = vmax.f32 %v675, 0.0
      %v684 = vmax.f32 %v678, 0.0
      %v685 = vmax.f32 %v680, 0.0
      %v686 = vpack.c.bf16 %v682, %v682
      %v687 = vpack.c.bf16 %v683, %v683
      %v688 = vpack.c.bf16 %v684, %v684
      %v689 = vpack.c.bf16 %v685, %v685
      %690 = vst.msk [vmem:[%s237] sm:$0xf] %vm241, %v686
      %691 = vst.msk [vmem:[%s237 + $0x4] sm:$0xf] %vm241, %v687
      %692 = vst.msk [vmem:[%s237 + $0x8] sm:$0xf] %vm241, %v688
      %693 = vst.msk [vmem:[%s237 + $0xc] sm:$0xf] %vm241, %v689
      %p694 = scmp.lt.s32.totalorder %s19, 1
      %s695 = scalar_select %p694, %s19, 1
      %p696 = scmp.lt.s32.totalorder %s20, 0
      %s697 = scalar_select %p696, %s20, 0
      %s698 = smul.addr %s695, 4
      %s699 = sadd.s32 %s697, %s698
      %s700 = smul.addr %s699, 4
      %s701 = scalar_lea.vmem %s4, %s700
      // Predicated region
      $region37: #{_lambda_.6} parent=35 // pred_check
        %p702 = pneg %p141
      $region38: #{_lambda_.6} parent=35 // pred_check_branch
        %704 = sbr.rel (%p702) target = $region40
      $region39: #{_lambda_.6} parent=35 // pred_region
        _
      $region40: #{_lambda_.6} parent=35 // pred_fallthru
        _
    $region36: #{_lambda_.6} parent=5 // pred_fallthru
      _
    %p705 = scmp.le.s32.totalorder 2, %s10
    // Predicated region
    $region41: #{_lambda_.6} parent=5 // pred_check
      %p706 = pneg %p705
    $region42: #{_lambda_.6} parent=5 // pred_check_branch
      %708 = sbr.rel (%p706) target = $region44
    $region43: #{_lambda_.6} parent=5 // pred_region
      %s709 = ssub.s32 %s10, 2
      // Predicated region
      $region45: #{_lambda_.6} parent=43 // pred_check
        %p710 = pneg %p147
      $region46: #{_lambda_.6} parent=43 // pred_check_branch
        %712 = sbr.rel (%p710) target = $region48
      $region47: #{_lambda_.6} parent=43 // pred_region
        %p713 = scmp.lt.s32.totalorder %s21, 1
        %s714 = scalar_select %p713, %s21, 1
        %p715 = scmp.lt.s32.totalorder %s22, 0
        %s716 = scalar_select %p715, %s22, 0
        %s717 = smul.addr %s714, 4
        %s718 = sadd.s32 %s716, %s717
        %s719 = smul.addr %s718, 4
        %s720 = scalar_lea.vmem %s4, %s719
      $region48: #{_lambda_.6} parent=43 // pred_fallthru
        _
    $region44: #{_lambda_.6} parent=5 // pred_fallthru
      _
  $region6: #{_lambda_.6} parent=0 // loop_footer
    %s14 = sadd.s32 1, %s10
  $region7: #{_lambda_.6} parent=0 // loop_footer_branch
    %9 = sbr.rel target = $region3
  $region8: #{_lambda_.6} parent=0 // loop_exit
    _

// kernel: _lambda_.7
$region0: #{_lambda_.7}
  #allocation0 [shape = 'u32[]', space=smem, size = 0x4, offset = 0x4, fixed_abs, tag = 'smem constant byte address 0x4 - core index']
  #allocation1 [shape = 'u32[72,128]{1,0:T(1,128)}', space=vmem, size = 0x9000, scoped, tag = 'internal scratch']
  #allocation2 [shape = 'bf16[72,80]{1,0:T(8,128)(2,1)}', space=vmem, size = 0x4800, scoped, tag = 'scratch operand']
  %s0 = inlined_call_operand.vmem [shape: bf16[2,8,110], index: 0, kind: input, shape index: {}]
  %s1 = inlined_call_operand.vmem [shape: bf16[32,72], index: 1, kind: input, shape index: {}]
  %s2 = inlined_call_operand.vmem [shape: f32[32,1], index: 2, kind: input, shape index: {}]
  %s3 = inlined_call_operand.vmem [shape: bf16[12,32], index: 3, kind: input, shape index: {}]
  %s4 = inlined_call_operand.vmem [shape: f32[12,1], index: 4, kind: input, shape index: {}]
  %s5 = inlined_call_operand.vmem [shape: f32[2,12,80], index: 5, kind: output, shape index: {}]
  %s6 = sld [smem:[#allocation0]]
  $region53: #{_lambda_.7} parent=0
    _
  %s8 = ssub.s32 1, %s6
  %s9 = scalar_select 0, %s8, %s6
  loop: start=0, step=1, limit=4
  $region2: #{_lambda_.7} parent=0 // loop_pre_header
    _
  $region3: #{_lambda_.7} parent=0 // loop_header
    %s11 = sphi 0, %s15
    %p12 = scmp.ge.s32.totalorder %s11, 4
    %s18 = sphi 0, %s30
    %s19 = sphi 0, %s26
    %s20 = sphi 0, %s18
    %s21 = sphi 0, %s19
    %s22 = sphi 0, %s20
    %s23 = sphi 0, %s21
    %s33 = sphi 0, %s35
    %s36 = sphi 0, %s33
    %s37 = sphi 0, %s36
    %s53 = sphi 0, %s37
    %s57 = sphi 0, %s57
    %s59 = sphi 0, %s57
    %s60 = sphi 0, %s59
    %s74 = sphi 0, %s60
    %s78 = sphi 0, %s78
    %s80 = sphi 0, %s78
    %s81 = sphi 0, %s80
    %s95 = sphi 0, %s81
    %s99 = sphi 0, %s99
    %s101 = sphi 0, %s99
    %s102 = sphi 0, %s101
    %s116 = sphi 0, %s102
    %s120 = sphi 0, %s120
    %s122 = sphi 0, %s120
    %s123 = sphi 0, %s122
    %s137 = sphi 0, %s123
    %s145 = sphi 0, %s147
    %s148 = sphi 0, %s145
    %s149 = sphi 0, %s148
    %s165 = sphi 0, %s149
  $region4: #{_lambda_.7} parent=0 // loop_header_branch
    %14 = sbr.rel (%p12) target = $region8
  $region5: #{_lambda_.7} parent=0 // loop_body
    %s16 = ssub.s32 %s11, 1
    %s17 = ssub.s32 %s11, 2
    %s24 = sadd.s32 1, %s19
    %p25 = scmp.ge.s32.totalorder %s24, 1
    %s26 = scalar_select %p25, 0, %s24
    %s27 = sadd.s32 1, %s18
    %s28 = scalar_select %p25, %s27, %s18
    %p29 = scmp.ge.s32.totalorder %s28, 2
    %s30 = scalar_select %p29, 0, %s28
    %s31 = ssub.s32 %s18, %s30
    %p32 = scmp.eq.s32.totalorder %s31, 0
    %s34 = sadd.s32 %s33, 1
    %s35 = scalar_select %p32, %s33, %s34
    %p38 = pneg %p32
    %p39 = scmp.eq.s32.totalorder %s11, 1
    %p40 = por %p38, %p39
    %p41 = scmp.ne.s32.totalorder %s33, %s36
    %p42 = scmp.eq.s32.totalorder %s11, 0
    %p43 = por %p41, %p42
    %p44 = scmp.ne.s32.totalorder %s33, %s36
    %p45 = scmp.eq.s32.totalorder %s16, 1
    %p46 = por %p44, %p45
    %p47 = scmp.ne.s32.totalorder %s36, %s37
    %p48 = scmp.eq.s32.totalorder %s16, 0
    %p49 = por %p47, %p48
    %p50 = scmp.ne.s32.totalorder %s36, %s37
    %p51 = scmp.eq.s32.totalorder %s17, 1
    %p52 = por %p50, %p51
    %p54 = scmp.ne.s32.totalorder %s37, %s53
    %p55 = scmp.eq.s32.totalorder %s17, 0
    %p56 = por %p54, %p55
    %s58 = sadd.s32 %s57, 1
    %p61 = scmp.eq.s32.totalorder %s11, 1
    %p62 = scmp.ne.s32.totalorder %s57, %s59
    %p63 = scmp.eq.s32.totalorder %s11, 0
    %p64 = por %p62, %p63
    %p65 = scmp.ne.s32.totalorder %s57, %s59
    %p66 = scmp.eq.s32.totalorder %s16, 1
    %p67 = por %p65, %p66
    %p68 = scmp.ne.s32.totalorder %s59, %s60
    %p69 = scmp.eq.s32.totalorder %s16, 0
    %p70 = por %p68, %p69
    %p71 = scmp.ne.s32.totalorder %s59, %s60
    %p72 = scmp.eq.s32.totalorder %s17, 1
    %p73 = por %p71, %p72
    %p75 = scmp.ne.s32.totalorder %s60, %s74
    %p76 = scmp.eq.s32.totalorder %s17, 0
    %p77 = por %p75, %p76
    %s79 = sadd.s32 %s78, 1
    %p82 = scmp.eq.s32.totalorder %s11, 1
    %p83 = scmp.ne.s32.totalorder %s78, %s80
    %p84 = scmp.eq.s32.totalorder %s11, 0
    %p85 = por %p83, %p84
    %p86 = scmp.ne.s32.totalorder %s78, %s80
    %p87 = scmp.eq.s32.totalorder %s16, 1
    %p88 = por %p86, %p87
    %p89 = scmp.ne.s32.totalorder %s80, %s81
    %p90 = scmp.eq.s32.totalorder %s16, 0
    %p91 = por %p89, %p90
    %p92 = scmp.ne.s32.totalorder %s80, %s81
    %p93 = scmp.eq.s32.totalorder %s17, 1
    %p94 = por %p92, %p93
    %p96 = scmp.ne.s32.totalorder %s81, %s95
    %p97 = scmp.eq.s32.totalorder %s17, 0
    %p98 = por %p96, %p97
    %s100 = sadd.s32 %s99, 1
    %p103 = scmp.eq.s32.totalorder %s11, 1
    %p104 = scmp.ne.s32.totalorder %s99, %s101
    %p105 = scmp.eq.s32.totalorder %s11, 0
    %p106 = por %p104, %p105
    %p107 = scmp.ne.s32.totalorder %s99, %s101
    %p108 = scmp.eq.s32.totalorder %s16, 1
    %p109 = por %p107, %p108
    %p110 = scmp.ne.s32.totalorder %s101, %s102
    %p111 = scmp.eq.s32.totalorder %s16, 0
    %p112 = por %p110, %p111
    %p113 = scmp.ne.s32.totalorder %s101, %s102
    %p114 = scmp.eq.s32.totalorder %s17, 1
    %p115 = por %p113, %p114
    %p117 = scmp.ne.s32.totalorder %s102, %s116
    %p118 = scmp.eq.s32.totalorder %s17, 0
    %p119 = por %p117, %p118
    %s121 = sadd.s32 %s120, 1
    %p124 = scmp.eq.s32.totalorder %s11, 1
    %p125 = scmp.ne.s32.totalorder %s120, %s122
    %p126 = scmp.eq.s32.totalorder %s11, 0
    %p127 = por %p125, %p126
    %p128 = scmp.ne.s32.totalorder %s120, %s122
    %p129 = scmp.eq.s32.totalorder %s16, 1
    %p130 = por %p128, %p129
    %p131 = scmp.ne.s32.totalorder %s122, %s123
    %p132 = scmp.eq.s32.totalorder %s16, 0
    %p133 = por %p131, %p132
    %p134 = scmp.ne.s32.totalorder %s122, %s123
    %p135 = scmp.eq.s32.totalorder %s17, 1
    %p136 = por %p134, %p135
    %p138 = scmp.ne.s32.totalorder %s123, %s137
    %p139 = scmp.eq.s32.totalorder %s17, 0
    %p140 = por %p138, %p139
    %s141 = ssub.s32 %s18, %s30
    %s142 = ssub.s32 %s19, %s26
    %s143 = sor.u32 %s141, %s142
    %p144 = scmp.eq.s32.totalorder %s143, 0
    %s146 = sadd.s32 %s145, 1
    %s147 = scalar_select %p144, %s145, %s146
    %p150 = pneg %p144
    %p151 = scmp.eq.s32.totalorder %s11, 1
    %p152 = por %p150, %p151
    %p153 = scmp.ne.s32.totalorder %s145, %s148
    %p154 = scmp.eq.s32.totalorder %s11, 0
    %p155 = por %p153, %p154
    %p156 = scmp.ne.s32.totalorder %s145, %s148
    %p157 = scmp.eq.s32.totalorder %s16, 1
    %p158 = por %p156, %p157
    %p159 = scmp.ne.s32.totalorder %s148, %s149
    %p160 = scmp.eq.s32.totalorder %s16, 0
    %p161 = por %p159, %p160
    %p162 = scmp.ne.s32.totalorder %s148, %s149
    %p163 = scmp.eq.s32.totalorder %s17, 1
    %p164 = por %p162, %p163
    %p166 = scmp.ne.s32.totalorder %s149, %s165
    %p167 = scmp.eq.s32.totalorder %s17, 0
    %p168 = por %p166, %p167
    %p169 = scmp.le.s32.totalorder 1, %s11
    %p170 = scmp.lt.s32.totalorder %s11, 3
    %p171 = pnand %p169, %p170
    %p172 = pneg %p171
    // Predicated region
    $region9: #{_lambda_.7} parent=5 // pred_check
      _
    $region10: #{_lambda_.7} parent=5 // pred_check_branch
      %174 = sbr.rel (%p171) target = $region12
    $region11: #{_lambda_.7} parent=5 // pred_region
      %s175 = ssub.s32 %s11, 1
      // Predicated region
      $region13: #{_lambda_.7} parent=11 // pred_check
        %p176 = pneg %p70
      $region14: #{_lambda_.7} parent=11 // pred_check_branch
        %178 = sbr.rel (%p176) target = $region16
      $region15: #{_lambda_.7} parent=11 // pred_region
        _
      $region16: #{_lambda_.7} parent=11 // pred_fallthru
        _
      // Predicated region
      $region17: #{_lambda_.7} parent=11 // pred_check
        %p179 = pneg %p91
      $region18: #{_lambda_.7} parent=11 // pred_check_branch
        %181 = sbr.rel (%p179) target = $region20
      $region19: #{_lambda_.7} parent=11 // pred_region
        _
      $region20: #{_lambda_.7} parent=11 // pred_fallthru
        _
      // Predicated region
      $region21: #{_lambda_.7} parent=11 // pred_check
        %p182 = pneg %p112
      $region22: #{_lambda_.7} parent=11 // pred_check_branch
        %184 = sbr.rel (%p182) target = $region24
      $region23: #{_lambda_.7} parent=11 // pred_region
        _
      $region24: #{_lambda_.7} parent=11 // pred_fallthru
        _
      // Predicated region
      $region25: #{_lambda_.7} parent=11 // pred_check
        %p185 = pneg %p133
      $region26: #{_lambda_.7} parent=11 // pred_check_branch
        %187 = sbr.rel (%p185) target = $region28
      $region27: #{_lambda_.7} parent=11 // pred_region
        _
      $region28: #{_lambda_.7} parent=11 // pred_fallthru
        _
    $region12: #{_lambda_.7} parent=5 // pred_fallthru
      _
    %p188 = scmp.lt.s32.totalorder %s11, 2
    // Predicated region
    $region29: #{_lambda_.7} parent=5 // pred_check
      %p189 = pneg %p188
    $region30: #{_lambda_.7} parent=5 // pred_check_branch
      %191 = sbr.rel (%p189) target = $region32
    $region31: #{_lambda_.7} parent=5 // pred_region
      // Predicated region
      $region33: #{_lambda_.7} parent=31 // pred_check
        %p192 = pneg %p43
      $region34: #{_lambda_.7} parent=31 // pred_check_branch
        %194 = sbr.rel (%p192) target = $region36
      $region35: #{_lambda_.7} parent=31 // pred_region
        %p195 = scmp.lt.s32.totalorder %s18, 1
        %s196 = scalar_select %p195, %s18, 1
        %s197 = smul.addr %s196, 4
        %s198 = scalar_lea.vmem %s0, %s197
      $region36: #{_lambda_.7} parent=31 // pred_fallthru
        _
    $region32: #{_lambda_.7} parent=5 // pred_fallthru
      _
    %p199 = scmp.le.s32.totalorder 1, %s11
    %p200 = scmp.lt.s32.totalorder %s11, 3
    %p201 = pnand %p199, %p200
    %p202 = pneg %p201
    // Predicated region
    $region37: #{_lambda_.7} parent=5 // pred_check
      _
    $region38: #{_lambda_.7} parent=5 // pred_check_branch
      %204 = sbr.rel (%p201) target = $region40
    $region39: #{_lambda_.7} parent=5 // pred_region
      %s205 = ssub.s32 %s11, 1
      %p206 = scmp.lt.s32.totalorder %s20, 1
      %s207 = scalar_select %p206, %s20, 1
      %s208 = smul.addr %s207, 4
      %s209 = scalar_lea.vmem %s0, %s208
      %p210 = pneg %p49
      %p211 = pneg %p46
      %p212 = pneg %p70
      %p213 = pneg %p67
      %p214 = pneg %p91
      %p215 = pneg %p88
      %p216 = pneg %p112
      %p217 = pneg %p109
      %p218 = pneg %p133
      %p219 = pneg %p130
      %p220 = pneg %p161
      %p221 = pneg %p158
      %p222 = scmp.lt.s32.totalorder %s20, 1
      %s223 = scalar_select %p222, %s20, 1
      %p224 = scmp.lt.s32.totalorder %s21, 0
      %s225 = scalar_select %p224, %s21, 0
      %s226 = smul.addr %s223, 2
      %s227 = sadd.s32 %s225, %s226
      %s228 = smul.addr %s227, 8
      %s229 = scalar_lea.vmem %s5, %s228
      %p230 = scmp.lt.s32.totalorder %s20, 1
      %s231 = scalar_select %p230, %s20, 1
      %s232 = smul.addr %s231, 4
      %s233 = scalar_lea.vmem %s0, %s232
      %p234 = scmp.lt.s32.totalorder %s20, 1
      %s235 = scalar_select %p234, %s20, 1
      %p236 = scmp.lt.s32.totalorder %s21, 0
      %s237 = scalar_select %p236, %s21, 0
      %s238 = smul.addr %s235, 2
      %s239 = sadd.s32 %s237, %s238
      %s240 = smul.addr %s239, 8
      %s241 = scalar_lea.vmem %s5, %s240
      %v243 = vld [vmem:[%s233] sm:$0xf]
      %vm244 = vcmask 650240
      %245 = vst.msk [vmem:[#allocation2] sm:$0xf] %vm244, %v243
      %v246 = vld [vmem:[%s233] sm:$0xf]
      %248 = vrot.lane.b32.xlu0 %v246, 127
      %v249 = vpop.permute.xlu0 %248
      %251 = vst.msk [vmem:[#allocation2 + $0x4] sm:$0xf] %vm244, %v249
      %v252 = vld [vmem:[%s233] sm:$0xf]
      %254 = vrot.lane.b32.xlu0 %v252, 126
      %v255 = vpop.permute.xlu0 %254
      %257 = vst.msk [vmem:[#allocation2 + $0x8] sm:$0xf] %vm244, %v255
      %v258 = vld [vmem:[%s233] sm:$0xf]
      %260 = vrot.lane.b32.xlu0 %v258, 118
      %v261 = vpop.permute.xlu0 %260
      %263 = vst.msk [vmem:[#allocation2 + $0xc] sm:$0xf] %vm244, %v261
      %v264 = vld [vmem:[%s233] sm:$0xf]
      %266 = vrot.lane.b32.xlu0 %v264, 117
      %v267 = vpop.permute.xlu0 %266
      %269 = vst.msk [vmem:[#allocation2 + $0x10] sm:$0xf] %vm244, %v267
      %v270 = vld [vmem:[%s233] sm:$0xf]
      %272 = vrot.lane.b32.xlu0 %v270, 116
      %v273 = vpop.permute.xlu0 %272
      %275 = vst.msk [vmem:[#allocation2 + $0x14] sm:$0xf] %vm244, %v273
      %v276 = vld [vmem:[%s233] sm:$0xf]
      %278 = vrot.lane.b32.xlu0 %v276, 108
      %v279 = vpop.permute.xlu0 %278
      %281 = vst.msk [vmem:[#allocation2 + $0x18] sm:$0xf] %vm244, %v279
      %v282 = vld [vmem:[%s233] sm:$0xf]
      %284 = vrot.lane.b32.xlu0 %v282, 107
      %v285 = vpop.permute.xlu0 %284
      %287 = vst.msk [vmem:[#allocation2 + $0x1c] sm:$0xf] %vm244, %v285
      %v288 = vld [vmem:[%s233] sm:$0xf]
      %290 = vrot.lane.b32.xlu0 %v288, 106
      %v291 = vpop.permute.xlu0 %290
      %293 = vst.msk [vmem:[#allocation2 + $0x20] sm:$0xf] %vm244, %v291
      %v294 = vld [vmem:[%s1] sm:$0xf]
      %v295 = vld [vmem:[%s1 + $0x4] sm:$0xf]
      %v296 = vld [vmem:[%s1 + $0x8] sm:$0xf]
      %v297 = vld [vmem:[%s1 + $0xc] sm:$0xf]
      %v298 = vld [vmem:[#allocation2] sm:$0xf]
      %v299 = vld [vmem:[#allocation2 + $0x4] sm:$0xf]
      %v300 = vld [vmem:[#allocation2 + $0x8] sm:$0xf]
      %v301 = vld [vmem:[#allocation2 + $0xc] sm:$0xf]
      %v302 = vld [vmem:[#allocation2 + $0x10] sm:$0xf]
      %v303 = vld [vmem:[#allocation2 + $0x14] sm:$0xf]
      %v304 = vld [vmem:[#allocation2 + $0x18] sm:$0xf]
      %v305 = vld [vmem:[#allocation2 + $0x1c] sm:$0xf]
      %v306 = vld [vmem:[#allocation2 + $0x20] sm:$0xf]
      %v307 = vld [vmem:[%s2] sm:$0xff]
      %v308 = vld [vmem:[%s2 + $0x8] sm:$0xff]
      %v309 = vld [vmem:[%s2 + $0x10] sm:$0xff]
      %v310 = vld [vmem:[%s2 + $0x18] sm:$0xff]
      %312 = vset.pattern.permute.xlu0 0
      %313 = vperm.xlu0 %312, %v307
      %v314 = vpop.permute.xlu0 %313
      %317 = vset.pattern.permute.xlu0 0
      %318 = vperm.xlu0 %317, %v308
      %v319 = vpop.permute.xlu0 %318
      %322 = vset.pattern.permute.xlu0 0
      %323 = vperm.xlu0 %322, %v309
      %v324 = vpop.permute.xlu0 %323
      %327 = vset.pattern.permute.xlu0 0
      %328 = vperm.xlu0 %327, %v310
      %v329 = vpop.permute.xlu0 %328
      %v335 = vunpack.c.l.b16 %v294
      %v336 = vunpack.c.l.b16 %v295
      %v337 = vunpack.c.l.b16 %v296
      %v338 = vunpack.c.l.b16 %v297
      %v339 = vpack.c.b16 %v336, %v335
      %v340 = vpack.c.b16 %v338, %v337
      %v350 = vunpack.c.l.b16 %v298
      %v351 = vunpack.c.l.b16 %v299
      %v352 = vunpack.c.l.b16 %v300
      %v353 = vunpack.c.l.b16 %v301
      %v354 = vunpack.c.l.b16 %v302
      %v355 = vunpack.c.l.b16 %v303
      %v356 = vunpack.c.l.b16 %v304
      %v357 = vunpack.c.l.b16 %v305
      %v358 = vunpack.c.l.b16 %v306
      %v359 = vpack.c.b16 %v351, %v350
      %v360 = vpack.c.b16 %v353, %v352
      %v361 = vpack.c.b16 %v355, %v354
      %v362 = vpack.c.b16 %v357, %v356
      %v363 = vpack.c.b16 %v358, %v358
      %vm368 = vcmask 588800
      %v370 = vsel %vm368, %v339, 0
      %v373 = vsel %vm368, %v340, 0
      %vm375 = vcmask 1043456
      %v377 = vsel %vm375, %v363, 0
      %379 = vmatpush.bf16.msra.mxu0 0
      %380 = vmatpush.bf16.msra.mxu0 0
      %381 = vmatpush.bf16.msra.mxu0 0
      %382 = vmatpush.bf16.msra.mxu0 %v377
      %383 = vmatpush.bf16.msra.mxu0 %v362
      %384 = vmatpush.bf16.msra.mxu0 %v361
      %385 = vmatpush.bf16.msra.mxu0 %v360
      %386 = vmatpush.bf16.msra.mxu0 %v359
      %387 = vmatmul.bf16.gmra.mxu0 %v370
      %v388 = vpop.f32.mrf.mxu0
      %v389 = vadd.f32 %v314, %v388
      %v390 = vpop.f32.mrf.mxu0
      %v391 = vadd.f32 %v319, %v390
      %392 = vmatmul.bf16.gmra.mxu0 %v373
      %v393 = vpop.f32.mrf.mxu0
      %v394 = vadd.f32 %v324, %v393
      %v395 = vpop.f32.mrf.mxu0
      %v396 = vadd.f32 %v329, %v395
      %397 = vdwg.mxu0
      %v398 = vmax.f32 %v389, 0.0
      %v399 = vmax.f32 %v391, 0.0
      %v400 = vmax.f32 %v394, 0.0
      %v401 = vmax.f32 %v396, 0.0
      %v402 = vld [vmem:[%s3] sm:$0xf]
      %v403 = vld [vmem:[%s3 + $0x4] sm:$0x3]
      %v404 = vpack.c.bf16 %v399, %v398
      %v405 = vpack.c.bf16 %v401, %v400
      %v406 = vld [vmem:[%s4] sm:$0xff]
      %v407 = vld [vmem:[%s4 + $0x8] sm:$0xf]
      %409 = vset.pattern.permute.xlu0 0
      %410 = vperm.xlu0 %409, %v406
      %v411 = vpop.permute.xlu0 %410
      %414 = vset.pattern.permute.xlu0 0
      %415 = vperm.xlu0 %414, %v407
      %v416 = vpop.permute.xlu0 %415
      %v420 = vunpack.c.l.b16 %v402
      %v421 = vunpack.c.l.b16 %v403
      %v422 = vpack.c.b16 %v421, %v420
      %vm423 = vcmask 261120
      %v425 = vsel %vm423, %v422, 0
      %427 = vmatpush.bf16.msra.mxu0 0
      %428 = vmatpush.bf16.msra.mxu0 0
      %429 = vmatpush.bf16.msra.mxu0 0
      %430 = vmatpush.bf16.msra.mxu0 0
      %431 = vmatpush.bf16.msra.mxu0 0
      %432 = vmatpush.bf16.msra.mxu0 0
      %433 = vmatpush.bf16.msra.mxu0 %v405
      %434 = vmatpush.bf16.msra.mxu0 %v404
      %435 = vmatmul.bf16.gmra.mxu0 %v425
      %v436 = vpop.f32.mrf.mxu0
      %v437 = vadd.f32 %v411, %v436
      %v438 = vpop.f32.mrf.mxu0
      %v439 = vadd.f32 %v416, %v438
      %440 = vdwg.mxu0
      %vm441 = vcmask 654336
      %442 = vst.msk [vmem:[%s241] sm:$0xff] %vm441, %v437
      %443 = vst.msk [vmem:[%s241 + $0x8] sm:$0xf] %vm244, %v439
      %p444 = scmp.lt.s32.totalorder %s20, 1
      %s445 = scalar_select %p444, %s20, 1
      %p446 = scmp.lt.s32.totalorder %s21, 0
      %s447 = scalar_select %p446, %s21, 0
      %s448 = smul.addr %s445, 2
      %s449 = sadd.s32 %s447, %s448
      %s450 = smul.addr %s449, 8
      %s451 = scalar_lea.vmem %s5, %s450
      // Predicated region
      $region41: #{_lambda_.7} parent=39 // pred_check
        %p452 = pneg %p158
      $region42: #{_lambda_.7} parent=39 // pred_check_branch
        %454 = sbr.rel (%p452) target = $region44
      $region43: #{_lambda_.7} parent=39 // pred_region
        _
      $region44: #{_lambda_.7} parent=39 // pred_fallthru
        _
    $region40: #{_lambda_.7} parent=5 // pred_fallthru
      _
    %p455 = scmp.le.s32.totalorder 2, %s11
    // Predicated region
    $region45: #{_lambda_.7} parent=5 // pred_check
      %p456 = pneg %p455
    $region46: #{_lambda_.7} parent=5 // pred_check_branch
      %458 = sbr.rel (%p456) target = $region48
    $region47: #{_lambda_.7} parent=5 // pred_region
      %s459 = ssub.s32 %s11, 2
      // Predicated region
      $region49: #{_lambda_.7} parent=47 // pred_check
        %p460 = pneg %p164
      $region50: #{_lambda_.7} parent=47 // pred_check_branch
        %462 = sbr.rel (%p460) target = $region52
      $region51: #{_lambda_.7} parent=47 // pred_region
        %p463 = scmp.lt.s32.totalorder %s22, 1
        %s464 = scalar_select %p463, %s22, 1
        %p465 = scmp.lt.s32.totalorder %s23, 0
        %s466 = scalar_select %p465, %s23, 0
        %s467 = smul.addr %s464, 2
        %s468 = sadd.s32 %s466, %s467
        %s469 = smul.addr %s468, 8
        %s470 = scalar_lea.vmem %s5, %s469
      $region52: #{_lambda_.7} parent=47 // pred_fallthru
        _
    $region48: #{_lambda_.7} parent=5 // pred_fallthru
      _
  $region6: #{_lambda_.7} parent=0 // loop_footer
    %s15 = sadd.s32 1, %s11
  $region7: #{_lambda_.7} parent=0 // loop_footer_branch
    %10 = sbr.rel target = $region3
  $region8: #{_lambda_.7} parent=0 // loop_exit
    _

</llo_original>
